<compile_context>
chip_gen: v7x
topology: tpu7x:2x2x1
jax: 0.10.0
libtpu: 0.0.40
codegen_flags: <defaults>
</compile_context>

<pallas_src>
import jax
import jax.numpy as jnp
from jax import lax
from jax.experimental import pallas as pl
from jax.experimental.pallas import tpu as pltpu

NUM_TOKENS = 26
PADDING_VALUE = 0

LANE = 128           # TPU lane width
SUBLANE = 8          # TPU sublane width
TOKENS_PAD = 128     # NUM_TOKENS padded to a lane-dense output width
NEG_INF = -1e30


def _round_up(x, m):
    return (x + m - 1) // m * m


def _row_tile(n, max_tile):
    """Row tile for the big (rows x features) matmuls (multiple of 8 sublanes)."""
    return max_tile if n >= max_tile else _round_up(max(n, 1), SUBLANE)


def _pick_t_chunk(S, HP):
    """Time-steps per grid iteration: large HP => smaller unroll (vreg pressure)."""
    max_chunk = 16 if HP <= 512 else (8 if HP <= 1024 else 4)
    for c in (16, 8, 4, 2, 1):
        if c <= max_chunk and S % c == 0:
            return c
    return 1


def _compiler_params(semantics, buffer_bytes):
    """VMEM limit derived from the actual per-call working set (v7x-safe)."""
    limit = max(16 << 20, int(buffer_bytes * 1.25) + (2 << 20))
    return pltpu.CompilerParams(dimension_semantics=semantics,
                                vmem_limit_bytes=limit)


# ----------------------------------------------------------------------------
# Pallas kernel: row- and F-tiled dense + bias (hoisted LSTM input projection)
# ----------------------------------------------------------------------------
def _dense_bias_kernel(x_ref, w_ref, b_ref, o_ref):
    # out = x @ w + b; bf16 MXU operands, f32 accumulation, bf16 store.
    acc = jnp.dot(x_ref[...].astype(w_ref.dtype), w_ref[...],
                  preferred_element_type=jnp.float32) + b_ref[...]
    o_ref[...] = acc.astype(o_ref.dtype)


def dense_bias(x, w, b, *, f_tile=None, max_row_tile=512):
    """x: (N, D) bf16, w: (D, F) bf16, b: (1, F) f32 -> (N, F) bf16.

    Grid is (F tiles, row tiles); F is the OUTER axis so the single-buffered
    (D, f_tile) weight block stays resident across the whole row sweep."""
    N, D = x.shape
    F = w.shape[1]
    if f_tile is None or F % f_tile != 0:
        f_tile = F
    tile = _row_tile(N, max_row_tile)
    n_pad = _round_up(N, tile)
    if n_pad != N:
        x = jnp.pad(x, ((0, n_pad - N), (0, 0)))
    buf_bytes = (2 * tile * D * x.dtype.itemsize        # x tile, double-buffered
                 + D * f_tile * w.dtype.itemsize        # resident weight tile
                 + f_tile * 4                           # bias tile
                 + 2 * tile * f_tile * 2)               # bf16 out, double-buffered
    out = pl.pallas_call(
        _dense_bias_kernel,
        out_shape=jax.ShapeDtypeStruct((n_pad, F), jnp.bfloat16),
        grid=(F // f_tile, n_pad // tile),
        in_specs=[
            pl.BlockSpec((tile, D), lambda j, i: (i, 0)),
            pl.BlockSpec((D, f_tile), lambda j, i: (0, j),
                         pipeline_mode=pl.Buffered(1)),
            pl.BlockSpec((1, f_tile), lambda j, i: (0, j),
                         pipeline_mode=pl.Buffered(1)),
        ],
        out_specs=pl.BlockSpec((tile, f_tile), lambda j, i: (i, j)),
        compiler_params=_compiler_params(("parallel", "parallel"), buf_bytes),
    )(x, w, b)
    return out[:N]


# ----------------------------------------------------------------------------
# Pallas kernel: LSTM recurrence.
# grid = (batch blocks ["parallel", megacore], time chunks ["arbitrary"]).
# Only the per-gate h @ W_hh[:, g] matmuls are on the serial critical path;
# gates are consumed one at a time to keep the live vreg set ~ (B, HP).
# ----------------------------------------------------------------------------
def _lstm_rec_kernel(pg_ref, whh_ref, h0_ref, c0_ref,
                     out_ref, hN_ref, cN_ref, h_scr, c_scr):
    t_blk = pl.program_id(1)
    t_chunk = pg_ref.shape[0]
    HP = whh_ref.shape[0]

    @pl.when(t_blk == 0)
    def _():
        h_scr[...] = h0_ref[...]
        c_scr[...] = c0_ref[...]

    def gate_pre(t, g, h_b):
        # Precomputed input projection (bf16) + hidden matmul, one gate at a time.
        pre = pg_ref[t, :, pl.ds(g * HP, HP)].astype(jnp.float32)
        pre = pre + jnp.dot(h_b, whh_ref[:, pl.ds(g * HP, HP)],
                            preferred_element_type=jnp.float32)
        return pre

    def step(t, carry):
        h, c = carry
        h_b = h.astype(whh_ref.dtype)
        # PyTorch gate layout [i, f, g, o]; each column slice is lane-aligned.
        i_g = jax.nn.sigmoid(gate_pre(t, 0, h_b))
        f_g = jax.nn.sigmoid(gate_pre(t, 1, h_b))
        g_g = jnp.tanh(gate_pre(t, 2, h_b))
        o_g = jax.nn.sigmoid(gate_pre(t, 3, h_b))
        c_new = f_g * c + i_g * g_g
        h_new = o_g * jnp.tanh(c_new)
        out_ref[t] = h_new.astype(out_ref.dtype)      # bf16 hidden-sequence stream
        return (h_new, c_new)

    h, c = lax.fori_loop(0, t_chunk, step, (h_scr[...], c_scr[...]),
                         unroll=True)
    h_scr[...] = h
    c_scr[...] = c

    @pl.when(t_blk == pl.num_programs(1) - 1)
    def _():
        hN_ref[...] = h        # final state written in full f32 precision
        cN_ref[...] = c


def lstm_layer(pre_gates, whh, h0, c0, *, t_chunk, b_tile):
    """pre_gates: (S, BP, 4*HP) time-major bf16; whh: (HP, 4*HP) bf16;
       h0/c0: (BP, HP) f32.
       Returns ((S, BP, HP) bf16 hidden seq, (BP, HP) f32 h_N, (BP, HP) f32 c_N)."""
    S, BP, G4 = pre_gates.shape
    HP = whh.shape[0]
    assert S % t_chunk == 0 and BP % b_tile == 0
    out_shapes = (
        jax.ShapeDtypeStruct((S, BP, HP), jnp.bfloat16),
        jax.ShapeDtypeStruct((BP, HP), jnp.float32),
        jax.ShapeDtypeStruct((BP, HP), jnp.float32),
    )
    buf_bytes = (HP * G4 * 2                              # resident W_hh (bf16)
                 + 2 * t_chunk * b_tile * G4 * 2          # pre-gate chunk x2 (bf16)
                 + 2 * t_chunk * b_tile * HP * 2          # out chunk x2 (bf16)
                 + 4 * b_tile * HP * 4                    # h0/c0 + hN/cN (f32)
                 + 2 * b_tile * HP * 4)                   # f32 state scratch
    return pl.pallas_call(
        _lstm_rec_kernel,
        out_shape=out_shapes,
        grid=(BP // b_tile, S // t_chunk),
        in_specs=[
            pl.BlockSpec((t_chunk, b_tile, G4), lambda b, t: (t, b, 0)),
            pl.BlockSpec((HP, G4), lambda b, t: (0, 0),
                         pipeline_mode=pl.Buffered(1)),
            pl.BlockSpec((b_tile, HP), lambda b, t: (b, 0),
                         pipeline_mode=pl.Buffered(1)),
            pl.BlockSpec((b_tile, HP), lambda b, t: (b, 0),
                         pipeline_mode=pl.Buffered(1)),
        ],
        out_specs=(
            pl.BlockSpec((t_chunk, b_tile, HP), lambda b, t: (t, b, 0)),
            pl.BlockSpec((b_tile, HP), lambda b, t: (b, 0)),
            pl.BlockSpec((b_tile, HP), lambda b, t: (b, 0)),
        ),
        scratch_shapes=[pltpu.VMEM((b_tile, HP), jnp.float32),
                        pltpu.VMEM((b_tile, HP), jnp.float32)],
        compiler_params=_compiler_params(("parallel", "arbitrary"), buf_bytes),
    )(pre_gates, whh, h0, c0)


# ----------------------------------------------------------------------------
# Pallas kernel: Linear(H -> tokens) + log_softmax, row-tiled, lane-dense output
# ----------------------------------------------------------------------------
def _head_kernel(x_ref, w_ref, b_ref, o_ref):
    logits = (jnp.dot(x_ref[...].astype(w_ref.dtype), w_ref[...],
                      preferred_element_type=jnp.float32) + b_ref[...])
    m = jnp.max(logits, axis=-1, keepdims=True)
    s = logits - m
    lse = jnp.log(jnp.sum(jnp.exp(s), axis=-1, keepdims=True))
    o_ref[...] = s - lse


def lin_logsoftmax(x, w, b, *, max_row_tile=512):
    """x: (N, HP) bf16 -> (N, TOKENS_PAD) f32 log-probs (padded cols ~ -inf)."""
    N, HP = x.shape
    TP = w.shape[1]
    tile = _row_tile(N, max_row_tile)
    n_pad = _round_up(N, tile)
    if n_pad != N:
        x = jnp.pad(x, ((0, n_pad - N), (0, 0)))
    buf_bytes = (2 * tile * HP * x.dtype.itemsize
                 + HP * TP * w.dtype.itemsize + TP * 4
                 + 2 * tile * TP * 4)
    out = pl.pallas_call(
        _head_kernel,
        out_shape=jax.ShapeDtypeStruct((n_pad, TP), jnp.float32),
        grid=(n_pad // tile,),
        in_specs=[
            pl.BlockSpec((tile, HP), lambda i: (i, 0)),
            pl.BlockSpec((HP, TP), lambda i: (0, 0), pipeline_mode=pl.Buffered(1)),
            pl.BlockSpec((1, TP), lambda i: (0, 0), pipeline_mode=pl.Buffered(1)),
        ],
        out_specs=pl.BlockSpec((tile, TP), lambda i: (i, 0)),
        compiler_params=_compiler_params(("parallel",), buf_bytes),
    )(x, w, b)
    return out[:N]


# ----------------------------------------------------------------------------
# Parameters (PyTorch layout) + packing into kernel layout
# ----------------------------------------------------------------------------
def init_unirep_params(key, embed_size, hidden_size, num_layers):
    """Raw parameters in PyTorch layout (nn.Embedding / nn.LSTM / nn.Linear)."""
    keys = jax.random.split(key, 2 + 4 * num_layers)
    scale = 0.1
    embed = scale * jax.random.normal(keys[0], (NUM_TOKENS, embed_size), jnp.float32)
    embed = embed.at[PADDING_VALUE].set(0.0)     # padding_idx row is zero
    lin_w = scale * jax.random.normal(keys[1], (NUM_TOKENS, hidden_size), jnp.float32)
    lin_b = jnp.zeros((NUM_TOKENS,), jnp.float32)
    lstm = []
    for l in range(num_layers):
        in_size = embed_size if l == 0 else hidden_size
        kw = keys[2 + 4 * l: 2 + 4 * (l + 1)]
        lstm.append(dict(
            wih=scale * jax.random.normal(kw[0], (4 * hidden_size, in_size), jnp.float32),
            whh=scale * jax.random.normal(kw[1], (4 * hidden_size, hidden_size), jnp.float32),
            b_ih=scale * jax.random.normal(kw[2], (4 * hidden_size,), jnp.float32),
            b_hh=scale * jax.random.normal(kw[3], (4 * hidden_size,), jnp.float32),
        ))
    return dict(embed=embed, lin_w=lin_w, lin_b=lin_b, lstm=lstm,
                embed_size=embed_size, hidden_size=hidden_size,
                num_layers=num_layers)


def pack_params(raw):
    """Pad H / token axes to lane width, pre-transpose weights to `x @ W`
    layout, cast matmul weights/activations to bf16 (state, biases, softmax
    stay f32), and fold embedding + layer-0 W_ih into a per-token table."""
    E, H, L = raw["embed_size"], raw["hidden_size"], raw["num_layers"]
    HP = _round_up(H, LANE)

    def pad_gate_rows(w):     # (4H, D) -> (4*HP, D), keeping [i,f,g,o] blocks
        D = w.shape[1]
        out = jnp.zeros((4 * HP, D), w.dtype)
        for g in range(4):
            out = out.at[g * HP:g * HP + H].set(w[g * H:(g + 1) * H])
        return out

    layers = []
    pre_table0 = None
    for l in range(L):
        lp = raw["lstm"][l]
        in_size = E if l == 0 else H
        in_pad = E if l == 0 else HP
        wih = pad_gate_rows(lp["wih"])                      # (4HP, in_size)
        if in_pad != in_size:
            wih = jnp.pad(wih, ((0, 0), (0, in_pad - in_size)))
        whh = pad_gate_rows(lp["whh"])                      # (4HP, H)
        whh = jnp.pad(whh, ((0, 0), (0, HP - H)))           # (4HP, HP)
        bias = pad_gate_rows((lp["b_ih"] + lp["b_hh"])[:, None])[:, 0]
        layer = dict(whh=whh.T.astype(jnp.bfloat16))        # (HP, 4HP)
        if l == 0:
            # Token -> pre-gate table: embed @ W_ih0^T + b  (f32 math, bf16 store).
            pre_table0 = (raw["embed"] @ wih.T + bias[None, :]).astype(jnp.bfloat16)
        else:
            layer["wih"] = wih.T.astype(jnp.bfloat16)       # (HP, 4HP)
            layer["bias"] = bias.reshape(1, 4 * HP).astype(jnp.float32)
        layers.append(layer)

    lin_w = jnp.zeros((HP, TOKENS_PAD), jnp.float32)
    lin_w = lin_w.at[:H, :NUM_TOKENS].set(raw["lin_w"].T)
    lin_b = jnp.full((1, TOKENS_PAD), NEG_INF, jnp.float32)
    lin_b = lin_b.at[0, :NUM_TOKENS].set(raw["lin_b"])

    return dict(pre_table0=pre_table0, lstm=layers,
                lin_w=lin_w.astype(jnp.bfloat16), lin_b=lin_b,
                E=E, H=H, HP=HP, L=L)


# ----------------------------------------------------------------------------
# UniRep forward (rnn_type == "LSTM")
# ----------------------------------------------------------------------------
def unirep_forward(params, xb, hidden, mask, *, t_chunk=None):
    """Mirrors UniRep.forward for rnn_type='LSTM'. `mask` is unused (as in PyTorch)."""
    del mask
    B, S = xb.shape
    H, HP, L = params["H"], params["HP"], params["L"]
    BP = _round_up(B, SUBLANE)
    if t_chunk is None:
        t_chunk = _pick_t_chunk(S, HP)
    # Megacore-parallel batch axis for the recurrence when the padded batch
    # splits into >=16-row (bf16 sublane-safe) tiles.
    b_tile = BP // 2 if BP % 32 == 0 else BP

    xb_p = xb if BP == B else jnp.pad(xb, ((0, BP - B), (0, 0)),
                                      constant_values=PADDING_VALUE)

    # Layer-0 pre-gates via table lookup (plain-JAX gather glue), time-major.
    pre = params["pre_table0"][xb_p.T]                # (S, BP, 4HP) bf16

    if hidden is None:
        h0 = jnp.zeros((L, BP, HP), jnp.float32)
        c0 = jnp.zeros((L, BP, HP), jnp.float32)
    else:
        h0_raw, c0_raw = hidden                       # "detach" is a no-op in JAX
        h0 = jnp.zeros((L, BP, HP), jnp.float32).at[:, :B, :H].set(h0_raw)
        c0 = jnp.zeros((L, BP, HP), jnp.float32).at[:, :B, :H].set(c0_raw)

    h_last, c_last = [], []
    x = None
    for l in range(L):
        lp = params["lstm"][l]
        if l > 0:
            # Hoisted input projection over all S*BP rows, F-tiled per gate block.
            pre = dense_bias(x.reshape(S * BP, HP), lp["wih"], lp["bias"],
                             f_tile=HP).reshape(S, BP, 4 * HP)
        x, hN, cN = lstm_layer(pre, lp["whh"], h0[l], c0[l],
                               t_chunk=t_chunk, b_tile=b_tile)
        h_last.append(hN)                             # f32 final state from kernel
        c_last.append(cN)

    # Head runs directly on the time-major hidden sequence (no full transpose);
    # only the small (S, B, 26) log-prob output is transposed.
    ll = lin_logsoftmax(x.reshape(S * BP, HP), params["lin_w"], params["lin_b"])
    ll = ll.reshape(S, BP, TOKENS_PAD)[:, :B, :NUM_TOKENS]
    log_likelihoods = jnp.transpose(ll, (1, 0, 2))    # (B, S, NUM_TOKENS)

    h_n = jnp.stack(h_last, axis=0)[:, :B, :H]
    c_n = jnp.stack(c_last, axis=0)[:, :B, :H]
    return log_likelihoods, (h_n, c_n)


if __name__ == "__main__":
    B, S = 2, 8
    embed_size, hidden_size, num_layers = 32, 32, 2

    key = jax.random.PRNGKey(0)
    k_param, k_tok = jax.random.split(key)
    raw = init_unirep_params(k_param, embed_size, hidden_size, num_layers)
    params = pack_params(raw)

    xb = jax.random.randint(k_tok, (B, S), 0, NUM_TOKENS, dtype=jnp.int32)
    mask = jnp.ones((B, S), jnp.float32)

    log_likelihoods, (h_n, c_n) = unirep_forward(params, xb, None, mask)
    jax.block_until_ready(log_likelihoods)
    jax.block_until_ready(h_n)
    jax.block_until_ready(c_n)

    assert log_likelihoods.shape == (B, S, NUM_TOKENS)
    assert h_n.shape == (num_layers, B, hidden_size)
    assert c_n.shape == (num_layers, B, hidden_size)
    # log_softmax sanity: exp of log-probs sums to 1 along the token axis.
    probs_sum = jnp.sum(jnp.exp(log_likelihoods), axis=-1)
    assert bool(jnp.all(jnp.isfinite(log_likelihoods)))
    assert bool(jnp.allclose(probs_sum, 1.0, atol=1e-3))

    print("KERNEL_OK")
</pallas_src>

<mosaic_0001>
module attributes {stable_mosaic.version = 11 : i64} {
  func.func @_lstm_rec_kernel(%arg0: i32, %arg1: i32, %arg2: memref<8x8x512xbf16, #tpu.memory_space<vmem>>, %arg3: memref<128x512xbf16, #tpu.memory_space<vmem>>, %arg4: memref<8x128xf32, #tpu.memory_space<vmem>>, %arg5: memref<8x128xf32, #tpu.memory_space<vmem>>, %arg6: memref<8x8x128xbf16, #tpu.memory_space<vmem>>, %arg7: memref<8x128xf32, #tpu.memory_space<vmem>>, %arg8: memref<8x128xf32, #tpu.memory_space<vmem>>, %arg9: memref<8x128xf32, #tpu.memory_space<vmem>>, %arg10: memref<8x128xf32, #tpu.memory_space<vmem>>) attributes {dimension_semantics = [#tpu.dimension_semantics<parallel>, #tpu.dimension_semantics<arbitrary>], iteration_bounds = array<i64: 1, 1>, scalar_prefetch = 0 : i64, scratch_operands = 2 : i64, tpu.core_type = #tpu.core_type<tc>, window_params = [{transform_indices = @transform_0, window_bounds = array<i64: 8, 8, 512>}, {pipeline_mode = #tpu.pipeline_mode<synchronous>, transform_indices = @transform_1, window_bounds = array<i64: 128, 512>}, {pipeline_mode = #tpu.pipeline_mode<synchronous>, transform_indices = @transform_2, window_bounds = array<i64: 8, 128>}, {pipeline_mode = #tpu.pipeline_mode<synchronous>, transform_indices = @transform_3, window_bounds = array<i64: 8, 128>}, {transform_indices = @transform_4, window_bounds = array<i64: 8, 8, 128>}, {transform_indices = @transform_5, window_bounds = array<i64: 8, 128>}, {transform_indices = @transform_6, window_bounds = array<i64: 8, 128>}]} {
    %c0_i32 = arith.constant 0 : i32
    %0 = arith.cmpi eq, %arg1, %c0_i32 : i32
    %1 = arith.extui %0 : i1 to i32
    %c0_i32_0 = arith.constant 0 : i32
    %2 = arith.cmpi ne, %1, %c0_i32_0 : i32
    scf.if %2 {
      %c0_207 = arith.constant 0 : index
      %c0_208 = arith.constant 0 : index
      %450 = vector.load %arg4[%c0_207, %c0_208] : memref<8x128xf32, #tpu.memory_space<vmem>>, vector<8x128xf32>
      %c0_209 = arith.constant 0 : index
      %c0_210 = arith.constant 0 : index
      %451 = vector.load %arg9[%c0_209, %c0_210] : memref<8x128xf32, #tpu.memory_space<vmem>>, vector<8x128xf32>
      tpu.vector_store %arg9[%c0_209, %c0_210], %450 {strides = array<i32>} : memref<8x128xf32, #tpu.memory_space<vmem>>, vector<8x128xf32>,
      %c0_211 = arith.constant 0 : index
      %c0_212 = arith.constant 0 : index
      %452 = vector.load %arg5[%c0_211, %c0_212] : memref<8x128xf32, #tpu.memory_space<vmem>>, vector<8x128xf32>
      %c0_213 = arith.constant 0 : index
      %c0_214 = arith.constant 0 : index
      %453 = vector.load %arg10[%c0_213, %c0_214] : memref<8x128xf32, #tpu.memory_space<vmem>>, vector<8x128xf32>
      tpu.vector_store %arg10[%c0_213, %c0_214], %452 {strides = array<i32>} : memref<8x128xf32, #tpu.memory_space<vmem>>, vector<8x128xf32>,
    } else {
    }
    %c0 = arith.constant 0 : index
    %c0_1 = arith.constant 0 : index
    %3 = vector.load %arg9[%c0, %c0_1] : memref<8x128xf32, #tpu.memory_space<vmem>>, vector<8x128xf32>
    %c0_2 = arith.constant 0 : index
    %c0_3 = arith.constant 0 : index
    %4 = vector.load %arg10[%c0_2, %c0_3] : memref<8x128xf32, #tpu.memory_space<vmem>>, vector<8x128xf32>
    %c0_i32_4 = arith.constant 0 : i32
    %5 = arith.truncf %3 : vector<8x128xf32> to vector<8x128xbf16>
    %6 = arith.index_cast %c0_i32_4 : i32 to index
    %c0_5 = arith.constant 0 : index
    %c0_6 = arith.constant 0 : index
    %7 = vector.load %arg2[%6, %c0_5, %c0_6] : memref<8x8x512xbf16, #tpu.memory_space<vmem>>, vector<1x8x128xbf16>
    %8 = vector.shape_cast %7 : vector<1x8x128xbf16> to vector<8x128xbf16>
    %9 = arith.extf %8 : vector<8x128xbf16> to vector<8x128xf32>
    %c0_7 = arith.constant 0 : index
    %c0_8 = arith.constant 0 : index
    %10 = vector.load %arg3[%c0_7, %c0_8] : memref<128x512xbf16, #tpu.memory_space<vmem>>, vector<128x128xbf16>
    %cst = arith.constant dense<0.000000e+00> : vector<8x128xf32>
    %11 = tpu.matmul %5, %10, %cst {dimension_numbers = #tpu.dot_dimension_numbers<[1], [0], [0], [1], [0, 0, 1, 1], [], []>} : vector<8x128xbf16>, vector<128x128xbf16>, vector<8x128xf32> -> vector<8x128xf32>
    %12 = arith.addf %9, %11 : vector<8x128xf32>
    %13 = arith.negf %12 : vector<8x128xf32>
    %14 = math.exp %13 : vector<8x128xf32>
    %cst_9 = arith.constant 1.000000e+00 : f32
    %15 = vector.broadcast %cst_9 : f32 to vector<8x128xf32>
    %16 = arith.addf %15, %14 : vector<8x128xf32>
    %17 = arith.divf %15, %16 : vector<8x128xf32>
    %18 = arith.index_cast %c0_i32_4 : i32 to index
    %c0_10 = arith.constant 0 : index
    %c128 = arith.constant 128 : index
    %19 = vector.load %arg2[%18, %c0_10, %c128] : memref<8x8x512xbf16, #tpu.memory_space<vmem>>, vector<1x8x128xbf16>
    %20 = vector.shape_cast %19 : vector<1x8x128xbf16> to vector<8x128xbf16>
    %21 = arith.extf %20 : vector<8x128xbf16> to vector<8x128xf32>
    %c0_11 = arith.constant 0 : index
    %c128_12 = arith.constant 128 : index
    %22 = vector.load %arg3[%c0_11, %c128_12] : memref<128x512xbf16, #tpu.memory_space<vmem>>, vector<128x128xbf16>
    %cst_13 = arith.constant dense<0.000000e+00> : vector<8x128xf32>
    %23 = tpu.matmul %5, %22, %cst_13 {dimension_numbers = #tpu.dot_dimension_numbers<[1], [0], [0], [1], [0, 0, 1, 1], [], []>} : vector<8x128xbf16>, vector<128x128xbf16>, vector<8x128xf32> -> vector<8x128xf32>
    %24 = arith.addf %21, %23 : vector<8x128xf32>
    %25 = arith.negf %24 : vector<8x128xf32>
    %26 = math.exp %25 : vector<8x128xf32>
    %cst_14 = arith.constant 1.000000e+00 : f32
    %27 = vector.broadcast %cst_14 : f32 to vector<8x128xf32>
    %28 = arith.addf %27, %26 : vector<8x128xf32>
    %29 = arith.divf %27, %28 : vector<8x128xf32>
    %30 = arith.index_cast %c0_i32_4 : i32 to index
    %c0_15 = arith.constant 0 : index
    %c256 = arith.constant 256 : index
    %31 = vector.load %arg2[%30, %c0_15, %c256] : memref<8x8x512xbf16, #tpu.memory_space<vmem>>, vector<1x8x128xbf16>
    %32 = vector.shape_cast %31 : vector<1x8x128xbf16> to vector<8x128xbf16>
    %33 = arith.extf %32 : vector<8x128xbf16> to vector<8x128xf32>
    %c0_16 = arith.constant 0 : index
    %c256_17 = arith.constant 256 : index
    %34 = vector.load %arg3[%c0_16, %c256_17] : memref<128x512xbf16, #tpu.memory_space<vmem>>, vector<128x128xbf16>
    %cst_18 = arith.constant dense<0.000000e+00> : vector<8x128xf32>
    %35 = tpu.matmul %5, %34, %cst_18 {dimension_numbers = #tpu.dot_dimension_numbers<[1], [0], [0], [1], [0, 0, 1, 1], [], []>} : vector<8x128xbf16>, vector<128x128xbf16>, vector<8x128xf32> -> vector<8x128xf32>
    %36 = arith.addf %33, %35 : vector<8x128xf32>
    %37 = math.tanh %36 : vector<8x128xf32>
    %38 = arith.index_cast %c0_i32_4 : i32 to index
    %c0_19 = arith.constant 0 : index
    %c384 = arith.constant 384 : index
    %39 = vector.load %arg2[%38, %c0_19, %c384] : memref<8x8x512xbf16, #tpu.memory_space<vmem>>, vector<1x8x128xbf16>
    %40 = vector.shape_cast %39 : vector<1x8x128xbf16> to vector<8x128xbf16>
    %41 = arith.extf %40 : vector<8x128xbf16> to vector<8x128xf32>
    %c0_20 = arith.constant 0 : index
    %c384_21 = arith.constant 384 : index
    %42 = vector.load %arg3[%c0_20, %c384_21] : memref<128x512xbf16, #tpu.memory_space<vmem>>, vector<128x128xbf16>
    %cst_22 = arith.constant dense<0.000000e+00> : vector<8x128xf32>
    %43 = tpu.matmul %5, %42, %cst_22 {dimension_numbers = #tpu.dot_dimension_numbers<[1], [0], [0], [1], [0, 0, 1, 1], [], []>} : vector<8x128xbf16>, vector<128x128xbf16>, vector<8x128xf32> -> vector<8x128xf32>
    %44 = arith.addf %41, %43 : vector<8x128xf32>
    %45 = arith.negf %44 : vector<8x128xf32>
    %46 = math.exp %45 : vector<8x128xf32>
    %cst_23 = arith.constant 1.000000e+00 : f32
    %47 = vector.broadcast %cst_23 : f32 to vector<8x128xf32>
    %48 = arith.addf %47, %46 : vector<8x128xf32>
    %49 = arith.divf %47, %48 : vector<8x128xf32>
    %50 = arith.mulf %29, %4 : vector<8x128xf32>
    %51 = arith.mulf %17, %37 : vector<8x128xf32>
    %52 = arith.addf %50, %51 : vector<8x128xf32>
    %53 = math.tanh %52 : vector<8x128xf32>
    %54 = arith.mulf %49, %53 : vector<8x128xf32>
    %55 = arith.truncf %54 : vector<8x128xf32> to vector<8x128xbf16>
    %56 = arith.index_cast %c0_i32_4 : i32 to index
    %c0_24 = arith.constant 0 : index
    %c0_25 = arith.constant 0 : index
    %57 = vector.load %arg6[%56, %c0_24, %c0_25] : memref<8x8x128xbf16, #tpu.memory_space<vmem>>, vector<1x8x128xbf16>
    %58 = vector.shape_cast %57 : vector<1x8x128xbf16> to vector<8x128xbf16>
    %59 = vector.shape_cast %55 : vector<8x128xbf16> to vector<1x8x128xbf16>
    tpu.vector_store %arg6[%56, %c0_24, %c0_25], %59 {strides = array<i32>} : memref<8x8x128xbf16, #tpu.memory_space<vmem>>, vector<1x8x128xbf16>,
    %c1_i32 = arith.constant 1 : i32
    %60 = arith.truncf %54 : vector<8x128xf32> to vector<8x128xbf16>
    %61 = arith.index_cast %c1_i32 : i32 to index
    %c0_26 = arith.constant 0 : index
    %c0_27 = arith.constant 0 : index
    %62 = vector.load %arg2[%61, %c0_26, %c0_27] : memref<8x8x512xbf16, #tpu.memory_space<vmem>>, vector<1x8x128xbf16>
    %63 = vector.shape_cast %62 : vector<1x8x128xbf16> to vector<8x128xbf16>
    %64 = arith.extf %63 : vector<8x128xbf16> to vector<8x128xf32>
    %c0_28 = arith.constant 0 : index
    %c0_29 = arith.constant 0 : index
    %65 = vector.load %arg3[%c0_28, %c0_29] : memref<128x512xbf16, #tpu.memory_space<vmem>>, vector<128x128xbf16>
    %cst_30 = arith.constant dense<0.000000e+00> : vector<8x128xf32>
    %66 = tpu.matmul %60, %65, %cst_30 {dimension_numbers = #tpu.dot_dimension_numbers<[1], [0], [0], [1], [0, 0, 1, 1], [], []>} : vector<8x128xbf16>, vector<128x128xbf16>, vector<8x128xf32> -> vector<8x128xf32>
    %67 = arith.addf %64, %66 : vector<8x128xf32>
    %68 = arith.negf %67 : vector<8x128xf32>
    %69 = math.exp %68 : vector<8x128xf32>
    %cst_31 = arith.constant 1.000000e+00 : f32
    %70 = vector.broadcast %cst_31 : f32 to vector<8x128xf32>
    %71 = arith.addf %70, %69 : vector<8x128xf32>
    %72 = arith.divf %70, %71 : vector<8x128xf32>
    %73 = arith.index_cast %c1_i32 : i32 to index
    %c0_32 = arith.constant 0 : index
    %c128_33 = arith.constant 128 : index
    %74 = vector.load %arg2[%73, %c0_32, %c128_33] : memref<8x8x512xbf16, #tpu.memory_space<vmem>>, vector<1x8x128xbf16>
    %75 = vector.shape_cast %74 : vector<1x8x128xbf16> to vector<8x128xbf16>
    %76 = arith.extf %75 : vector<8x128xbf16> to vector<8x128xf32>
    %c0_34 = arith.constant 0 : index
    %c128_35 = arith.constant 128 : index
    %77 = vector.load %arg3[%c0_34, %c128_35] : memref<128x512xbf16, #tpu.memory_space<vmem>>, vector<128x128xbf16>
    %cst_36 = arith.constant dense<0.000000e+00> : vector<8x128xf32>
    %78 = tpu.matmul %60, %77, %cst_36 {dimension_numbers = #tpu.dot_dimension_numbers<[1], [0], [0], [1], [0, 0, 1, 1], [], []>} : vector<8x128xbf16>, vector<128x128xbf16>, vector<8x128xf32> -> vector<8x128xf32>
    %79 = arith.addf %76, %78 : vector<8x128xf32>
    %80 = arith.negf %79 : vector<8x128xf32>
    %81 = math.exp %80 : vector<8x128xf32>
    %cst_37 = arith.constant 1.000000e+00 : f32
    %82 = vector.broadcast %cst_37 : f32 to vector<8x128xf32>
    %83 = arith.addf %82, %81 : vector<8x128xf32>
    %84 = arith.divf %82, %83 : vector<8x128xf32>
    %85 = arith.index_cast %c1_i32 : i32 to index
    %c0_38 = arith.constant 0 : index
    %c256_39 = arith.constant 256 : index
    %86 = vector.load %arg2[%85, %c0_38, %c256_39] : memref<8x8x512xbf16, #tpu.memory_space<vmem>>, vector<1x8x128xbf16>
    %87 = vector.shape_cast %86 : vector<1x8x128xbf16> to vector<8x128xbf16>
    %88 = arith.extf %87 : vector<8x128xbf16> to vector<8x128xf32>
    %c0_40 = arith.constant 0 : index
    %c256_41 = arith.constant 256 : index
    %89 = vector.load %arg3[%c0_40, %c256_41] : memref<128x512xbf16, #tpu.memory_space<vmem>>, vector<128x128xbf16>
    %cst_42 = arith.constant dense<0.000000e+00> : vector<8x128xf32>
    %90 = tpu.matmul %60, %89, %cst_42 {dimension_numbers = #tpu.dot_dimension_numbers<[1], [0], [0], [1], [0, 0, 1, 1], [], []>} : vector<8x128xbf16>, vector<128x128xbf16>, vector<8x128xf32> -> vector<8x128xf32>
    %91 = arith.addf %88, %90 : vector<8x128xf32>
    %92 = math.tanh %91 : vector<8x128xf32>
    %93 = arith.index_cast %c1_i32 : i32 to index
    %c0_43 = arith.constant 0 : index
    %c384_44 = arith.constant 384 : index
    %94 = vector.load %arg2[%93, %c0_43, %c384_44] : memref<8x8x512xbf16, #tpu.memory_space<vmem>>, vector<1x8x128xbf16>
    %95 = vector.shape_cast %94 : vector<1x8x128xbf16> to vector<8x128xbf16>
    %96 = arith.extf %95 : vector<8x128xbf16> to vector<8x128xf32>
    %c0_45 = arith.constant 0 : index
    %c384_46 = arith.constant 384 : index
    %97 = vector.load %arg3[%c0_45, %c384_46] : memref<128x512xbf16, #tpu.memory_space<vmem>>, vector<128x128xbf16>
    %cst_47 = arith.constant dense<0.000000e+00> : vector<8x128xf32>
    %98 = tpu.matmul %60, %97, %cst_47 {dimension_numbers = #tpu.dot_dimension_numbers<[1], [0], [0], [1], [0, 0, 1, 1], [], []>} : vector<8x128xbf16>, vector<128x128xbf16>, vector<8x128xf32> -> vector<8x128xf32>
    %99 = arith.addf %96, %98 : vector<8x128xf32>
    %100 = arith.negf %99 : vector<8x128xf32>
    %101 = math.exp %100 : vector<8x128xf32>
    %cst_48 = arith.constant 1.000000e+00 : f32
    %102 = vector.broadcast %cst_48 : f32 to vector<8x128xf32>
    %103 = arith.addf %102, %101 : vector<8x128xf32>
    %104 = arith.divf %102, %103 : vector<8x128xf32>
    %105 = arith.mulf %84, %52 : vector<8x128xf32>
    %106 = arith.mulf %72, %92 : vector<8x128xf32>
    %107 = arith.addf %105, %106 : vector<8x128xf32>
    %108 = math.tanh %107 : vector<8x128xf32>
    %109 = arith.mulf %104, %108 : vector<8x128xf32>
    %110 = arith.truncf %109 : vector<8x128xf32> to vector<8x128xbf16>
    %111 = arith.index_cast %c1_i32 : i32 to index
    %c0_49 = arith.constant 0 : index
    %c0_50 = arith.constant 0 : index
    %112 = vector.load %arg6[%111, %c0_49, %c0_50] : memref<8x8x128xbf16, #tpu.memory_space<vmem>>, vector<1x8x128xbf16>
    %113 = vector.shape_cast %112 : vector<1x8x128xbf16> to vector<8x128xbf16>
    %114 = vector.shape_cast %110 : vector<8x128xbf16> to vector<1x8x128xbf16>
    tpu.vector_store %arg6[%111, %c0_49, %c0_50], %114 {strides = array<i32>} : memref<8x8x128xbf16, #tpu.memory_space<vmem>>, vector<1x8x128xbf16>,
    %c2_i32 = arith.constant 2 : i32
    %115 = arith.truncf %109 : vector<8x128xf32> to vector<8x128xbf16>
    %116 = arith.index_cast %c2_i32 : i32 to index
    %c0_51 = arith.constant 0 : index
    %c0_52 = arith.constant 0 : index
    %117 = vector.load %arg2[%116, %c0_51, %c0_52] : memref<8x8x512xbf16, #tpu.memory_space<vmem>>, vector<1x8x128xbf16>
    %118 = vector.shape_cast %117 : vector<1x8x128xbf16> to vector<8x128xbf16>
    %119 = arith.extf %118 : vector<8x128xbf16> to vector<8x128xf32>
    %c0_53 = arith.constant 0 : index
    %c0_54 = arith.constant 0 : index
    %120 = vector.load %arg3[%c0_53, %c0_54] : memref<128x512xbf16, #tpu.memory_space<vmem>>, vector<128x128xbf16>
    %cst_55 = arith.constant dense<0.000000e+00> : vector<8x128xf32>
    %121 = tpu.matmul %115, %120, %cst_55 {dimension_numbers = #tpu.dot_dimension_numbers<[1], [0], [0], [1], [0, 0, 1, 1], [], []>} : vector<8x128xbf16>, vector<128x128xbf16>, vector<8x128xf32> -> vector<8x128xf32>
    %122 = arith.addf %119, %121 : vector<8x128xf32>
    %123 = arith.negf %122 : vector<8x128xf32>
    %124 = math.exp %123 : vector<8x128xf32>
    %cst_56 = arith.constant 1.000000e+00 : f32
    %125 = vector.broadcast %cst_56 : f32 to vector<8x128xf32>
    %126 = arith.addf %125, %124 : vector<8x128xf32>
    %127 = arith.divf %125, %126 : vector<8x128xf32>
    %128 = arith.index_cast %c2_i32 : i32 to index
    %c0_57 = arith.constant 0 : index
    %c128_58 = arith.constant 128 : index
    %129 = vector.load %arg2[%128, %c0_57, %c128_58] : memref<8x8x512xbf16, #tpu.memory_space<vmem>>, vector<1x8x128xbf16>
    %130 = vector.shape_cast %129 : vector<1x8x128xbf16> to vector<8x128xbf16>
    %131 = arith.extf %130 : vector<8x128xbf16> to vector<8x128xf32>
    %c0_59 = arith.constant 0 : index
    %c128_60 = arith.constant 128 : index
    %132 = vector.load %arg3[%c0_59, %c128_60] : memref<128x512xbf16, #tpu.memory_space<vmem>>, vector<128x128xbf16>
    %cst_61 = arith.constant dense<0.000000e+00> : vector<8x128xf32>
    %133 = tpu.matmul %115, %132, %cst_61 {dimension_numbers = #tpu.dot_dimension_numbers<[1], [0], [0], [1], [0, 0, 1, 1], [], []>} : vector<8x128xbf16>, vector<128x128xbf16>, vector<8x128xf32> -> vector<8x128xf32>
    %134 = arith.addf %131, %133 : vector<8x128xf32>
    %135 = arith.negf %134 : vector<8x128xf32>
    %136 = math.exp %135 : vector<8x128xf32>
    %cst_62 = arith.constant 1.000000e+00 : f32
    %137 = vector.broadcast %cst_62 : f32 to vector<8x128xf32>
    %138 = arith.addf %137, %136 : vector<8x128xf32>
    %139 = arith.divf %137, %138 : vector<8x128xf32>
    %140 = arith.index_cast %c2_i32 : i32 to index
    %c0_63 = arith.constant 0 : index
    %c256_64 = arith.constant 256 : index
    %141 = vector.load %arg2[%140, %c0_63, %c256_64] : memref<8x8x512xbf16, #tpu.memory_space<vmem>>, vector<1x8x128xbf16>
    %142 = vector.shape_cast %141 : vector<1x8x128xbf16> to vector<8x128xbf16>
    %143 = arith.extf %142 : vector<8x128xbf16> to vector<8x128xf32>
    %c0_65 = arith.constant 0 : index
    %c256_66 = arith.constant 256 : index
    %144 = vector.load %arg3[%c0_65, %c256_66] : memref<128x512xbf16, #tpu.memory_space<vmem>>, vector<128x128xbf16>
    %cst_67 = arith.constant dense<0.000000e+00> : vector<8x128xf32>
    %145 = tpu.matmul %115, %144, %cst_67 {dimension_numbers = #tpu.dot_dimension_numbers<[1], [0], [0], [1], [0, 0, 1, 1], [], []>} : vector<8x128xbf16>, vector<128x128xbf16>, vector<8x128xf32> -> vector<8x128xf32>
    %146 = arith.addf %143, %145 : vector<8x128xf32>
    %147 = math.tanh %146 : vector<8x128xf32>
    %148 = arith.index_cast %c2_i32 : i32 to index
    %c0_68 = arith.constant 0 : index
    %c384_69 = arith.constant 384 : index
    %149 = vector.load %arg2[%148, %c0_68, %c384_69] : memref<8x8x512xbf16, #tpu.memory_space<vmem>>, vector<1x8x128xbf16>
    %150 = vector.shape_cast %149 : vector<1x8x128xbf16> to vector<8x128xbf16>
    %151 = arith.extf %150 : vector<8x128xbf16> to vector<8x128xf32>
    %c0_70 = arith.constant 0 : index
    %c384_71 = arith.constant 384 : index
    %152 = vector.load %arg3[%c0_70, %c384_71] : memref<128x512xbf16, #tpu.memory_space<vmem>>, vector<128x128xbf16>
    %cst_72 = arith.constant dense<0.000000e+00> : vector<8x128xf32>
    %153 = tpu.matmul %115, %152, %cst_72 {dimension_numbers = #tpu.dot_dimension_numbers<[1], [0], [0], [1], [0, 0, 1, 1], [], []>} : vector<8x128xbf16>, vector<128x128xbf16>, vector<8x128xf32> -> vector<8x128xf32>
    %154 = arith.addf %151, %153 : vector<8x128xf32>
    %155 = arith.negf %154 : vector<8x128xf32>
    %156 = math.exp %155 : vector<8x128xf32>
    %cst_73 = arith.constant 1.000000e+00 : f32
    %157 = vector.broadcast %cst_73 : f32 to vector<8x128xf32>
    %158 = arith.addf %157, %156 : vector<8x128xf32>
    %159 = arith.divf %157, %158 : vector<8x128xf32>
    %160 = arith.mulf %139, %107 : vector<8x128xf32>
    %161 = arith.mulf %127, %147 : vector<8x128xf32>
    %162 = arith.addf %160, %161 : vector<8x128xf32>
    %163 = math.tanh %162 : vector<8x128xf32>
    %164 = arith.mulf %159, %163 : vector<8x128xf32>
    %165 = arith.truncf %164 : vector<8x128xf32> to vector<8x128xbf16>
    %166 = arith.index_cast %c2_i32 : i32 to index
    %c0_74 = arith.constant 0 : index
    %c0_75 = arith.constant 0 : index
    %167 = vector.load %arg6[%166, %c0_74, %c0_75] : memref<8x8x128xbf16, #tpu.memory_space<vmem>>, vector<1x8x128xbf16>
    %168 = vector.shape_cast %167 : vector<1x8x128xbf16> to vector<8x128xbf16>
    %169 = vector.shape_cast %165 : vector<8x128xbf16> to vector<1x8x128xbf16>
    tpu.vector_store %arg6[%166, %c0_74, %c0_75], %169 {strides = array<i32>} : memref<8x8x128xbf16, #tpu.memory_space<vmem>>, vector<1x8x128xbf16>,
    %c3_i32 = arith.constant 3 : i32
    %170 = arith.truncf %164 : vector<8x128xf32> to vector<8x128xbf16>
    %171 = arith.index_cast %c3_i32 : i32 to index
    %c0_76 = arith.constant 0 : index
    %c0_77 = arith.constant 0 : index
    %172 = vector.load %arg2[%171, %c0_76, %c0_77] : memref<8x8x512xbf16, #tpu.memory_space<vmem>>, vector<1x8x128xbf16>
    %173 = vector.shape_cast %172 : vector<1x8x128xbf16> to vector<8x128xbf16>
    %174 = arith.extf %173 : vector<8x128xbf16> to vector<8x128xf32>
    %c0_78 = arith.constant 0 : index
    %c0_79 = arith.constant 0 : index
    %175 = vector.load %arg3[%c0_78, %c0_79] : memref<128x512xbf16, #tpu.memory_space<vmem>>, vector<128x128xbf16>
    %cst_80 = arith.constant dense<0.000000e+00> : vector<8x128xf32>
    %176 = tpu.matmul %170, %175, %cst_80 {dimension_numbers = #tpu.dot_dimension_numbers<[1], [0], [0], [1], [0, 0, 1, 1], [], []>} : vector<8x128xbf16>, vector<128x128xbf16>, vector<8x128xf32> -> vector<8x128xf32>
    %177 = arith.addf %174, %176 : vector<8x128xf32>
    %178 = arith.negf %177 : vector<8x128xf32>
    %179 = math.exp %178 : vector<8x128xf32>
    %cst_81 = arith.constant 1.000000e+00 : f32
    %180 = vector.broadcast %cst_81 : f32 to vector<8x128xf32>
    %181 = arith.addf %180, %179 : vector<8x128xf32>
    %182 = arith.divf %180, %181 : vector<8x128xf32>
    %183 = arith.index_cast %c3_i32 : i32 to index
    %c0_82 = arith.constant 0 : index
    %c128_83 = arith.constant 128 : index
    %184 = vector.load %arg2[%183, %c0_82, %c128_83] : memref<8x8x512xbf16, #tpu.memory_space<vmem>>, vector<1x8x128xbf16>
    %185 = vector.shape_cast %184 : vector<1x8x128xbf16> to vector<8x128xbf16>
    %186 = arith.extf %185 : vector<8x128xbf16> to vector<8x128xf32>
    %c0_84 = arith.constant 0 : index
    %c128_85 = arith.constant 128 : index
    %187 = vector.load %arg3[%c0_84, %c128_85] : memref<128x512xbf16, #tpu.memory_space<vmem>>, vector<128x128xbf16>
    %cst_86 = arith.constant dense<0.000000e+00> : vector<8x128xf32>
    %188 = tpu.matmul %170, %187, %cst_86 {dimension_numbers = #tpu.dot_dimension_numbers<[1], [0], [0], [1], [0, 0, 1, 1], [], []>} : vector<8x128xbf16>, vector<128x128xbf16>, vector<8x128xf32> -> vector<8x128xf32>
    %189 = arith.addf %186, %188 : vector<8x128xf32>
    %190 = arith.negf %189 : vector<8x128xf32>
    %191 = math.exp %190 : vector<8x128xf32>
    %cst_87 = arith.constant 1.000000e+00 : f32
    %192 = vector.broadcast %cst_87 : f32 to vector<8x128xf32>
    %193 = arith.addf %192, %191 : vector<8x128xf32>
    %194 = arith.divf %192, %193 : vector<8x128xf32>
    %195 = arith.index_cast %c3_i32 : i32 to index
    %c0_88 = arith.constant 0 : index
    %c256_89 = arith.constant 256 : index
    %196 = vector.load %arg2[%195, %c0_88, %c256_89] : memref<8x8x512xbf16, #tpu.memory_space<vmem>>, vector<1x8x128xbf16>
    %197 = vector.shape_cast %196 : vector<1x8x128xbf16> to vector<8x128xbf16>
    %198 = arith.extf %197 : vector<8x128xbf16> to vector<8x128xf32>
    %c0_90 = arith.constant 0 : index
    %c256_91 = arith.constant 256 : index
    %199 = vector.load %arg3[%c0_90, %c256_91] : memref<128x512xbf16, #tpu.memory_space<vmem>>, vector<128x128xbf16>
    %cst_92 = arith.constant dense<0.000000e+00> : vector<8x128xf32>
    %200 = tpu.matmul %170, %199, %cst_92 {dimension_numbers = #tpu.dot_dimension_numbers<[1], [0], [0], [1], [0, 0, 1, 1], [], []>} : vector<8x128xbf16>, vector<128x128xbf16>, vector<8x128xf32> -> vector<8x128xf32>
    %201 = arith.addf %198, %200 : vector<8x128xf32>
    %202 = math.tanh %201 : vector<8x128xf32>
    %203 = arith.index_cast %c3_i32 : i32 to index
    %c0_93 = arith.constant 0 : index
    %c384_94 = arith.constant 384 : index
    %204 = vector.load %arg2[%203, %c0_93, %c384_94] : memref<8x8x512xbf16, #tpu.memory_space<vmem>>, vector<1x8x128xbf16>
    %205 = vector.shape_cast %204 : vector<1x8x128xbf16> to vector<8x128xbf16>
    %206 = arith.extf %205 : vector<8x128xbf16> to vector<8x128xf32>
    %c0_95 = arith.constant 0 : index
    %c384_96 = arith.constant 384 : index
    %207 = vector.load %arg3[%c0_95, %c384_96] : memref<128x512xbf16, #tpu.memory_space<vmem>>, vector<128x128xbf16>
    %cst_97 = arith.constant dense<0.000000e+00> : vector<8x128xf32>
    %208 = tpu.matmul %170, %207, %cst_97 {dimension_numbers = #tpu.dot_dimension_numbers<[1], [0], [0], [1], [0, 0, 1, 1], [], []>} : vector<8x128xbf16>, vector<128x128xbf16>, vector<8x128xf32> -> vector<8x128xf32>
    %209 = arith.addf %206, %208 : vector<8x128xf32>
    %210 = arith.negf %209 : vector<8x128xf32>
    %211 = math.exp %210 : vector<8x128xf32>
    %cst_98 = arith.constant 1.000000e+00 : f32
    %212 = vector.broadcast %cst_98 : f32 to vector<8x128xf32>
    %213 = arith.addf %212, %211 : vector<8x128xf32>
    %214 = arith.divf %212, %213 : vector<8x128xf32>
    %215 = arith.mulf %194, %162 : vector<8x128xf32>
    %216 = arith.mulf %182, %202 : vector<8x128xf32>
    %217 = arith.addf %215, %216 : vector<8x128xf32>
    %218 = math.tanh %217 : vector<8x128xf32>
    %219 = arith.mulf %214, %218 : vector<8x128xf32>
    %220 = arith.truncf %219 : vector<8x128xf32> to vector<8x128xbf16>
    %221 = arith.index_cast %c3_i32 : i32 to index
    %c0_99 = arith.constant 0 : index
    %c0_100 = arith.constant 0 : index
    %222 = vector.load %arg6[%221, %c0_99, %c0_100] : memref<8x8x128xbf16, #tpu.memory_space<vmem>>, vector<1x8x128xbf16>
    %223 = vector.shape_cast %222 : vector<1x8x128xbf16> to vector<8x128xbf16>
    %224 = vector.shape_cast %220 : vector<8x128xbf16> to vector<1x8x128xbf16>
    tpu.vector_store %arg6[%221, %c0_99, %c0_100], %224 {strides = array<i32>} : memref<8x8x128xbf16, #tpu.memory_space<vmem>>, vector<1x8x128xbf16>,
    %c4_i32 = arith.constant 4 : i32
    %225 = arith.truncf %219 : vector<8x128xf32> to vector<8x128xbf16>
    %226 = arith.index_cast %c4_i32 : i32 to index
    %c0_101 = arith.constant 0 : index
    %c0_102 = arith.constant 0 : index
    %227 = vector.load %arg2[%226, %c0_101, %c0_102] : memref<8x8x512xbf16, #tpu.memory_space<vmem>>, vector<1x8x128xbf16>
    %228 = vector.shape_cast %227 : vector<1x8x128xbf16> to vector<8x128xbf16>
    %229 = arith.extf %228 : vector<8x128xbf16> to vector<8x128xf32>
    %c0_103 = arith.constant 0 : index
    %c0_104 = arith.constant 0 : index
    %230 = vector.load %arg3[%c0_103, %c0_104] : memref<128x512xbf16, #tpu.memory_space<vmem>>, vector<128x128xbf16>
    %cst_105 = arith.constant dense<0.000000e+00> : vector<8x128xf32>
    %231 = tpu.matmul %225, %230, %cst_105 {dimension_numbers = #tpu.dot_dimension_numbers<[1], [0], [0], [1], [0, 0, 1, 1], [], []>} : vector<8x128xbf16>, vector<128x128xbf16>, vector<8x128xf32> -> vector<8x128xf32>
    %232 = arith.addf %229, %231 : vector<8x128xf32>
    %233 = arith.negf %232 : vector<8x128xf32>
    %234 = math.exp %233 : vector<8x128xf32>
    %cst_106 = arith.constant 1.000000e+00 : f32
    %235 = vector.broadcast %cst_106 : f32 to vector<8x128xf32>
    %236 = arith.addf %235, %234 : vector<8x128xf32>
    %237 = arith.divf %235, %236 : vector<8x128xf32>
    %238 = arith.index_cast %c4_i32 : i32 to index
    %c0_107 = arith.constant 0 : index
    %c128_108 = arith.constant 128 : index
    %239 = vector.load %arg2[%238, %c0_107, %c128_108] : memref<8x8x512xbf16, #tpu.memory_space<vmem>>, vector<1x8x128xbf16>
    %240 = vector.shape_cast %239 : vector<1x8x128xbf16> to vector<8x128xbf16>
    %241 = arith.extf %240 : vector<8x128xbf16> to vector<8x128xf32>
    %c0_109 = arith.constant 0 : index
    %c128_110 = arith.constant 128 : index
    %242 = vector.load %arg3[%c0_109, %c128_110] : memref<128x512xbf16, #tpu.memory_space<vmem>>, vector<128x128xbf16>
    %cst_111 = arith.constant dense<0.000000e+00> : vector<8x128xf32>
    %243 = tpu.matmul %225, %242, %cst_111 {dimension_numbers = #tpu.dot_dimension_numbers<[1], [0], [0], [1], [0, 0, 1, 1], [], []>} : vector<8x128xbf16>, vector<128x128xbf16>, vector<8x128xf32> -> vector<8x128xf32>
    %244 = arith.addf %241, %243 : vector<8x128xf32>
    %245 = arith.negf %244 : vector<8x128xf32>
    %246 = math.exp %245 : vector<8x128xf32>
    %cst_112 = arith.constant 1.000000e+00 : f32
    %247 = vector.broadcast %cst_112 : f32 to vector<8x128xf32>
    %248 = arith.addf %247, %246 : vector<8x128xf32>
    %249 = arith.divf %247, %248 : vector<8x128xf32>
    %250 = arith.index_cast %c4_i32 : i32 to index
    %c0_113 = arith.constant 0 : index
    %c256_114 = arith.constant 256 : index
    %251 = vector.load %arg2[%250, %c0_113, %c256_114] : memref<8x8x512xbf16, #tpu.memory_space<vmem>>, vector<1x8x128xbf16>
    %252 = vector.shape_cast %251 : vector<1x8x128xbf16> to vector<8x128xbf16>
    %253 = arith.extf %252 : vector<8x128xbf16> to vector<8x128xf32>
    %c0_115 = arith.constant 0 : index
    %c256_116 = arith.constant 256 : index
    %254 = vector.load %arg3[%c0_115, %c256_116] : memref<128x512xbf16, #tpu.memory_space<vmem>>, vector<128x128xbf16>
    %cst_117 = arith.constant dense<0.000000e+00> : vector<8x128xf32>
    %255 = tpu.matmul %225, %254, %cst_117 {dimension_numbers = #tpu.dot_dimension_numbers<[1], [0], [0], [1], [0, 0, 1, 1], [], []>} : vector<8x128xbf16>, vector<128x128xbf16>, vector<8x128xf32> -> vector<8x128xf32>
    %256 = arith.addf %253, %255 : vector<8x128xf32>
    %257 = math.tanh %256 : vector<8x128xf32>
    %258 = arith.index_cast %c4_i32 : i32 to index
    %c0_118 = arith.constant 0 : index
    %c384_119 = arith.constant 384 : index
    %259 = vector.load %arg2[%258, %c0_118, %c384_119] : memref<8x8x512xbf16, #tpu.memory_space<vmem>>, vector<1x8x128xbf16>
    %260 = vector.shape_cast %259 : vector<1x8x128xbf16> to vector<8x128xbf16>
    %261 = arith.extf %260 : vector<8x128xbf16> to vector<8x128xf32>
    %c0_120 = arith.constant 0 : index
    %c384_121 = arith.constant 384 : index
    %262 = vector.load %arg3[%c0_120, %c384_121] : memref<128x512xbf16, #tpu.memory_space<vmem>>, vector<128x128xbf16>
    %cst_122 = arith.constant dense<0.000000e+00> : vector<8x128xf32>
    %263 = tpu.matmul %225, %262, %cst_122 {dimension_numbers = #tpu.dot_dimension_numbers<[1], [0], [0], [1], [0, 0, 1, 1], [], []>} : vector<8x128xbf16>, vector<128x128xbf16>, vector<8x128xf32> -> vector<8x128xf32>
    %264 = arith.addf %261, %263 : vector<8x128xf32>
    %265 = arith.negf %264 : vector<8x128xf32>
    %266 = math.exp %265 : vector<8x128xf32>
    %cst_123 = arith.constant 1.000000e+00 : f32
    %267 = vector.broadcast %cst_123 : f32 to vector<8x128xf32>
    %268 = arith.addf %267, %266 : vector<8x128xf32>
    %269 = arith.divf %267, %268 : vector<8x128xf32>
    %270 = arith.mulf %249, %217 : vector<8x128xf32>
    %271 = arith.mulf %237, %257 : vector<8x128xf32>
    %272 = arith.addf %270, %271 : vector<8x128xf32>
    %273 = math.tanh %272 : vector<8x128xf32>
    %274 = arith.mulf %269, %273 : vector<8x128xf32>
    %275 = arith.truncf %274 : vector<8x128xf32> to vector<8x128xbf16>
    %276 = arith.index_cast %c4_i32 : i32 to index
    %c0_124 = arith.constant 0 : index
    %c0_125 = arith.constant 0 : index
    %277 = vector.load %arg6[%276, %c0_124, %c0_125] : memref<8x8x128xbf16, #tpu.memory_space<vmem>>, vector<1x8x128xbf16>
    %278 = vector.shape_cast %277 : vector<1x8x128xbf16> to vector<8x128xbf16>
    %279 = vector.shape_cast %275 : vector<8x128xbf16> to vector<1x8x128xbf16>
    tpu.vector_store %arg6[%276, %c0_124, %c0_125], %279 {strides = array<i32>} : memref<8x8x128xbf16, #tpu.memory_space<vmem>>, vector<1x8x128xbf16>,
    %c5_i32 = arith.constant 5 : i32
    %280 = arith.truncf %274 : vector<8x128xf32> to vector<8x128xbf16>
    %281 = arith.index_cast %c5_i32 : i32 to index
    %c0_126 = arith.constant 0 : index
    %c0_127 = arith.constant 0 : index
    %282 = vector.load %arg2[%281, %c0_126, %c0_127] : memref<8x8x512xbf16, #tpu.memory_space<vmem>>, vector<1x8x128xbf16>
    %283 = vector.shape_cast %282 : vector<1x8x128xbf16> to vector<8x128xbf16>
    %284 = arith.extf %283 : vector<8x128xbf16> to vector<8x128xf32>
    %c0_128 = arith.constant 0 : index
    %c0_129 = arith.constant 0 : index
    %285 = vector.load %arg3[%c0_128, %c0_129] : memref<128x512xbf16, #tpu.memory_space<vmem>>, vector<128x128xbf16>
    %cst_130 = arith.constant dense<0.000000e+00> : vector<8x128xf32>
    %286 = tpu.matmul %280, %285, %cst_130 {dimension_numbers = #tpu.dot_dimension_numbers<[1], [0], [0], [1], [0, 0, 1, 1], [], []>} : vector<8x128xbf16>, vector<128x128xbf16>, vector<8x128xf32> -> vector<8x128xf32>
    %287 = arith.addf %284, %286 : vector<8x128xf32>
    %288 = arith.negf %287 : vector<8x128xf32>
    %289 = math.exp %288 : vector<8x128xf32>
    %cst_131 = arith.constant 1.000000e+00 : f32
    %290 = vector.broadcast %cst_131 : f32 to vector<8x128xf32>
    %291 = arith.addf %290, %289 : vector<8x128xf32>
    %292 = arith.divf %290, %291 : vector<8x128xf32>
    %293 = arith.index_cast %c5_i32 : i32 to index
    %c0_132 = arith.constant 0 : index
    %c128_133 = arith.constant 128 : index
    %294 = vector.load %arg2[%293, %c0_132, %c128_133] : memref<8x8x512xbf16, #tpu.memory_space<vmem>>, vector<1x8x128xbf16>
    %295 = vector.shape_cast %294 : vector<1x8x128xbf16> to vector<8x128xbf16>
    %296 = arith.extf %295 : vector<8x128xbf16> to vector<8x128xf32>
    %c0_134 = arith.constant 0 : index
    %c128_135 = arith.constant 128 : index
    %297 = vector.load %arg3[%c0_134, %c128_135] : memref<128x512xbf16, #tpu.memory_space<vmem>>, vector<128x128xbf16>
    %cst_136 = arith.constant dense<0.000000e+00> : vector<8x128xf32>
    %298 = tpu.matmul %280, %297, %cst_136 {dimension_numbers = #tpu.dot_dimension_numbers<[1], [0], [0], [1], [0, 0, 1, 1], [], []>} : vector<8x128xbf16>, vector<128x128xbf16>, vector<8x128xf32> -> vector<8x128xf32>
    %299 = arith.addf %296, %298 : vector<8x128xf32>
    %300 = arith.negf %299 : vector<8x128xf32>
    %301 = math.exp %300 : vector<8x128xf32>
    %cst_137 = arith.constant 1.000000e+00 : f32
    %302 = vector.broadcast %cst_137 : f32 to vector<8x128xf32>
    %303 = arith.addf %302, %301 : vector<8x128xf32>
    %304 = arith.divf %302, %303 : vector<8x128xf32>
    %305 = arith.index_cast %c5_i32 : i32 to index
    %c0_138 = arith.constant 0 : index
    %c256_139 = arith.constant 256 : index
    %306 = vector.load %arg2[%305, %c0_138, %c256_139] : memref<8x8x512xbf16, #tpu.memory_space<vmem>>, vector<1x8x128xbf16>
    %307 = vector.shape_cast %306 : vector<1x8x128xbf16> to vector<8x128xbf16>
    %308 = arith.extf %307 : vector<8x128xbf16> to vector<8x128xf32>
    %c0_140 = arith.constant 0 : index
    %c256_141 = arith.constant 256 : index
    %309 = vector.load %arg3[%c0_140, %c256_141] : memref<128x512xbf16, #tpu.memory_space<vmem>>, vector<128x128xbf16>
    %cst_142 = arith.constant dense<0.000000e+00> : vector<8x128xf32>
    %310 = tpu.matmul %280, %309, %cst_142 {dimension_numbers = #tpu.dot_dimension_numbers<[1], [0], [0], [1], [0, 0, 1, 1], [], []>} : vector<8x128xbf16>, vector<128x128xbf16>, vector<8x128xf32> -> vector<8x128xf32>
    %311 = arith.addf %308, %310 : vector<8x128xf32>
    %312 = math.tanh %311 : vector<8x128xf32>
    %313 = arith.index_cast %c5_i32 : i32 to index
    %c0_143 = arith.constant 0 : index
    %c384_144 = arith.constant 384 : index
    %314 = vector.load %arg2[%313, %c0_143, %c384_144] : memref<8x8x512xbf16, #tpu.memory_space<vmem>>, vector<1x8x128xbf16>
    %315 = vector.shape_cast %314 : vector<1x8x128xbf16> to vector<8x128xbf16>
    %316 = arith.extf %315 : vector<8x128xbf16> to vector<8x128xf32>
    %c0_145 = arith.constant 0 : index
    %c384_146 = arith.constant 384 : index
    %317 = vector.load %arg3[%c0_145, %c384_146] : memref<128x512xbf16, #tpu.memory_space<vmem>>, vector<128x128xbf16>
    %cst_147 = arith.constant dense<0.000000e+00> : vector<8x128xf32>
    %318 = tpu.matmul %280, %317, %cst_147 {dimension_numbers = #tpu.dot_dimension_numbers<[1], [0], [0], [1], [0, 0, 1, 1], [], []>} : vector<8x128xbf16>, vector<128x128xbf16>, vector<8x128xf32> -> vector<8x128xf32>
    %319 = arith.addf %316, %318 : vector<8x128xf32>
    %320 = arith.negf %319 : vector<8x128xf32>
    %321 = math.exp %320 : vector<8x128xf32>
    %cst_148 = arith.constant 1.000000e+00 : f32
    %322 = vector.broadcast %cst_148 : f32 to vector<8x128xf32>
    %323 = arith.addf %322, %321 : vector<8x128xf32>
    %324 = arith.divf %322, %323 : vector<8x128xf32>
    %325 = arith.mulf %304, %272 : vector<8x128xf32>
    %326 = arith.mulf %292, %312 : vector<8x128xf32>
    %327 = arith.addf %325, %326 : vector<8x128xf32>
    %328 = math.tanh %327 : vector<8x128xf32>
    %329 = arith.mulf %324, %328 : vector<8x128xf32>
    %330 = arith.truncf %329 : vector<8x128xf32> to vector<8x128xbf16>
    %331 = arith.index_cast %c5_i32 : i32 to index
    %c0_149 = arith.constant 0 : index
    %c0_150 = arith.constant 0 : index
    %332 = vector.load %arg6[%331, %c0_149, %c0_150] : memref<8x8x128xbf16, #tpu.memory_space<vmem>>, vector<1x8x128xbf16>
    %333 = vector.shape_cast %332 : vector<1x8x128xbf16> to vector<8x128xbf16>
    %334 = vector.shape_cast %330 : vector<8x128xbf16> to vector<1x8x128xbf16>
    tpu.vector_store %arg6[%331, %c0_149, %c0_150], %334 {strides = array<i32>} : memref<8x8x128xbf16, #tpu.memory_space<vmem>>, vector<1x8x128xbf16>,
    %c6_i32 = arith.constant 6 : i32
    %335 = arith.truncf %329 : vector<8x128xf32> to vector<8x128xbf16>
    %336 = arith.index_cast %c6_i32 : i32 to index
    %c0_151 = arith.constant 0 : index
    %c0_152 = arith.constant 0 : index
    %337 = vector.load %arg2[%336, %c0_151, %c0_152] : memref<8x8x512xbf16, #tpu.memory_space<vmem>>, vector<1x8x128xbf16>
    %338 = vector.shape_cast %337 : vector<1x8x128xbf16> to vector<8x128xbf16>
    %339 = arith.extf %338 : vector<8x128xbf16> to vector<8x128xf32>
    %c0_153 = arith.constant 0 : index
    %c0_154 = arith.constant 0 : index
    %340 = vector.load %arg3[%c0_153, %c0_154] : memref<128x512xbf16, #tpu.memory_space<vmem>>, vector<128x128xbf16>
    %cst_155 = arith.constant dense<0.000000e+00> : vector<8x128xf32>
    %341 = tpu.matmul %335, %340, %cst_155 {dimension_numbers = #tpu.dot_dimension_numbers<[1], [0], [0], [1], [0, 0, 1, 1], [], []>} : vector<8x128xbf16>, vector<128x128xbf16>, vector<8x128xf32> -> vector<8x128xf32>
    %342 = arith.addf %339, %341 : vector<8x128xf32>
    %343 = arith.negf %342 : vector<8x128xf32>
    %344 = math.exp %343 : vector<8x128xf32>
    %cst_156 = arith.constant 1.000000e+00 : f32
    %345 = vector.broadcast %cst_156 : f32 to vector<8x128xf32>
    %346 = arith.addf %345, %344 : vector<8x128xf32>
    %347 = arith.divf %345, %346 : vector<8x128xf32>
    %348 = arith.index_cast %c6_i32 : i32 to index
    %c0_157 = arith.constant 0 : index
    %c128_158 = arith.constant 128 : index
    %349 = vector.load %arg2[%348, %c0_157, %c128_158] : memref<8x8x512xbf16, #tpu.memory_space<vmem>>, vector<1x8x128xbf16>
    %350 = vector.shape_cast %349 : vector<1x8x128xbf16> to vector<8x128xbf16>
    %351 = arith.extf %350 : vector<8x128xbf16> to vector<8x128xf32>
    %c0_159 = arith.constant 0 : index
    %c128_160 = arith.constant 128 : index
    %352 = vector.load %arg3[%c0_159, %c128_160] : memref<128x512xbf16, #tpu.memory_space<vmem>>, vector<128x128xbf16>
    %cst_161 = arith.constant dense<0.000000e+00> : vector<8x128xf32>
    %353 = tpu.matmul %335, %352, %cst_161 {dimension_numbers = #tpu.dot_dimension_numbers<[1], [0], [0], [1], [0, 0, 1, 1], [], []>} : vector<8x128xbf16>, vector<128x128xbf16>, vector<8x128xf32> -> vector<8x128xf32>
    %354 = arith.addf %351, %353 : vector<8x128xf32>
    %355 = arith.negf %354 : vector<8x128xf32>
    %356 = math.exp %355 : vector<8x128xf32>
    %cst_162 = arith.constant 1.000000e+00 : f32
    %357 = vector.broadcast %cst_162 : f32 to vector<8x128xf32>
    %358 = arith.addf %357, %356 : vector<8x128xf32>
    %359 = arith.divf %357, %358 : vector<8x128xf32>
    %360 = arith.index_cast %c6_i32 : i32 to index
    %c0_163 = arith.constant 0 : index
    %c256_164 = arith.constant 256 : index
    %361 = vector.load %arg2[%360, %c0_163, %c256_164] : memref<8x8x512xbf16, #tpu.memory_space<vmem>>, vector<1x8x128xbf16>
    %362 = vector.shape_cast %361 : vector<1x8x128xbf16> to vector<8x128xbf16>
    %363 = arith.extf %362 : vector<8x128xbf16> to vector<8x128xf32>
    %c0_165 = arith.constant 0 : index
    %c256_166 = arith.constant 256 : index
    %364 = vector.load %arg3[%c0_165, %c256_166] : memref<128x512xbf16, #tpu.memory_space<vmem>>, vector<128x128xbf16>
    %cst_167 = arith.constant dense<0.000000e+00> : vector<8x128xf32>
    %365 = tpu.matmul %335, %364, %cst_167 {dimension_numbers = #tpu.dot_dimension_numbers<[1], [0], [0], [1], [0, 0, 1, 1], [], []>} : vector<8x128xbf16>, vector<128x128xbf16>, vector<8x128xf32> -> vector<8x128xf32>
    %366 = arith.addf %363, %365 : vector<8x128xf32>
    %367 = math.tanh %366 : vector<8x128xf32>
    %368 = arith.index_cast %c6_i32 : i32 to index
    %c0_168 = arith.constant 0 : index
    %c384_169 = arith.constant 384 : index
    %369 = vector.load %arg2[%368, %c0_168, %c384_169] : memref<8x8x512xbf16, #tpu.memory_space<vmem>>, vector<1x8x128xbf16>
    %370 = vector.shape_cast %369 : vector<1x8x128xbf16> to vector<8x128xbf16>
    %371 = arith.extf %370 : vector<8x128xbf16> to vector<8x128xf32>
    %c0_170 = arith.constant 0 : index
    %c384_171 = arith.constant 384 : index
    %372 = vector.load %arg3[%c0_170, %c384_171] : memref<128x512xbf16, #tpu.memory_space<vmem>>, vector<128x128xbf16>
    %cst_172 = arith.constant dense<0.000000e+00> : vector<8x128xf32>
    %373 = tpu.matmul %335, %372, %cst_172 {dimension_numbers = #tpu.dot_dimension_numbers<[1], [0], [0], [1], [0, 0, 1, 1], [], []>} : vector<8x128xbf16>, vector<128x128xbf16>, vector<8x128xf32> -> vector<8x128xf32>
    %374 = arith.addf %371, %373 : vector<8x128xf32>
    %375 = arith.negf %374 : vector<8x128xf32>
    %376 = math.exp %375 : vector<8x128xf32>
    %cst_173 = arith.constant 1.000000e+00 : f32
    %377 = vector.broadcast %cst_173 : f32 to vector<8x128xf32>
    %378 = arith.addf %377, %376 : vector<8x128xf32>
    %379 = arith.divf %377, %378 : vector<8x128xf32>
    %380 = arith.mulf %359, %327 : vector<8x128xf32>
    %381 = arith.mulf %347, %367 : vector<8x128xf32>
    %382 = arith.addf %380, %381 : vector<8x128xf32>
    %383 = math.tanh %382 : vector<8x128xf32>
    %384 = arith.mulf %379, %383 : vector<8x128xf32>
    %385 = arith.truncf %384 : vector<8x128xf32> to vector<8x128xbf16>
    %386 = arith.index_cast %c6_i32 : i32 to index
    %c0_174 = arith.constant 0 : index
    %c0_175 = arith.constant 0 : index
    %387 = vector.load %arg6[%386, %c0_174, %c0_175] : memref<8x8x128xbf16, #tpu.memory_space<vmem>>, vector<1x8x128xbf16>
    %388 = vector.shape_cast %387 : vector<1x8x128xbf16> to vector<8x128xbf16>
    %389 = vector.shape_cast %385 : vector<8x128xbf16> to vector<1x8x128xbf16>
    tpu.vector_store %arg6[%386, %c0_174, %c0_175], %389 {strides = array<i32>} : memref<8x8x128xbf16, #tpu.memory_space<vmem>>, vector<1x8x128xbf16>,
    %c7_i32 = arith.constant 7 : i32
    %390 = arith.truncf %384 : vector<8x128xf32> to vector<8x128xbf16>
    %391 = arith.index_cast %c7_i32 : i32 to index
    %c0_176 = arith.constant 0 : index
    %c0_177 = arith.constant 0 : index
    %392 = vector.load %arg2[%391, %c0_176, %c0_177] : memref<8x8x512xbf16, #tpu.memory_space<vmem>>, vector<1x8x128xbf16>
    %393 = vector.shape_cast %392 : vector<1x8x128xbf16> to vector<8x128xbf16>
    %394 = arith.extf %393 : vector<8x128xbf16> to vector<8x128xf32>
    %c0_178 = arith.constant 0 : index
    %c0_179 = arith.constant 0 : index
    %395 = vector.load %arg3[%c0_178, %c0_179] : memref<128x512xbf16, #tpu.memory_space<vmem>>, vector<128x128xbf16>
    %cst_180 = arith.constant dense<0.000000e+00> : vector<8x128xf32>
    %396 = tpu.matmul %390, %395, %cst_180 {dimension_numbers = #tpu.dot_dimension_numbers<[1], [0], [0], [1], [0, 0, 1, 1], [], []>} : vector<8x128xbf16>, vector<128x128xbf16>, vector<8x128xf32> -> vector<8x128xf32>
    %397 = arith.addf %394, %396 : vector<8x128xf32>
    %398 = arith.negf %397 : vector<8x128xf32>
    %399 = math.exp %398 : vector<8x128xf32>
    %cst_181 = arith.constant 1.000000e+00 : f32
    %400 = vector.broadcast %cst_181 : f32 to vector<8x128xf32>
    %401 = arith.addf %400, %399 : vector<8x128xf32>
    %402 = arith.divf %400, %401 : vector<8x128xf32>
    %403 = arith.index_cast %c7_i32 : i32 to index
    %c0_182 = arith.constant 0 : index
    %c128_183 = arith.constant 128 : index
    %404 = vector.load %arg2[%403, %c0_182, %c128_183] : memref<8x8x512xbf16, #tpu.memory_space<vmem>>, vector<1x8x128xbf16>
    %405 = vector.shape_cast %404 : vector<1x8x128xbf16> to vector<8x128xbf16>
    %406 = arith.extf %405 : vector<8x128xbf16> to vector<8x128xf32>
    %c0_184 = arith.constant 0 : index
    %c128_185 = arith.constant 128 : index
    %407 = vector.load %arg3[%c0_184, %c128_185] : memref<128x512xbf16, #tpu.memory_space<vmem>>, vector<128x128xbf16>
    %cst_186 = arith.constant dense<0.000000e+00> : vector<8x128xf32>
    %408 = tpu.matmul %390, %407, %cst_186 {dimension_numbers = #tpu.dot_dimension_numbers<[1], [0], [0], [1], [0, 0, 1, 1], [], []>} : vector<8x128xbf16>, vector<128x128xbf16>, vector<8x128xf32> -> vector<8x128xf32>
    %409 = arith.addf %406, %408 : vector<8x128xf32>
    %410 = arith.negf %409 : vector<8x128xf32>
    %411 = math.exp %410 : vector<8x128xf32>
    %cst_187 = arith.constant 1.000000e+00 : f32
    %412 = vector.broadcast %cst_187 : f32 to vector<8x128xf32>
    %413 = arith.addf %412, %411 : vector<8x128xf32>
    %414 = arith.divf %412, %413 : vector<8x128xf32>
    %415 = arith.index_cast %c7_i32 : i32 to index
    %c0_188 = arith.constant 0 : index
    %c256_189 = arith.constant 256 : index
    %416 = vector.load %arg2[%415, %c0_188, %c256_189] : memref<8x8x512xbf16, #tpu.memory_space<vmem>>, vector<1x8x128xbf16>
    %417 = vector.shape_cast %416 : vector<1x8x128xbf16> to vector<8x128xbf16>
    %418 = arith.extf %417 : vector<8x128xbf16> to vector<8x128xf32>
    %c0_190 = arith.constant 0 : index
    %c256_191 = arith.constant 256 : index
    %419 = vector.load %arg3[%c0_190, %c256_191] : memref<128x512xbf16, #tpu.memory_space<vmem>>, vector<128x128xbf16>
    %cst_192 = arith.constant dense<0.000000e+00> : vector<8x128xf32>
    %420 = tpu.matmul %390, %419, %cst_192 {dimension_numbers = #tpu.dot_dimension_numbers<[1], [0], [0], [1], [0, 0, 1, 1], [], []>} : vector<8x128xbf16>, vector<128x128xbf16>, vector<8x128xf32> -> vector<8x128xf32>
    %421 = arith.addf %418, %420 : vector<8x128xf32>
    %422 = math.tanh %421 : vector<8x128xf32>
    %423 = arith.index_cast %c7_i32 : i32 to index
    %c0_193 = arith.constant 0 : index
    %c384_194 = arith.constant 384 : index
    %424 = vector.load %arg2[%423, %c0_193, %c384_194] : memref<8x8x512xbf16, #tpu.memory_space<vmem>>, vector<1x8x128xbf16>
    %425 = vector.shape_cast %424 : vector<1x8x128xbf16> to vector<8x128xbf16>
    %426 = arith.extf %425 : vector<8x128xbf16> to vector<8x128xf32>
    %c0_195 = arith.constant 0 : index
    %c384_196 = arith.constant 384 : index
    %427 = vector.load %arg3[%c0_195, %c384_196] : memref<128x512xbf16, #tpu.memory_space<vmem>>, vector<128x128xbf16>
    %cst_197 = arith.constant dense<0.000000e+00> : vector<8x128xf32>
    %428 = tpu.matmul %390, %427, %cst_197 {dimension_numbers = #tpu.dot_dimension_numbers<[1], [0], [0], [1], [0, 0, 1, 1], [], []>} : vector<8x128xbf16>, vector<128x128xbf16>, vector<8x128xf32> -> vector<8x128xf32>
    %429 = arith.addf %426, %428 : vector<8x128xf32>
    %430 = arith.negf %429 : vector<8x128xf32>
    %431 = math.exp %430 : vector<8x128xf32>
    %cst_198 = arith.constant 1.000000e+00 : f32
    %432 = vector.broadcast %cst_198 : f32 to vector<8x128xf32>
    %433 = arith.addf %432, %431 : vector<8x128xf32>
    %434 = arith.divf %432, %433 : vector<8x128xf32>
    %435 = arith.mulf %414, %382 : vector<8x128xf32>
    %436 = arith.mulf %402, %422 : vector<8x128xf32>
    %437 = arith.addf %435, %436 : vector<8x128xf32>
    %438 = math.tanh %437 : vector<8x128xf32>
    %439 = arith.mulf %434, %438 : vector<8x128xf32>
    %440 = arith.truncf %439 : vector<8x128xf32> to vector<8x128xbf16>
    %441 = arith.index_cast %c7_i32 : i32 to index
    %c0_199 = arith.constant 0 : index
    %c0_200 = arith.constant 0 : index
    %442 = vector.load %arg6[%441, %c0_199, %c0_200] : memref<8x8x128xbf16, #tpu.memory_space<vmem>>, vector<1x8x128xbf16>
    %443 = vector.shape_cast %442 : vector<1x8x128xbf16> to vector<8x128xbf16>
    %444 = vector.shape_cast %440 : vector<8x128xbf16> to vector<1x8x128xbf16>
    tpu.vector_store %arg6[%441, %c0_199, %c0_200], %444 {strides = array<i32>} : memref<8x8x128xbf16, #tpu.memory_space<vmem>>, vector<1x8x128xbf16>,
    %c8_i32 = arith.constant 8 : i32
    %c0_201 = arith.constant 0 : index
    %c0_202 = arith.constant 0 : index
    %445 = vector.load %arg9[%c0_201, %c0_202] : memref<8x128xf32, #tpu.memory_space<vmem>>, vector<8x128xf32>
    tpu.vector_store %arg9[%c0_201, %c0_202], %439 {strides = array<i32>} : memref<8x128xf32, #tpu.memory_space<vmem>>, vector<8x128xf32>,
    %c0_203 = arith.constant 0 : index
    %c0_204 = arith.constant 0 : index
    %446 = vector.load %arg10[%c0_203, %c0_204] : memref<8x128xf32, #tpu.memory_space<vmem>>, vector<8x128xf32>
    tpu.vector_store %arg10[%c0_203, %c0_204], %437 {strides = array<i32>} : memref<8x128xf32, #tpu.memory_space<vmem>>, vector<8x128xf32>,
    %c0_i32_205 = arith.constant 0 : i32
    %447 = arith.cmpi eq, %arg1, %c0_i32_205 : i32
    %448 = arith.extui %447 : i1 to i32
    %c0_i32_206 = arith.constant 0 : i32
    %449 = arith.cmpi ne, %448, %c0_i32_206 : i32
    scf.if %449 {
      %c0_207 = arith.constant 0 : index
      %c0_208 = arith.constant 0 : index
      %450 = vector.load %arg7[%c0_207, %c0_208] : memref<8x128xf32, #tpu.memory_space<vmem>>, vector<8x128xf32>
      tpu.vector_store %arg7[%c0_207, %c0_208], %439 {strides = array<i32>} : memref<8x128xf32, #tpu.memory_space<vmem>>, vector<8x128xf32>,
      %c0_209 = arith.constant 0 : index
      %c0_210 = arith.constant 0 : index
      %451 = vector.load %arg8[%c0_209, %c0_210] : memref<8x128xf32, #tpu.memory_space<vmem>>, vector<8x128xf32>
      tpu.vector_store %arg8[%c0_209, %c0_210], %437 {strides = array<i32>} : memref<8x128xf32, #tpu.memory_space<vmem>>, vector<8x128xf32>,
    } else {
    }
    return
  }
  func.func @transform_0(%arg0: i32, %arg1: i32) -> (i32, i32, i32) {
    %c0_i32 = arith.constant 0 : i32
    %c0_i32_0 = arith.constant 0 : i32
    return %arg1, %arg0, %c0_i32 : i32, i32, i32
  }
  func.func @transform_1(%arg0: i32, %arg1: i32) -> (i32, i32) {
    %c0_i32 = arith.constant 0 : i32
    %c0_i32_0 = arith.constant 0 : i32
    %c0_i32_1 = arith.constant 0 : i32
    return %c0_i32, %c0_i32_0 : i32, i32
  }
  func.func @transform_2(%arg0: i32, %arg1: i32) -> (i32, i32) {
    %c0_i32 = arith.constant 0 : i32
    %c0_i32_0 = arith.constant 0 : i32
    return %arg0, %c0_i32 : i32, i32
  }
  func.func @transform_3(%arg0: i32, %arg1: i32) -> (i32, i32) {
    %c0_i32 = arith.constant 0 : i32
    %c0_i32_0 = arith.constant 0 : i32
    return %arg0, %c0_i32 : i32, i32
  }
  func.func @transform_4(%arg0: i32, %arg1: i32) -> (i32, i32, i32) {
    %c0_i32 = arith.constant 0 : i32
    %c0_i32_0 = arith.constant 0 : i32
    return %arg1, %arg0, %c0_i32 : i32, i32, i32
  }
  func.func @transform_5(%arg0: i32, %arg1: i32) -> (i32, i32) {
    %c0_i32 = arith.constant 0 : i32
    %c0_i32_0 = arith.constant 0 : i32
    return %arg0, %c0_i32 : i32, i32
  }
  func.func @transform_6(%arg0: i32, %arg1: i32) -> (i32, i32) {
    %c0_i32 = arith.constant 0 : i32
    %c0_i32_0 = arith.constant 0 : i32
    return %arg0, %c0_i32 : i32, i32
  }
}

</mosaic_0001>

<llo_original>
// kernel: tpu_custom_call.1
$region0: #{tpu_custom_call.1}
  #allocation0 [shape = 'u32[]', space=smem, size = 0x4, offset = 0x4, fixed_abs, tag = 'smem constant byte address 0x4 - core index']
  #allocation1 [shape = 'u32[144,128]{1,0:T(1,128)}', space=vmem, size = 0x12000, scoped, tag = 'internal scratch']
  #allocation2 [shape = 'f32[8,128]{1,0:T(8,128)}', space=vmem, size = 0x1000, scoped, tag = 'scratch operand']
  #allocation3 [shape = 'f32[8,128]{1,0:T(8,128)}', space=vmem, size = 0x1000, scoped, tag = 'scratch operand']
  %s0 = inlined_call_operand.hbm [shape: bf16[8,8,512], index: 0, kind: input, shape index: {}]
  %s1 = inlined_call_operand.hbm [shape: bf16[128,512], index: 1, kind: input, shape index: {}]
  %s2 = inlined_call_operand.hbm [shape: f32[8,128], index: 2, kind: input, shape index: {}]
  %s3 = inlined_call_operand.vmem [shape: f32[8,128], index: 3, kind: input, shape index: {}]
  %s4 = inlined_call_operand.hbm [shape: bf16[8,8,128], index: 4, kind: output, shape index: {0}]
  %s5 = inlined_call_operand.hbm [shape: f32[8,128], index: 5, kind: output, shape index: {1}]
  %s6 = inlined_call_operand.hbm [shape: f32[8,128], index: 6, kind: output, shape index: {2}]
  %7 = xla_tuple %s4, %s5, %s6
  %s8 = sld [smem:[#allocation0]]
  $region62: #{tpu_custom_call.1} parent=0
    _
  %s10 = ssub.s32 1, %s8
  %s11 = scalar_select 0, %s10, %s8
  $region1: #{tpu_custom_call.1} parent=0
    #allocation4 [shape = 'u8[65536]{0}', space=vmem, size = 0x10000, scoped, tag = 'input window, operand 0, single buffered']
    #allocation5 [shape = 's32[1]{0}', space=sflag, size = 0x4, scoped, tag = 'scoped memory for tpu_custom_call.1']
    #allocation6 [shape = 's32[1]{0}', space=sflag, size = 0x4, scoped, tag = 'scoped memory for tpu_custom_call.1']
    #allocation7 [shape = 'u8[131072]{0}', space=vmem, size = 0x20000, scoped, tag = 'input window, operand 1, single buffered']
    #allocation8 [shape = 's32[1]{0}', space=sflag, size = 0x4, scoped, tag = 'scoped memory for tpu_custom_call.1']
    #allocation9 [shape = 'u8[4096]{0}', space=vmem, size = 0x1000, scoped, tag = 'input window, operand 2, single buffered']
    #allocation10 [shape = 'u8[16384]{0}', space=vmem, size = 0x4000, scoped, tag = 'output window, operand 0, single buffered']
    #allocation11 [shape = 'u8[4096]{0}', space=vmem, size = 0x1000, scoped, tag = 'output window, operand 1, single buffered']
    #allocation12 [shape = 's32[1]{0}', space=sflag, size = 0x4, scoped, tag = 'scoped memory for tpu_custom_call.1']
    #allocation13 [shape = 'u8[4096]{0}', space=vmem, size = 0x1000, scoped, tag = 'output window, operand 2, single buffered']
    %12 = vsyncpa [#allocation5], 0
    %13 = vsyncpa [#allocation8], 0
    %14 = vsyncpa [#allocation6], 0
    %15 = vsyncpa [#allocation12], 0
    // Predicated region
    $region2: #{tpu_custom_call.1} parent=1 // pred_check
      _
    $region3: #{tpu_custom_call.1} parent=1 // pred_check_branch
      %17 = sbr.rel (0) target = $region5
    $region4: #{tpu_custom_call.1} parent=1 // pred_region
      %s19 = ssub.s32 2048, 2048
      %20 = vsyncadd [#allocation5], %s19
      %s21 = sshll.u32 [#allocation4], 4
      %s22 = int_to_ptr.vmem [resolvable:$true] %s21
      %27 = dma.hbm_to_vmem [thread:$0]  %s0, 2048, %s22, [#allocation5], 256, 256, 16
    $region5: #{tpu_custom_call.1} parent=1 // pred_fallthru
      _
    // Predicated region
    $region6: #{tpu_custom_call.1} parent=1 // pred_check
      _
    $region7: #{tpu_custom_call.1} parent=1 // pred_check_branch
      %29 = sbr.rel (0) target = $region9
    $region8: #{tpu_custom_call.1} parent=1 // pred_region
      %s31 = ssub.s32 4096, 4096
      %32 = vsyncadd [#allocation8], %s31
      %s33 = sshll.u32 [#allocation7], 4
      %s34 = int_to_ptr.vmem [resolvable:$true] %s33
      %39 = dma.hbm_to_vmem [thread:$0]  %s1, 4096, %s34, [#allocation8], 256, 256, 16
    $region9: #{tpu_custom_call.1} parent=1 // pred_fallthru
      _
    // Predicated region
    $region10: #{tpu_custom_call.1} parent=1 // pred_check
      _
    $region11: #{tpu_custom_call.1} parent=1 // pred_check_branch
      %41 = sbr.rel (0) target = $region13
    $region12: #{tpu_custom_call.1} parent=1 // pred_region
      %s43 = ssub.s32 128, 128
      %44 = vsyncadd [#allocation8], %s43
      %s46 = sshll.u32 [#allocation9], 4
      %s47 = int_to_ptr.vmem [resolvable:$true] %s46
      %49 = dma.hbm_to_vmem [thread:$0]  %s2, 128, %s47, [#allocation8]
    $region13: #{tpu_custom_call.1} parent=1 // pred_fallthru
      _
    // Predicated region
    $region14: #{tpu_custom_call.1} parent=1 // pred_check
      _
    $region15: #{tpu_custom_call.1} parent=1 // pred_check_branch
      %51 = sbr.rel (0) target = $region17
    $region16: #{tpu_custom_call.1} parent=1 // pred_region
      _
    $region17: #{tpu_custom_call.1} parent=1 // pred_fallthru
      _
    // Predicated region
    $region18: #{tpu_custom_call.1} parent=1 // pred_check
      _
    $region19: #{tpu_custom_call.1} parent=1 // pred_check_branch
      %53 = sbr.rel (0) target = $region21
    $region20: #{tpu_custom_call.1} parent=1 // pred_region
      %54 = dma.done [#allocation5], 2048
    $region21: #{tpu_custom_call.1} parent=1 // pred_fallthru
      _
    // Predicated region
    $region22: #{tpu_custom_call.1} parent=1 // pred_check
      _
    $region23: #{tpu_custom_call.1} parent=1 // pred_check_branch
      %56 = sbr.rel (0) target = $region25
    $region24: #{tpu_custom_call.1} parent=1 // pred_region
      %57 = dma.done [#allocation8], 4096
    $region25: #{tpu_custom_call.1} parent=1 // pred_fallthru
      _
    // Predicated region
    $region26: #{tpu_custom_call.1} parent=1 // pred_check
      _
    $region27: #{tpu_custom_call.1} parent=1 // pred_check_branch
      %59 = sbr.rel (0) target = $region29
    $region28: #{tpu_custom_call.1} parent=1 // pred_region
      %60 = dma.done [#allocation8], 128
    $region29: #{tpu_custom_call.1} parent=1 // pred_fallthru
      _
    %p62 = scmp.eq.s32.totalorder 0, 0
    // Predicated region
    $region30: #{tpu_custom_call.1} parent=1 // pred_check
      %p63 = pneg %p62
    $region31: #{tpu_custom_call.1} parent=1 // pred_check_branch
      %65 = sbr.rel (%p63) target = $region33
    $region32: #{tpu_custom_call.1} parent=1 // pred_region
      %v66 = vld [vmem:[#allocation9] sm:$0xff]
      %67 = vst [vmem:[#allocation2] sm:$0xff] %v66
      %v68 = vld [vmem:[%s3] sm:$0xff]
      %69 = vst [vmem:[#allocation3] sm:$0xff] %v68
    $region33: #{tpu_custom_call.1} parent=1 // pred_fallthru
      _
    %v70 = vld [vmem:[#allocation2] sm:$0xff]
    %v71 = vld [vmem:[#allocation3] sm:$0xff]
    %v72 = vpack.c.bf16 %v70, %v70
    %v73 = vld [vmem:[#allocation4] sm:$0xf]
    %v74 = vunpack.c.l.bf16 %v73
    %v75 = vld [vmem:[#allocation7] sm:$0xf]
    %v76 = vld [vmem:[#allocation7 + $0x10] sm:$0xf]
    %v77 = vld [vmem:[#allocation7 + $0x20] sm:$0xf]
    %v78 = vld [vmem:[#allocation7 + $0x30] sm:$0xf]
    %v79 = vld [vmem:[#allocation7 + $0x40] sm:$0xf]
    %v80 = vld [vmem:[#allocation7 + $0x50] sm:$0xf]
    %v81 = vld [vmem:[#allocation7 + $0x60] sm:$0xf]
    %v82 = vld [vmem:[#allocation7 + $0x70] sm:$0xf]
    %v83 = vld [vmem:[#allocation7 + $0x80] sm:$0xf]
    %v84 = vld [vmem:[#allocation7 + $0x90] sm:$0xf]
    %v85 = vld [vmem:[#allocation7 + $0xa0] sm:$0xf]
    %v86 = vld [vmem:[#allocation7 + $0xb0] sm:$0xf]
    %v87 = vld [vmem:[#allocation7 + $0xc0] sm:$0xf]
    %v88 = vld [vmem:[#allocation7 + $0xd0] sm:$0xf]
    %v89 = vld [vmem:[#allocation7 + $0xe0] sm:$0xf]
    %v90 = vld [vmem:[#allocation7 + $0xf0] sm:$0xf]
    %v107 = vunpack.c.l.b16 %v75
    %v108 = vunpack.c.l.b16 %v76
    %v109 = vunpack.c.l.b16 %v77
    %v110 = vunpack.c.l.b16 %v78
    %v111 = vunpack.c.l.b16 %v79
    %v112 = vunpack.c.l.b16 %v80
    %v113 = vunpack.c.l.b16 %v81
    %v114 = vunpack.c.l.b16 %v82
    %v115 = vunpack.c.l.b16 %v83
    %v116 = vunpack.c.l.b16 %v84
    %v117 = vunpack.c.l.b16 %v85
    %v118 = vunpack.c.l.b16 %v86
    %v119 = vunpack.c.l.b16 %v87
    %v120 = vunpack.c.l.b16 %v88
    %v121 = vunpack.c.l.b16 %v89
    %v122 = vunpack.c.l.b16 %v90
    %v123 = vpack.c.b16 %v108, %v107
    %v124 = vpack.c.b16 %v110, %v109
    %v125 = vpack.c.b16 %v112, %v111
    %v126 = vpack.c.b16 %v114, %v113
    %v127 = vpack.c.b16 %v116, %v115
    %v128 = vpack.c.b16 %v118, %v117
    %v129 = vpack.c.b16 %v120, %v119
    %v130 = vpack.c.b16 %v122, %v121
    %139 = vmatprep.subr.bf16.mxu0 0
    %140 = vmatpush1.bf16.msra.mxu0 %v123
    %141 = vmatprep.subr.bf16.mxu0 0
    %142 = vmatpush1.bf16.msra.mxu0 %v124
    %143 = vmatprep.subr.bf16.mxu0 0
    %144 = vmatpush1.bf16.msra.mxu0 %v125
    %145 = vmatprep.subr.bf16.mxu0 0
    %146 = vmatpush1.bf16.msra.mxu0 %v126
    %147 = vmatprep.subr.bf16.mxu0 0
    %148 = vmatpush1.bf16.msra.mxu0 %v127
    %149 = vmatprep.subr.bf16.mxu0 0
    %150 = vmatpush1.bf16.msra.mxu0 %v128
    %151 = vmatprep.subr.bf16.mxu0 0
    %152 = vmatpush1.bf16.msra.mxu0 %v129
    %153 = vmatprep.subr.bf16.mxu0 0
    %154 = vmatpush1.bf16.msra.mxu0 %v130
    %155 = vmatprep.subr.bf16.mxu0 0
    %156 = vmatpush1.bf16.msra.mxu0 0
    %157 = vmatprep.subr.bf16.mxu0 0
    %158 = vmatpush1.bf16.msra.mxu0 0
    %159 = vmatprep.subr.bf16.mxu0 0
    %160 = vmatpush1.bf16.msra.mxu0 0
    %161 = vmatprep.subr.bf16.mxu0 0
    %162 = vmatpush1.bf16.msra.mxu0 0
    %163 = vmatprep.subr.bf16.mxu0 0
    %164 = vmatpush1.bf16.msra.mxu0 0
    %165 = vmatprep.subr.bf16.mxu0 0
    %166 = vmatpush1.bf16.msra.mxu0 0
    %167 = vmatprep.subr.bf16.mxu0 0
    %168 = vmatpush1.bf16.msra.mxu0 0
    %169 = vmatprep.subr.bf16.mxu0 0
    %170 = vmatpush1.bf16.msra.mxu0 0
    %171 = vmatprep.mubr.bf16.mxu0 0
    %172 = vmatmul.mubr.bf16.gmra.mrb[0].mxu0 %v72
    %v173 = vpop.f32.mrb[0].mxu0
    %v174 = vadd.f32 0.0, %v173
    %v175 = vpop.f32.mrb[0].mxu0
    %v176 = vpop.f32.mrb[0].mxu0
    %v177 = vpop.f32.mrb[0].mxu0
    %178 = vdwg.mxu0
    %v179 = vadd.f32 %v74, %v174
    %v180 = vxor.u32 %v179, 2147483648
    %v181 = vmul.f32 %v180, 1.442695
    %v182 = vpow.pop %v181
    %v183 = vadd.f32 %v182, 1.0
    %v184 = vrcp.pop %v183
    %v185 = vmul.f32 1.0, %v184
    %v186 = vld [vmem:[#allocation4 + $0x4] sm:$0xf]
    %v187 = vunpack.c.l.bf16 %v186
    %v188 = vld [vmem:[#allocation7 + $0x4] sm:$0xf]
    %v189 = vld [vmem:[#allocation7 + $0x14] sm:$0xf]
    %v190 = vld [vmem:[#allocation7 + $0x24] sm:$0xf]
    %v191 = vld [vmem:[#allocation7 + $0x34] sm:$0xf]
    %v192 = vld [vmem:[#allocation7 + $0x44] sm:$0xf]
    %v193 = vld [vmem:[#allocation7 + $0x54] sm:$0xf]
    %v194 = vld [vmem:[#allocation7 + $0x64] sm:$0xf]
    %v195 = vld [vmem:[#allocation7 + $0x74] sm:$0xf]
    %v196 = vld [vmem:[#allocation7 + $0x84] sm:$0xf]
    %v197 = vld [vmem:[#allocation7 + $0x94] sm:$0xf]
    %v198 = vld [vmem:[#allocation7 + $0xa4] sm:$0xf]
    %v199 = vld [vmem:[#allocation7 + $0xb4] sm:$0xf]
    %v200 = vld [vmem:[#allocation7 + $0xc4] sm:$0xf]
    %v201 = vld [vmem:[#allocation7 + $0xd4] sm:$0xf]
    %v202 = vld [vmem:[#allocation7 + $0xe4] sm:$0xf]
    %v203 = vld [vmem:[#allocation7 + $0xf4] sm:$0xf]
    %v220 = vunpack.c.l.b16 %v188
    %v221 = vunpack.c.l.b16 %v189
    %v222 = vunpack.c.l.b16 %v190
    %v223 = vunpack.c.l.b16 %v191
    %v224 = vunpack.c.l.b16 %v192
    %v225 = vunpack.c.l.b16 %v193
    %v226 = vunpack.c.l.b16 %v194
    %v227 = vunpack.c.l.b16 %v195
    %v228 = vunpack.c.l.b16 %v196
    %v229 = vunpack.c.l.b16 %v197
    %v230 = vunpack.c.l.b16 %v198
    %v231 = vunpack.c.l.b16 %v199
    %v232 = vunpack.c.l.b16 %v200
    %v233 = vunpack.c.l.b16 %v201
    %v234 = vunpack.c.l.b16 %v202
    %v235 = vunpack.c.l.b16 %v203
    %v236 = vpack.c.b16 %v221, %v220
    %v237 = vpack.c.b16 %v223, %v222
    %v238 = vpack.c.b16 %v225, %v224
    %v239 = vpack.c.b16 %v227, %v226
    %v240 = vpack.c.b16 %v229, %v228
    %v241 = vpack.c.b16 %v231, %v230
    %v242 = vpack.c.b16 %v233, %v232
    %v243 = vpack.c.b16 %v235, %v234
    %252 = vmatprep.subr.bf16.mxu0 0
    %253 = vmatpush1.bf16.msra.mxu0 %v236
    %254 = vmatprep.subr.bf16.mxu0 0
    %255 = vmatpush1.bf16.msra.mxu0 %v237
    %256 = vmatprep.subr.bf16.mxu0 0
    %257 = vmatpush1.bf16.msra.mxu0 %v238
    %258 = vmatprep.subr.bf16.mxu0 0
    %259 = vmatpush1.bf16.msra.mxu0 %v239
    %260 = vmatprep.subr.bf16.mxu0 0
    %261 = vmatpush1.bf16.msra.mxu0 %v240
    %262 = vmatprep.subr.bf16.mxu0 0
    %263 = vmatpush1.bf16.msra.mxu0 %v241
    %264 = vmatprep.subr.bf16.mxu0 0
    %265 = vmatpush1.bf16.msra.mxu0 %v242
    %266 = vmatprep.subr.bf16.mxu0 0
    %267 = vmatpush1.bf16.msra.mxu0 %v243
    %268 = vmatprep.subr.bf16.mxu0 0
    %269 = vmatpush1.bf16.msra.mxu0 0
    %270 = vmatprep.subr.bf16.mxu0 0
    %271 = vmatpush1.bf16.msra.mxu0 0
    %272 = vmatprep.subr.bf16.mxu0 0
    %273 = vmatpush1.bf16.msra.mxu0 0
    %274 = vmatprep.subr.bf16.mxu0 0
    %275 = vmatpush1.bf16.msra.mxu0 0
    %276 = vmatprep.subr.bf16.mxu0 0
    %277 = vmatpush1.bf16.msra.mxu0 0
    %278 = vmatprep.subr.bf16.mxu0 0
    %279 = vmatpush1.bf16.msra.mxu0 0
    %280 = vmatprep.subr.bf16.mxu0 0
    %281 = vmatpush1.bf16.msra.mxu0 0
    %282 = vmatprep.subr.bf16.mxu0 0
    %283 = vmatpush1.bf16.msra.mxu0 0
    %284 = vmatprep.mubr.bf16.mxu0 0
    %285 = vmatmul.mubr.bf16.gmra.mrb[0].mxu0 %v72
    %v286 = vpop.f32.mrb[0].mxu0
    %v287 = vadd.f32 0.0, %v286
    %v288 = vpop.f32.mrb[0].mxu0
    %v289 = vpop.f32.mrb[0].mxu0
    %v290 = vpop.f32.mrb[0].mxu0
    %291 = vdwg.mxu0
    %v292 = vadd.f32 %v187, %v287
    %v293 = vxor.u32 %v292, 2147483648
    %v294 = vmul.f32 %v293, 1.442695
    %v295 = vpow.pop %v294
    %v296 = vadd.f32 %v295, 1.0
    %v297 = vrcp.pop %v296
    %v298 = vmul.f32 1.0, %v297
    %v299 = vld [vmem:[#allocation4 + $0x8] sm:$0xf]
    %v300 = vunpack.c.l.bf16 %v299
    %v301 = vld [vmem:[#allocation7 + $0x8] sm:$0xf]
    %v302 = vld [vmem:[#allocation7 + $0x18] sm:$0xf]
    %v303 = vld [vmem:[#allocation7 + $0x28] sm:$0xf]
    %v304 = vld [vmem:[#allocation7 + $0x38] sm:$0xf]
    %v305 = vld [vmem:[#allocation7 + $0x48] sm:$0xf]
    %v306 = vld [vmem:[#allocation7 + $0x58] sm:$0xf]
    %v307 = vld [vmem:[#allocation7 + $0x68] sm:$0xf]
    %v308 = vld [vmem:[#allocation7 + $0x78] sm:$0xf]
    %v309 = vld [vmem:[#allocation7 + $0x88] sm:$0xf]
    %v310 = vld [vmem:[#allocation7 + $0x98] sm:$0xf]
    %v311 = vld [vmem:[#allocation7 + $0xa8] sm:$0xf]
    %v312 = vld [vmem:[#allocation7 + $0xb8] sm:$0xf]
    %v313 = vld [vmem:[#allocation7 + $0xc8] sm:$0xf]
    %v314 = vld [vmem:[#allocation7 + $0xd8] sm:$0xf]
    %v315 = vld [vmem:[#allocation7 + $0xe8] sm:$0xf]
    %v316 = vld [vmem:[#allocation7 + $0xf8] sm:$0xf]
    %v333 = vunpack.c.l.b16 %v301
    %v334 = vunpack.c.l.b16 %v302
    %v335 = vunpack.c.l.b16 %v303
    %v336 = vunpack.c.l.b16 %v304
    %v337 = vunpack.c.l.b16 %v305
    %v338 = vunpack.c.l.b16 %v306
    %v339 = vunpack.c.l.b16 %v307
    %v340 = vunpack.c.l.b16 %v308
    %v341 = vunpack.c.l.b16 %v309
    %v342 = vunpack.c.l.b16 %v310
    %v343 = vunpack.c.l.b16 %v311
    %v344 = vunpack.c.l.b16 %v312
    %v345 = vunpack.c.l.b16 %v313
    %v346 = vunpack.c.l.b16 %v314
    %v347 = vunpack.c.l.b16 %v315
    %v348 = vunpack.c.l.b16 %v316
    %v349 = vpack.c.b16 %v334, %v333
    %v350 = vpack.c.b16 %v336, %v335
    %v351 = vpack.c.b16 %v338, %v337
    %v352 = vpack.c.b16 %v340, %v339
    %v353 = vpack.c.b16 %v342, %v341
    %v354 = vpack.c.b16 %v344, %v343
    %v355 = vpack.c.b16 %v346, %v345
    %v356 = vpack.c.b16 %v348, %v347
    %365 = vmatprep.subr.bf16.mxu0 0
    %366 = vmatpush1.bf16.msra.mxu0 %v349
    %367 = vmatprep.subr.bf16.mxu0 0
    %368 = vmatpush1.bf16.msra.mxu0 %v350
    %369 = vmatprep.subr.bf16.mxu0 0
    %370 = vmatpush1.bf16.msra.mxu0 %v351
    %371 = vmatprep.subr.bf16.mxu0 0
    %372 = vmatpush1.bf16.msra.mxu0 %v352
    %373 = vmatprep.subr.bf16.mxu0 0
    %374 = vmatpush1.bf16.msra.mxu0 %v353
    %375 = vmatprep.subr.bf16.mxu0 0
    %376 = vmatpush1.bf16.msra.mxu0 %v354
    %377 = vmatprep.subr.bf16.mxu0 0
    %378 = vmatpush1.bf16.msra.mxu0 %v355
    %379 = vmatprep.subr.bf16.mxu0 0
    %380 = vmatpush1.bf16.msra.mxu0 %v356
    %381 = vmatprep.subr.bf16.mxu0 0
    %382 = vmatpush1.bf16.msra.mxu0 0
    %383 = vmatprep.subr.bf16.mxu0 0
    %384 = vmatpush1.bf16.msra.mxu0 0
    %385 = vmatprep.subr.bf16.mxu0 0
    %386 = vmatpush1.bf16.msra.mxu0 0
    %387 = vmatprep.subr.bf16.mxu0 0
    %388 = vmatpush1.bf16.msra.mxu0 0
    %389 = vmatprep.subr.bf16.mxu0 0
    %390 = vmatpush1.bf16.msra.mxu0 0
    %391 = vmatprep.subr.bf16.mxu0 0
    %392 = vmatpush1.bf16.msra.mxu0 0
    %393 = vmatprep.subr.bf16.mxu0 0
    %394 = vmatpush1.bf16.msra.mxu0 0
    %395 = vmatprep.subr.bf16.mxu0 0
    %396 = vmatpush1.bf16.msra.mxu0 0
    %397 = vmatprep.mubr.bf16.mxu0 0
    %398 = vmatmul.mubr.bf16.gmra.mrb[0].mxu0 %v72
    %v399 = vpop.f32.mrb[0].mxu0
    %v400 = vadd.f32 0.0, %v399
    %v401 = vpop.f32.mrb[0].mxu0
    %v402 = vpop.f32.mrb[0].mxu0
    %v403 = vpop.f32.mrb[0].mxu0
    %404 = vdwg.mxu0
    %v405 = vadd.f32 %v300, %v400
    %v406 = vtanh.pop %v405
    %v407 = vld [vmem:[#allocation4 + $0xc] sm:$0xf]
    %v408 = vunpack.c.l.bf16 %v407
    %v409 = vld [vmem:[#allocation7 + $0xc] sm:$0xf]
    %v410 = vld [vmem:[#allocation7 + $0x1c] sm:$0xf]
    %v411 = vld [vmem:[#allocation7 + $0x2c] sm:$0xf]
    %v412 = vld [vmem:[#allocation7 + $0x3c] sm:$0xf]
    %v413 = vld [vmem:[#allocation7 + $0x4c] sm:$0xf]
    %v414 = vld [vmem:[#allocation7 + $0x5c] sm:$0xf]
    %v415 = vld [vmem:[#allocation7 + $0x6c] sm:$0xf]
    %v416 = vld [vmem:[#allocation7 + $0x7c] sm:$0xf]
    %v417 = vld [vmem:[#allocation7 + $0x8c] sm:$0xf]
    %v418 = vld [vmem:[#allocation7 + $0x9c] sm:$0xf]
    %v419 = vld [vmem:[#allocation7 + $0xac] sm:$0xf]
    %v420 = vld [vmem:[#allocation7 + $0xbc] sm:$0xf]
    %v421 = vld [vmem:[#allocation7 + $0xcc] sm:$0xf]
    %v422 = vld [vmem:[#allocation7 + $0xdc] sm:$0xf]
    %v423 = vld [vmem:[#allocation7 + $0xec] sm:$0xf]
    %v424 = vld [vmem:[#allocation7 + $0xfc] sm:$0xf]
    %v441 = vunpack.c.l.b16 %v409
    %v442 = vunpack.c.l.b16 %v410
    %v443 = vunpack.c.l.b16 %v411
    %v444 = vunpack.c.l.b16 %v412
    %v445 = vunpack.c.l.b16 %v413
    %v446 = vunpack.c.l.b16 %v414
    %v447 = vunpack.c.l.b16 %v415
    %v448 = vunpack.c.l.b16 %v416
    %v449 = vunpack.c.l.b16 %v417
    %v450 = vunpack.c.l.b16 %v418
    %v451 = vunpack.c.l.b16 %v419
    %v452 = vunpack.c.l.b16 %v420
    %v453 = vunpack.c.l.b16 %v421
    %v454 = vunpack.c.l.b16 %v422
    %v455 = vunpack.c.l.b16 %v423
    %v456 = vunpack.c.l.b16 %v424
    %v457 = vpack.c.b16 %v442, %v441
    %v458 = vpack.c.b16 %v444, %v443
    %v459 = vpack.c.b16 %v446, %v445
    %v460 = vpack.c.b16 %v448, %v447
    %v461 = vpack.c.b16 %v450, %v449
    %v462 = vpack.c.b16 %v452, %v451
    %v463 = vpack.c.b16 %v454, %v453
    %v464 = vpack.c.b16 %v456, %v455
    %473 = vmatprep.subr.bf16.mxu0 0
    %474 = vmatpush1.bf16.msra.mxu0 %v457
    %475 = vmatprep.subr.bf16.mxu0 0
    %476 = vmatpush1.bf16.msra.mxu0 %v458
    %477 = vmatprep.subr.bf16.mxu0 0
    %478 = vmatpush1.bf16.msra.mxu0 %v459
    %479 = vmatprep.subr.bf16.mxu0 0
    %480 = vmatpush1.bf16.msra.mxu0 %v460
    %481 = vmatprep.subr.bf16.mxu0 0
    %482 = vmatpush1.bf16.msra.mxu0 %v461
    %483 = vmatprep.subr.bf16.mxu0 0
    %484 = vmatpush1.bf16.msra.mxu0 %v462
    %485 = vmatprep.subr.bf16.mxu0 0
    %486 = vmatpush1.bf16.msra.mxu0 %v463
    %487 = vmatprep.subr.bf16.mxu0 0
    %488 = vmatpush1.bf16.msra.mxu0 %v464
    %489 = vmatprep.subr.bf16.mxu0 0
    %490 = vmatpush1.bf16.msra.mxu0 0
    %491 = vmatprep.subr.bf16.mxu0 0
    %492 = vmatpush1.bf16.msra.mxu0 0
    %493 = vmatprep.subr.bf16.mxu0 0
    %494 = vmatpush1.bf16.msra.mxu0 0
    %495 = vmatprep.subr.bf16.mxu0 0
    %496 = vmatpush1.bf16.msra.mxu0 0
    %497 = vmatprep.subr.bf16.mxu0 0
    %498 = vmatpush1.bf16.msra.mxu0 0
    %499 = vmatprep.subr.bf16.mxu0 0
    %500 = vmatpush1.bf16.msra.mxu0 0
    %501 = vmatprep.subr.bf16.mxu0 0
    %502 = vmatpush1.bf16.msra.mxu0 0
    %503 = vmatprep.subr.bf16.mxu0 0
    %504 = vmatpush1.bf16.msra.mxu0 0
    %505 = vmatprep.mubr.bf16.mxu0 0
    %506 = vmatmul.mubr.bf16.gmra.mrb[0].mxu0 %v72
    %v507 = vpop.f32.mrb[0].mxu0
    %v508 = vadd.f32 0.0, %v507
    %v509 = vpop.f32.mrb[0].mxu0
    %v510 = vpop.f32.mrb[0].mxu0
    %v511 = vpop.f32.mrb[0].mxu0
    %512 = vdwg.mxu0
    %v513 = vadd.f32 %v408, %v508
    %v514 = vxor.u32 %v513, 2147483648
    %v515 = vmul.f32 %v514, 1.442695
    %v516 = vpow.pop %v515
    %v517 = vadd.f32 %v516, 1.0
    %v518 = vrcp.pop %v517
    %v519 = vmul.f32 1.0, %v518
    %v520 = vmul.f32 %v298, %v71
    %v521 = vmul.f32 %v185, %v406
    %v522 = vadd.f32 %v520, %v521
    %v523 = vtanh.pop %v522
    %v524 = vmul.f32 %v519, %v523
    %v525 = vpack.c.bf16 %v524, %v524
    %526 = vst [vmem:[#allocation10] sm:$0xf] %v525
    %s527 = scalar_lea.vmem [#allocation4], 16
    %v528 = vld [vmem:[%s527] sm:$0xf]
    %v529 = vunpack.c.l.bf16 %v528
    %v530 = vld [vmem:[#allocation7] sm:$0xf]
    %v531 = vld [vmem:[#allocation7 + $0x10] sm:$0xf]
    %v532 = vld [vmem:[#allocation7 + $0x20] sm:$0xf]
    %v533 = vld [vmem:[#allocation7 + $0x30] sm:$0xf]
    %v534 = vld [vmem:[#allocation7 + $0x40] sm:$0xf]
    %v535 = vld [vmem:[#allocation7 + $0x50] sm:$0xf]
    %v536 = vld [vmem:[#allocation7 + $0x60] sm:$0xf]
    %v537 = vld [vmem:[#allocation7 + $0x70] sm:$0xf]
    %v538 = vld [vmem:[#allocation7 + $0x80] sm:$0xf]
    %v539 = vld [vmem:[#allocation7 + $0x90] sm:$0xf]
    %v540 = vld [vmem:[#allocation7 + $0xa0] sm:$0xf]
    %v541 = vld [vmem:[#allocation7 + $0xb0] sm:$0xf]
    %v542 = vld [vmem:[#allocation7 + $0xc0] sm:$0xf]
    %v543 = vld [vmem:[#allocation7 + $0xd0] sm:$0xf]
    %v544 = vld [vmem:[#allocation7 + $0xe0] sm:$0xf]
    %v545 = vld [vmem:[#allocation7 + $0xf0] sm:$0xf]
    %v562 = vunpack.c.l.b16 %v530
    %v563 = vunpack.c.l.b16 %v531
    %v564 = vunpack.c.l.b16 %v532
    %v565 = vunpack.c.l.b16 %v533
    %v566 = vunpack.c.l.b16 %v534
    %v567 = vunpack.c.l.b16 %v535
    %v568 = vunpack.c.l.b16 %v536
    %v569 = vunpack.c.l.b16 %v537
    %v570 = vunpack.c.l.b16 %v538
    %v571 = vunpack.c.l.b16 %v539
    %v572 = vunpack.c.l.b16 %v540
    %v573 = vunpack.c.l.b16 %v541
    %v574 = vunpack.c.l.b16 %v542
    %v575 = vunpack.c.l.b16 %v543
    %v576 = vunpack.c.l.b16 %v544
    %v577 = vunpack.c.l.b16 %v545
    %v578 = vpack.c.b16 %v563, %v562
    %v579 = vpack.c.b16 %v565, %v564
    %v580 = vpack.c.b16 %v567, %v566
    %v581 = vpack.c.b16 %v569, %v568
    %v582 = vpack.c.b16 %v571, %v570
    %v583 = vpack.c.b16 %v573, %v572
    %v584 = vpack.c.b16 %v575, %v574
    %v585 = vpack.c.b16 %v577, %v576
    %594 = vmatprep.subr.bf16.mxu0 0
    %595 = vmatpush1.bf16.msra.mxu0 %v578
    %596 = vmatprep.subr.bf16.mxu0 0
    %597 = vmatpush1.bf16.msra.mxu0 %v579
    %598 = vmatprep.subr.bf16.mxu0 0
    %599 = vmatpush1.bf16.msra.mxu0 %v580
    %600 = vmatprep.subr.bf16.mxu0 0
    %601 = vmatpush1.bf16.msra.mxu0 %v581
    %602 = vmatprep.subr.bf16.mxu0 0
    %603 = vmatpush1.bf16.msra.mxu0 %v582
    %604 = vmatprep.subr.bf16.mxu0 0
    %605 = vmatpush1.bf16.msra.mxu0 %v583
    %606 = vmatprep.subr.bf16.mxu0 0
    %607 = vmatpush1.bf16.msra.mxu0 %v584
    %608 = vmatprep.subr.bf16.mxu0 0
    %609 = vmatpush1.bf16.msra.mxu0 %v585
    %610 = vmatprep.subr.bf16.mxu0 0
    %611 = vmatpush1.bf16.msra.mxu0 0
    %612 = vmatprep.subr.bf16.mxu0 0
    %613 = vmatpush1.bf16.msra.mxu0 0
    %614 = vmatprep.subr.bf16.mxu0 0
    %615 = vmatpush1.bf16.msra.mxu0 0
    %616 = vmatprep.subr.bf16.mxu0 0
    %617 = vmatpush1.bf16.msra.mxu0 0
    %618 = vmatprep.subr.bf16.mxu0 0
    %619 = vmatpush1.bf16.msra.mxu0 0
    %620 = vmatprep.subr.bf16.mxu0 0
    %621 = vmatpush1.bf16.msra.mxu0 0
    %622 = vmatprep.subr.bf16.mxu0 0
    %623 = vmatpush1.bf16.msra.mxu0 0
    %624 = vmatprep.subr.bf16.mxu0 0
    %625 = vmatpush1.bf16.msra.mxu0 0
    %626 = vmatprep.mubr.bf16.mxu0 0
    %627 = vmatmul.mubr.bf16.gmra.mrb[0].mxu0 %v525
    %v628 = vpop.f32.mrb[0].mxu0
    %v629 = vadd.f32 0.0, %v628
    %v630 = vpop.f32.mrb[0].mxu0
    %v631 = vpop.f32.mrb[0].mxu0
    %v632 = vpop.f32.mrb[0].mxu0
    %633 = vdwg.mxu0
    %v634 = vadd.f32 %v529, %v629
    %v635 = vxor.u32 %v634, 2147483648
    %v636 = vmul.f32 %v635, 1.442695
    %v637 = vpow.pop %v636
    %v638 = vadd.f32 %v637, 1.0
    %v639 = vrcp.pop %v638
    %v640 = vmul.f32 1.0, %v639
    %v641 = vld [vmem:[%s527 + $0x4] sm:$0xf]
    %v642 = vunpack.c.l.bf16 %v641
    %v643 = vld [vmem:[#allocation7 + $0x4] sm:$0xf]
    %v644 = vld [vmem:[#allocation7 + $0x14] sm:$0xf]
    %v645 = vld [vmem:[#allocation7 + $0x24] sm:$0xf]
    %v646 = vld [vmem:[#allocation7 + $0x34] sm:$0xf]
    %v647 = vld [vmem:[#allocation7 + $0x44] sm:$0xf]
    %v648 = vld [vmem:[#allocation7 + $0x54] sm:$0xf]
    %v649 = vld [vmem:[#allocation7 + $0x64] sm:$0xf]
    %v650 = vld [vmem:[#allocation7 + $0x74] sm:$0xf]
    %v651 = vld [vmem:[#allocation7 + $0x84] sm:$0xf]
    %v652 = vld [vmem:[#allocation7 + $0x94] sm:$0xf]
    %v653 = vld [vmem:[#allocation7 + $0xa4] sm:$0xf]
    %v654 = vld [vmem:[#allocation7 + $0xb4] sm:$0xf]
    %v655 = vld [vmem:[#allocation7 + $0xc4] sm:$0xf]
    %v656 = vld [vmem:[#allocation7 + $0xd4] sm:$0xf]
    %v657 = vld [vmem:[#allocation7 + $0xe4] sm:$0xf]
    %v658 = vld [vmem:[#allocation7 + $0xf4] sm:$0xf]
    %v675 = vunpack.c.l.b16 %v643
    %v676 = vunpack.c.l.b16 %v644
    %v677 = vunpack.c.l.b16 %v645
    %v678 = vunpack.c.l.b16 %v646
    %v679 = vunpack.c.l.b16 %v647
    %v680 = vunpack.c.l.b16 %v648
    %v681 = vunpack.c.l.b16 %v649
    %v682 = vunpack.c.l.b16 %v650
    %v683 = vunpack.c.l.b16 %v651
    %v684 = vunpack.c.l.b16 %v652
    %v685 = vunpack.c.l.b16 %v653
    %v686 = vunpack.c.l.b16 %v654
    %v687 = vunpack.c.l.b16 %v655
    %v688 = vunpack.c.l.b16 %v656
    %v689 = vunpack.c.l.b16 %v657
    %v690 = vunpack.c.l.b16 %v658
    %v691 = vpack.c.b16 %v676, %v675
    %v692 = vpack.c.b16 %v678, %v677
    %v693 = vpack.c.b16 %v680, %v679
    %v694 = vpack.c.b16 %v682, %v681
    %v695 = vpack.c.b16 %v684, %v683
    %v696 = vpack.c.b16 %v686, %v685
    %v697 = vpack.c.b16 %v688, %v687
    %v698 = vpack.c.b16 %v690, %v689
    %707 = vmatprep.subr.bf16.mxu0 0
    %708 = vmatpush1.bf16.msra.mxu0 %v691
    %709 = vmatprep.subr.bf16.mxu0 0
    %710 = vmatpush1.bf16.msra.mxu0 %v692
    %711 = vmatprep.subr.bf16.mxu0 0
    %712 = vmatpush1.bf16.msra.mxu0 %v693
    %713 = vmatprep.subr.bf16.mxu0 0
    %714 = vmatpush1.bf16.msra.mxu0 %v694
    %715 = vmatprep.subr.bf16.mxu0 0
    %716 = vmatpush1.bf16.msra.mxu0 %v695
    %717 = vmatprep.subr.bf16.mxu0 0
    %718 = vmatpush1.bf16.msra.mxu0 %v696
    %719 = vmatprep.subr.bf16.mxu0 0
    %720 = vmatpush1.bf16.msra.mxu0 %v697
    %721 = vmatprep.subr.bf16.mxu0 0
    %722 = vmatpush1.bf16.msra.mxu0 %v698
    %723 = vmatprep.subr.bf16.mxu0 0
    %724 = vmatpush1.bf16.msra.mxu0 0
    %725 = vmatprep.subr.bf16.mxu0 0
    %726 = vmatpush1.bf16.msra.mxu0 0
    %727 = vmatprep.subr.bf16.mxu0 0
    %728 = vmatpush1.bf16.msra.mxu0 0
    %729 = vmatprep.subr.bf16.mxu0 0
    %730 = vmatpush1.bf16.msra.mxu0 0
    %731 = vmatprep.subr.bf16.mxu0 0
    %732 = vmatpush1.bf16.msra.mxu0 0
    %733 = vmatprep.subr.bf16.mxu0 0
    %734 = vmatpush1.bf16.msra.mxu0 0
    %735 = vmatprep.subr.bf16.mxu0 0
    %736 = vmatpush1.bf16.msra.mxu0 0
    %737 = vmatprep.subr.bf16.mxu0 0
    %738 = vmatpush1.bf16.msra.mxu0 0
    %739 = vmatprep.mubr.bf16.mxu0 0
    %740 = vmatmul.mubr.bf16.gmra.mrb[0].mxu0 %v525
    %v741 = vpop.f32.mrb[0].mxu0
    %v742 = vadd.f32 0.0, %v741
    %v743 = vpop.f32.mrb[0].mxu0
    %v744 = vpop.f32.mrb[0].mxu0
    %v745 = vpop.f32.mrb[0].mxu0
    %746 = vdwg.mxu0
    %v747 = vadd.f32 %v642, %v742
    %v748 = vxor.u32 %v747, 2147483648
    %v749 = vmul.f32 %v748, 1.442695
    %v750 = vpow.pop %v749
    %v751 = vadd.f32 %v750, 1.0
    %v752 = vrcp.pop %v751
    %v753 = vmul.f32 1.0, %v752
    %v754 = vld [vmem:[%s527 + $0x8] sm:$0xf]
    %v755 = vunpack.c.l.bf16 %v754
    %v756 = vld [vmem:[#allocation7 + $0x8] sm:$0xf]
    %v757 = vld [vmem:[#allocation7 + $0x18] sm:$0xf]
    %v758 = vld [vmem:[#allocation7 + $0x28] sm:$0xf]
    %v759 = vld [vmem:[#allocation7 + $0x38] sm:$0xf]
    %v760 = vld [vmem:[#allocation7 + $0x48] sm:$0xf]
    %v761 = vld [vmem:[#allocation7 + $0x58] sm:$0xf]
    %v762 = vld [vmem:[#allocation7 + $0x68] sm:$0xf]
    %v763 = vld [vmem:[#allocation7 + $0x78] sm:$0xf]
    %v764 = vld [vmem:[#allocation7 + $0x88] sm:$0xf]
    %v765 = vld [vmem:[#allocation7 + $0x98] sm:$0xf]
    %v766 = vld [vmem:[#allocation7 + $0xa8] sm:$0xf]
    %v767 = vld [vmem:[#allocation7 + $0xb8] sm:$0xf]
    %v768 = vld [vmem:[#allocation7 + $0xc8] sm:$0xf]
    %v769 = vld [vmem:[#allocation7 + $0xd8] sm:$0xf]
    %v770 = vld [vmem:[#allocation7 + $0xe8] sm:$0xf]
    %v771 = vld [vmem:[#allocation7 + $0xf8] sm:$0xf]
    %v788 = vunpack.c.l.b16 %v756
    %v789 = vunpack.c.l.b16 %v757
    %v790 = vunpack.c.l.b16 %v758
    %v791 = vunpack.c.l.b16 %v759
    %v792 = vunpack.c.l.b16 %v760
    %v793 = vunpack.c.l.b16 %v761
    %v794 = vunpack.c.l.b16 %v762
    %v795 = vunpack.c.l.b16 %v763
    %v796 = vunpack.c.l.b16 %v764
    %v797 = vunpack.c.l.b16 %v765
    %v798 = vunpack.c.l.b16 %v766
    %v799 = vunpack.c.l.b16 %v767
    %v800 = vunpack.c.l.b16 %v768
    %v801 = vunpack.c.l.b16 %v769
    %v802 = vunpack.c.l.b16 %v770
    %v803 = vunpack.c.l.b16 %v771
    %v804 = vpack.c.b16 %v789, %v788
    %v805 = vpack.c.b16 %v791, %v790
    %v806 = vpack.c.b16 %v793, %v792
    %v807 = vpack.c.b16 %v795, %v794
    %v808 = vpack.c.b16 %v797, %v796
    %v809 = vpack.c.b16 %v799, %v798
    %v810 = vpack.c.b16 %v801, %v800
    %v811 = vpack.c.b16 %v803, %v802
    %820 = vmatprep.subr.bf16.mxu0 0
    %821 = vmatpush1.bf16.msra.mxu0 %v804
    %822 = vmatprep.subr.bf16.mxu0 0
    %823 = vmatpush1.bf16.msra.mxu0 %v805
    %824 = vmatprep.subr.bf16.mxu0 0
    %825 = vmatpush1.bf16.msra.mxu0 %v806
    %826 = vmatprep.subr.bf16.mxu0 0
    %827 = vmatpush1.bf16.msra.mxu0 %v807
    %828 = vmatprep.subr.bf16.mxu0 0
    %829 = vmatpush1.bf16.msra.mxu0 %v808
    %830 = vmatprep.subr.bf16.mxu0 0
    %831 = vmatpush1.bf16.msra.mxu0 %v809
    %832 = vmatprep.subr.bf16.mxu0 0
    %833 = vmatpush1.bf16.msra.mxu0 %v810
    %834 = vmatprep.subr.bf16.mxu0 0
    %835 = vmatpush1.bf16.msra.mxu0 %v811
    %836 = vmatprep.subr.bf16.mxu0 0
    %837 = vmatpush1.bf16.msra.mxu0 0
    %838 = vmatprep.subr.bf16.mxu0 0
    %839 = vmatpush1.bf16.msra.mxu0 0
    %840 = vmatprep.subr.bf16.mxu0 0
    %841 = vmatpush1.bf16.msra.mxu0 0
    %842 = vmatprep.subr.bf16.mxu0 0
    %843 = vmatpush1.bf16.msra.mxu0 0
    %844 = vmatprep.subr.bf16.mxu0 0
    %845 = vmatpush1.bf16.msra.mxu0 0
    %846 = vmatprep.subr.bf16.mxu0 0
    %847 = vmatpush1.bf16.msra.mxu0 0
    %848 = vmatprep.subr.bf16.mxu0 0
    %849 = vmatpush1.bf16.msra.mxu0 0
    %850 = vmatprep.subr.bf16.mxu0 0
    %851 = vmatpush1.bf16.msra.mxu0 0
    %852 = vmatprep.mubr.bf16.mxu0 0
    %853 = vmatmul.mubr.bf16.gmra.mrb[0].mxu0 %v525
    %v854 = vpop.f32.mrb[0].mxu0
    %v855 = vadd.f32 0.0, %v854
    %v856 = vpop.f32.mrb[0].mxu0
    %v857 = vpop.f32.mrb[0].mxu0
    %v858 = vpop.f32.mrb[0].mxu0
    %859 = vdwg.mxu0
    %v860 = vadd.f32 %v755, %v855
    %v861 = vtanh.pop %v860
    %v862 = vld [vmem:[%s527 + $0xc] sm:$0xf]
    %v863 = vunpack.c.l.bf16 %v862
    %v864 = vld [vmem:[#allocation7 + $0xc] sm:$0xf]
    %v865 = vld [vmem:[#allocation7 + $0x1c] sm:$0xf]
    %v866 = vld [vmem:[#allocation7 + $0x2c] sm:$0xf]
    %v867 = vld [vmem:[#allocation7 + $0x3c] sm:$0xf]
    %v868 = vld [vmem:[#allocation7 + $0x4c] sm:$0xf]
    %v869 = vld [vmem:[#allocation7 + $0x5c] sm:$0xf]
    %v870 = vld [vmem:[#allocation7 + $0x6c] sm:$0xf]
    %v871 = vld [vmem:[#allocation7 + $0x7c] sm:$0xf]
    %v872 = vld [vmem:[#allocation7 + $0x8c] sm:$0xf]
    %v873 = vld [vmem:[#allocation7 + $0x9c] sm:$0xf]
    %v874 = vld [vmem:[#allocation7 + $0xac] sm:$0xf]
    %v875 = vld [vmem:[#allocation7 + $0xbc] sm:$0xf]
    %v876 = vld [vmem:[#allocation7 + $0xcc] sm:$0xf]
    %v877 = vld [vmem:[#allocation7 + $0xdc] sm:$0xf]
    %v878 = vld [vmem:[#allocation7 + $0xec] sm:$0xf]
    %v879 = vld [vmem:[#allocation7 + $0xfc] sm:$0xf]
    %v896 = vunpack.c.l.b16 %v864
    %v897 = vunpack.c.l.b16 %v865
    %v898 = vunpack.c.l.b16 %v866
    %v899 = vunpack.c.l.b16 %v867
    %v900 = vunpack.c.l.b16 %v868
    %v901 = vunpack.c.l.b16 %v869
    %v902 = vunpack.c.l.b16 %v870
    %v903 = vunpack.c.l.b16 %v871
    %v904 = vunpack.c.l.b16 %v872
    %v905 = vunpack.c.l.b16 %v873
    %v906 = vunpack.c.l.b16 %v874
    %v907 = vunpack.c.l.b16 %v875
    %v908 = vunpack.c.l.b16 %v876
    %v909 = vunpack.c.l.b16 %v877
    %v910 = vunpack.c.l.b16 %v878
    %v911 = vunpack.c.l.b16 %v879
    %v912 = vpack.c.b16 %v897, %v896
    %v913 = vpack.c.b16 %v899, %v898
    %v914 = vpack.c.b16 %v901, %v900
    %v915 = vpack.c.b16 %v903, %v902
    %v916 = vpack.c.b16 %v905, %v904
    %v917 = vpack.c.b16 %v907, %v906
    %v918 = vpack.c.b16 %v909, %v908
    %v919 = vpack.c.b16 %v911, %v910
    %928 = vmatprep.subr.bf16.mxu0 0
    %929 = vmatpush1.bf16.msra.mxu0 %v912
    %930 = vmatprep.subr.bf16.mxu0 0
    %931 = vmatpush1.bf16.msra.mxu0 %v913
    %932 = vmatprep.subr.bf16.mxu0 0
    %933 = vmatpush1.bf16.msra.mxu0 %v914
    %934 = vmatprep.subr.bf16.mxu0 0
    %935 = vmatpush1.bf16.msra.mxu0 %v915
    %936 = vmatprep.subr.bf16.mxu0 0
    %937 = vmatpush1.bf16.msra.mxu0 %v916
    %938 = vmatprep.subr.bf16.mxu0 0
    %939 = vmatpush1.bf16.msra.mxu0 %v917
    %940 = vmatprep.subr.bf16.mxu0 0
    %941 = vmatpush1.bf16.msra.mxu0 %v918
    %942 = vmatprep.subr.bf16.mxu0 0
    %943 = vmatpush1.bf16.msra.mxu0 %v919
    %944 = vmatprep.subr.bf16.mxu0 0
    %945 = vmatpush1.bf16.msra.mxu0 0
    %946 = vmatprep.subr.bf16.mxu0 0
    %947 = vmatpush1.bf16.msra.mxu0 0
    %948 = vmatprep.subr.bf16.mxu0 0
    %949 = vmatpush1.bf16.msra.mxu0 0
    %950 = vmatprep.subr.bf16.mxu0 0
    %951 = vmatpush1.bf16.msra.mxu0 0
    %952 = vmatprep.subr.bf16.mxu0 0
    %953 = vmatpush1.bf16.msra.mxu0 0
    %954 = vmatprep.subr.bf16.mxu0 0
    %955 = vmatpush1.bf16.msra.mxu0 0
    %956 = vmatprep.subr.bf16.mxu0 0
    %957 = vmatpush1.bf16.msra.mxu0 0
    %958 = vmatprep.subr.bf16.mxu0 0
    %959 = vmatpush1.bf16.msra.mxu0 0
    %960 = vmatprep.mubr.bf16.mxu0 0
    %961 = vmatmul.mubr.bf16.gmra.mrb[0].mxu0 %v525
    %v962 = vpop.f32.mrb[0].mxu0
    %v963 = vadd.f32 0.0, %v962
    %v964 = vpop.f32.mrb[0].mxu0
    %v965 = vpop.f32.mrb[0].mxu0
    %v966 = vpop.f32.mrb[0].mxu0
    %967 = vdwg.mxu0
    %v968 = vadd.f32 %v863, %v963
    %v969 = vxor.u32 %v968, 2147483648
    %v970 = vmul.f32 %v969, 1.442695
    %v971 = vpow.pop %v970
    %v972 = vadd.f32 %v971, 1.0
    %v973 = vrcp.pop %v972
    %v974 = vmul.f32 1.0, %v973
    %v975 = vmul.f32 %v753, %v522
    %v976 = vmul.f32 %v640, %v861
    %v977 = vadd.f32 %v975, %v976
    %v978 = vtanh.pop %v977
    %v979 = vmul.f32 %v974, %v978
    %v980 = vpack.c.bf16 %v979, %v979
    %s981 = scalar_lea.vmem [#allocation10], 4
    %982 = vst [vmem:[%s981] sm:$0xf] %v980
    %s983 = scalar_lea.vmem [#allocation4], 32
    %v984 = vld [vmem:[%s983] sm:$0xf]
    %v985 = vunpack.c.l.bf16 %v984
    %v986 = vld [vmem:[#allocation7] sm:$0xf]
    %v987 = vld [vmem:[#allocation7 + $0x10] sm:$0xf]
    %v988 = vld [vmem:[#allocation7 + $0x20] sm:$0xf]
    %v989 = vld [vmem:[#allocation7 + $0x30] sm:$0xf]
    %v990 = vld [vmem:[#allocation7 + $0x40] sm:$0xf]
    %v991 = vld [vmem:[#allocation7 + $0x50] sm:$0xf]
    %v992 = vld [vmem:[#allocation7 + $0x60] sm:$0xf]
    %v993 = vld [vmem:[#allocation7 + $0x70] sm:$0xf]
    %v994 = vld [vmem:[#allocation7 + $0x80] sm:$0xf]
    %v995 = vld [vmem:[#allocation7 + $0x90] sm:$0xf]
    %v996 = vld [vmem:[#allocation7 + $0xa0] sm:$0xf]
    %v997 = vld [vmem:[#allocation7 + $0xb0] sm:$0xf]
    %v998 = vld [vmem:[#allocation7 + $0xc0] sm:$0xf]
    %v999 = vld [vmem:[#allocation7 + $0xd0] sm:$0xf]
    %v1000 = vld [vmem:[#allocation7 + $0xe0] sm:$0xf]
    %v1001 = vld [vmem:[#allocation7 + $0xf0] sm:$0xf]
    %v1018 = vunpack.c.l.b16 %v986
    %v1019 = vunpack.c.l.b16 %v987
    %v1020 = vunpack.c.l.b16 %v988
    %v1021 = vunpack.c.l.b16 %v989
    %v1022 = vunpack.c.l.b16 %v990
    %v1023 = vunpack.c.l.b16 %v991
    %v1024 = vunpack.c.l.b16 %v992
    %v1025 = vunpack.c.l.b16 %v993
    %v1026 = vunpack.c.l.b16 %v994
    %v1027 = vunpack.c.l.b16 %v995
    %v1028 = vunpack.c.l.b16 %v996
    %v1029 = vunpack.c.l.b16 %v997
    %v1030 = vunpack.c.l.b16 %v998
    %v1031 = vunpack.c.l.b16 %v999
    %v1032 = vunpack.c.l.b16 %v1000
    %v1033 = vunpack.c.l.b16 %v1001
    %v1034 = vpack.c.b16 %v1019, %v1018
    %v1035 = vpack.c.b16 %v1021, %v1020
    %v1036 = vpack.c.b16 %v1023, %v1022
    %v1037 = vpack.c.b16 %v1025, %v1024
    %v1038 = vpack.c.b16 %v1027, %v1026
    %v1039 = vpack.c.b16 %v1029, %v1028
    %v1040 = vpack.c.b16 %v1031, %v1030
    %v1041 = vpack.c.b16 %v1033, %v1032
    %1050 = vmatprep.subr.bf16.mxu0 0
    %1051 = vmatpush1.bf16.msra.mxu0 %v1034
    %1052 = vmatprep.subr.bf16.mxu0 0
    %1053 = vmatpush1.bf16.msra.mxu0 %v1035
    %1054 = vmatprep.subr.bf16.mxu0 0
    %1055 = vmatpush1.bf16.msra.mxu0 %v1036
    %1056 = vmatprep.subr.bf16.mxu0 0
    %1057 = vmatpush1.bf16.msra.mxu0 %v1037
    %1058 = vmatprep.subr.bf16.mxu0 0
    %1059 = vmatpush1.bf16.msra.mxu0 %v1038
    %1060 = vmatprep.subr.bf16.mxu0 0
    %1061 = vmatpush1.bf16.msra.mxu0 %v1039
    %1062 = vmatprep.subr.bf16.mxu0 0
    %1063 = vmatpush1.bf16.msra.mxu0 %v1040
    %1064 = vmatprep.subr.bf16.mxu0 0
    %1065 = vmatpush1.bf16.msra.mxu0 %v1041
    %1066 = vmatprep.subr.bf16.mxu0 0
    %1067 = vmatpush1.bf16.msra.mxu0 0
    %1068 = vmatprep.subr.bf16.mxu0 0
    %1069 = vmatpush1.bf16.msra.mxu0 0
    %1070 = vmatprep.subr.bf16.mxu0 0
    %1071 = vmatpush1.bf16.msra.mxu0 0
    %1072 = vmatprep.subr.bf16.mxu0 0
    %1073 = vmatpush1.bf16.msra.mxu0 0
    %1074 = vmatprep.subr.bf16.mxu0 0
    %1075 = vmatpush1.bf16.msra.mxu0 0
    %1076 = vmatprep.subr.bf16.mxu0 0
    %1077 = vmatpush1.bf16.msra.mxu0 0
    %1078 = vmatprep.subr.bf16.mxu0 0
    %1079 = vmatpush1.bf16.msra.mxu0 0
    %1080 = vmatprep.subr.bf16.mxu0 0
    %1081 = vmatpush1.bf16.msra.mxu0 0
    %1082 = vmatprep.mubr.bf16.mxu0 0
    %1083 = vmatmul.mubr.bf16.gmra.mrb[0].mxu0 %v980
    %v1084 = vpop.f32.mrb[0].mxu0
    %v1085 = vadd.f32 0.0, %v1084
    %v1086 = vpop.f32.mrb[0].mxu0
    %v1087 = vpop.f32.mrb[0].mxu0
    %v1088 = vpop.f32.mrb[0].mxu0
    %1089 = vdwg.mxu0
    %v1090 = vadd.f32 %v985, %v1085
    %v1091 = vxor.u32 %v1090, 2147483648
    %v1092 = vmul.f32 %v1091, 1.442695
    %v1093 = vpow.pop %v1092
    %v1094 = vadd.f32 %v1093, 1.0
    %v1095 = vrcp.pop %v1094
    %v1096 = vmul.f32 1.0, %v1095
    %v1097 = vld [vmem:[%s983 + $0x4] sm:$0xf]
    %v1098 = vunpack.c.l.bf16 %v1097
    %v1099 = vld [vmem:[#allocation7 + $0x4] sm:$0xf]
    %v1100 = vld [vmem:[#allocation7 + $0x14] sm:$0xf]
    %v1101 = vld [vmem:[#allocation7 + $0x24] sm:$0xf]
    %v1102 = vld [vmem:[#allocation7 + $0x34] sm:$0xf]
    %v1103 = vld [vmem:[#allocation7 + $0x44] sm:$0xf]
    %v1104 = vld [vmem:[#allocation7 + $0x54] sm:$0xf]
    %v1105 = vld [vmem:[#allocation7 + $0x64] sm:$0xf]
    %v1106 = vld [vmem:[#allocation7 + $0x74] sm:$0xf]
    %v1107 = vld [vmem:[#allocation7 + $0x84] sm:$0xf]
    %v1108 = vld [vmem:[#allocation7 + $0x94] sm:$0xf]
    %v1109 = vld [vmem:[#allocation7 + $0xa4] sm:$0xf]
    %v1110 = vld [vmem:[#allocation7 + $0xb4] sm:$0xf]
    %v1111 = vld [vmem:[#allocation7 + $0xc4] sm:$0xf]
    %v1112 = vld [vmem:[#allocation7 + $0xd4] sm:$0xf]
    %v1113 = vld [vmem:[#allocation7 + $0xe4] sm:$0xf]
    %v1114 = vld [vmem:[#allocation7 + $0xf4] sm:$0xf]
    %v1131 = vunpack.c.l.b16 %v1099
    %v1132 = vunpack.c.l.b16 %v1100
    %v1133 = vunpack.c.l.b16 %v1101
    %v1134 = vunpack.c.l.b16 %v1102
    %v1135 = vunpack.c.l.b16 %v1103
    %v1136 = vunpack.c.l.b16 %v1104
    %v1137 = vunpack.c.l.b16 %v1105
    %v1138 = vunpack.c.l.b16 %v1106
    %v1139 = vunpack.c.l.b16 %v1107
    %v1140 = vunpack.c.l.b16 %v1108
    %v1141 = vunpack.c.l.b16 %v1109
    %v1142 = vunpack.c.l.b16 %v1110
    %v1143 = vunpack.c.l.b16 %v1111
    %v1144 = vunpack.c.l.b16 %v1112
    %v1145 = vunpack.c.l.b16 %v1113
    %v1146 = vunpack.c.l.b16 %v1114
    %v1147 = vpack.c.b16 %v1132, %v1131
    %v1148 = vpack.c.b16 %v1134, %v1133
    %v1149 = vpack.c.b16 %v1136, %v1135
    %v1150 = vpack.c.b16 %v1138, %v1137
    %v1151 = vpack.c.b16 %v1140, %v1139
    %v1152 = vpack.c.b16 %v1142, %v1141
    %v1153 = vpack.c.b16 %v1144, %v1143
    %v1154 = vpack.c.b16 %v1146, %v1145
    %1163 = vmatprep.subr.bf16.mxu0 0
    %1164 = vmatpush1.bf16.msra.mxu0 %v1147
    %1165 = vmatprep.subr.bf16.mxu0 0
    %1166 = vmatpush1.bf16.msra.mxu0 %v1148
    %1167 = vmatprep.subr.bf16.mxu0 0
    %1168 = vmatpush1.bf16.msra.mxu0 %v1149
    %1169 = vmatprep.subr.bf16.mxu0 0
    %1170 = vmatpush1.bf16.msra.mxu0 %v1150
    %1171 = vmatprep.subr.bf16.mxu0 0
    %1172 = vmatpush1.bf16.msra.mxu0 %v1151
    %1173 = vmatprep.subr.bf16.mxu0 0
    %1174 = vmatpush1.bf16.msra.mxu0 %v1152
    %1175 = vmatprep.subr.bf16.mxu0 0
    %1176 = vmatpush1.bf16.msra.mxu0 %v1153
    %1177 = vmatprep.subr.bf16.mxu0 0
    %1178 = vmatpush1.bf16.msra.mxu0 %v1154
    %1179 = vmatprep.subr.bf16.mxu0 0
    %1180 = vmatpush1.bf16.msra.mxu0 0
    %1181 = vmatprep.subr.bf16.mxu0 0
    %1182 = vmatpush1.bf16.msra.mxu0 0
    %1183 = vmatprep.subr.bf16.mxu0 0
    %1184 = vmatpush1.bf16.msra.mxu0 0
    %1185 = vmatprep.subr.bf16.mxu0 0
    %1186 = vmatpush1.bf16.msra.mxu0 0
    %1187 = vmatprep.subr.bf16.mxu0 0
    %1188 = vmatpush1.bf16.msra.mxu0 0
    %1189 = vmatprep.subr.bf16.mxu0 0
    %1190 = vmatpush1.bf16.msra.mxu0 0
    %1191 = vmatprep.subr.bf16.mxu0 0
    %1192 = vmatpush1.bf16.msra.mxu0 0
    %1193 = vmatprep.subr.bf16.mxu0 0
    %1194 = vmatpush1.bf16.msra.mxu0 0
    %1195 = vmatprep.mubr.bf16.mxu0 0
    %1196 = vmatmul.mubr.bf16.gmra.mrb[0].mxu0 %v980
    %v1197 = vpop.f32.mrb[0].mxu0
    %v1198 = vadd.f32 0.0, %v1197
    %v1199 = vpop.f32.mrb[0].mxu0
    %v1200 = vpop.f32.mrb[0].mxu0
    %v1201 = vpop.f32.mrb[0].mxu0
    %1202 = vdwg.mxu0
    %v1203 = vadd.f32 %v1098, %v1198
    %v1204 = vxor.u32 %v1203, 2147483648
    %v1205 = vmul.f32 %v1204, 1.442695
    %v1206 = vpow.pop %v1205
    %v1207 = vadd.f32 %v1206, 1.0
    %v1208 = vrcp.pop %v1207
    %v1209 = vmul.f32 1.0, %v1208
    %v1210 = vld [vmem:[%s983 + $0x8] sm:$0xf]
    %v1211 = vunpack.c.l.bf16 %v1210
    %v1212 = vld [vmem:[#allocation7 + $0x8] sm:$0xf]
    %v1213 = vld [vmem:[#allocation7 + $0x18] sm:$0xf]
    %v1214 = vld [vmem:[#allocation7 + $0x28] sm:$0xf]
    %v1215 = vld [vmem:[#allocation7 + $0x38] sm:$0xf]
    %v1216 = vld [vmem:[#allocation7 + $0x48] sm:$0xf]
    %v1217 = vld [vmem:[#allocation7 + $0x58] sm:$0xf]
    %v1218 = vld [vmem:[#allocation7 + $0x68] sm:$0xf]
    %v1219 = vld [vmem:[#allocation7 + $0x78] sm:$0xf]
    %v1220 = vld [vmem:[#allocation7 + $0x88] sm:$0xf]
    %v1221 = vld [vmem:[#allocation7 + $0x98] sm:$0xf]
    %v1222 = vld [vmem:[#allocation7 + $0xa8] sm:$0xf]
    %v1223 = vld [vmem:[#allocation7 + $0xb8] sm:$0xf]
    %v1224 = vld [vmem:[#allocation7 + $0xc8] sm:$0xf]
    %v1225 = vld [vmem:[#allocation7 + $0xd8] sm:$0xf]
    %v1226 = vld [vmem:[#allocation7 + $0xe8] sm:$0xf]
    %v1227 = vld [vmem:[#allocation7 + $0xf8] sm:$0xf]
    %v1244 = vunpack.c.l.b16 %v1212
    %v1245 = vunpack.c.l.b16 %v1213
    %v1246 = vunpack.c.l.b16 %v1214
    %v1247 = vunpack.c.l.b16 %v1215
    %v1248 = vunpack.c.l.b16 %v1216
    %v1249 = vunpack.c.l.b16 %v1217
    %v1250 = vunpack.c.l.b16 %v1218
    %v1251 = vunpack.c.l.b16 %v1219
    %v1252 = vunpack.c.l.b16 %v1220
    %v1253 = vunpack.c.l.b16 %v1221
    %v1254 = vunpack.c.l.b16 %v1222
    %v1255 = vunpack.c.l.b16 %v1223
    %v1256 = vunpack.c.l.b16 %v1224
    %v1257 = vunpack.c.l.b16 %v1225
    %v1258 = vunpack.c.l.b16 %v1226
    %v1259 = vunpack.c.l.b16 %v1227
    %v1260 = vpack.c.b16 %v1245, %v1244
    %v1261 = vpack.c.b16 %v1247, %v1246
    %v1262 = vpack.c.b16 %v1249, %v1248
    %v1263 = vpack.c.b16 %v1251, %v1250
    %v1264 = vpack.c.b16 %v1253, %v1252
    %v1265 = vpack.c.b16 %v1255, %v1254
    %v1266 = vpack.c.b16 %v1257, %v1256
    %v1267 = vpack.c.b16 %v1259, %v1258
    %1276 = vmatprep.subr.bf16.mxu0 0
    %1277 = vmatpush1.bf16.msra.mxu0 %v1260
    %1278 = vmatprep.subr.bf16.mxu0 0
    %1279 = vmatpush1.bf16.msra.mxu0 %v1261
    %1280 = vmatprep.subr.bf16.mxu0 0
    %1281 = vmatpush1.bf16.msra.mxu0 %v1262
    %1282 = vmatprep.subr.bf16.mxu0 0
    %1283 = vmatpush1.bf16.msra.mxu0 %v1263
    %1284 = vmatprep.subr.bf16.mxu0 0
    %1285 = vmatpush1.bf16.msra.mxu0 %v1264
    %1286 = vmatprep.subr.bf16.mxu0 0
    %1287 = vmatpush1.bf16.msra.mxu0 %v1265
    %1288 = vmatprep.subr.bf16.mxu0 0
    %1289 = vmatpush1.bf16.msra.mxu0 %v1266
    %1290 = vmatprep.subr.bf16.mxu0 0
    %1291 = vmatpush1.bf16.msra.mxu0 %v1267
    %1292 = vmatprep.subr.bf16.mxu0 0
    %1293 = vmatpush1.bf16.msra.mxu0 0
    %1294 = vmatprep.subr.bf16.mxu0 0
    %1295 = vmatpush1.bf16.msra.mxu0 0
    %1296 = vmatprep.subr.bf16.mxu0 0
    %1297 = vmatpush1.bf16.msra.mxu0 0
    %1298 = vmatprep.subr.bf16.mxu0 0
    %1299 = vmatpush1.bf16.msra.mxu0 0
    %1300 = vmatprep.subr.bf16.mxu0 0
    %1301 = vmatpush1.bf16.msra.mxu0 0
    %1302 = vmatprep.subr.bf16.mxu0 0
    %1303 = vmatpush1.bf16.msra.mxu0 0
    %1304 = vmatprep.subr.bf16.mxu0 0
    %1305 = vmatpush1.bf16.msra.mxu0 0
    %1306 = vmatprep.subr.bf16.mxu0 0
    %1307 = vmatpush1.bf16.msra.mxu0 0
    %1308 = vmatprep.mubr.bf16.mxu0 0
    %1309 = vmatmul.mubr.bf16.gmra.mrb[0].mxu0 %v980
    %v1310 = vpop.f32.mrb[0].mxu0
    %v1311 = vadd.f32 0.0, %v1310
    %v1312 = vpop.f32.mrb[0].mxu0
    %v1313 = vpop.f32.mrb[0].mxu0
    %v1314 = vpop.f32.mrb[0].mxu0
    %1315 = vdwg.mxu0
    %v1316 = vadd.f32 %v1211, %v1311
    %v1317 = vtanh.pop %v1316
    %v1318 = vld [vmem:[%s983 + $0xc] sm:$0xf]
    %v1319 = vunpack.c.l.bf16 %v1318
    %v1320 = vld [vmem:[#allocation7 + $0xc] sm:$0xf]
    %v1321 = vld [vmem:[#allocation7 + $0x1c] sm:$0xf]
    %v1322 = vld [vmem:[#allocation7 + $0x2c] sm:$0xf]
    %v1323 = vld [vmem:[#allocation7 + $0x3c] sm:$0xf]
    %v1324 = vld [vmem:[#allocation7 + $0x4c] sm:$0xf]
    %v1325 = vld [vmem:[#allocation7 + $0x5c] sm:$0xf]
    %v1326 = vld [vmem:[#allocation7 + $0x6c] sm:$0xf]
    %v1327 = vld [vmem:[#allocation7 + $0x7c] sm:$0xf]
    %v1328 = vld [vmem:[#allocation7 + $0x8c] sm:$0xf]
    %v1329 = vld [vmem:[#allocation7 + $0x9c] sm:$0xf]
    %v1330 = vld [vmem:[#allocation7 + $0xac] sm:$0xf]
    %v1331 = vld [vmem:[#allocation7 + $0xbc] sm:$0xf]
    %v1332 = vld [vmem:[#allocation7 + $0xcc] sm:$0xf]
    %v1333 = vld [vmem:[#allocation7 + $0xdc] sm:$0xf]
    %v1334 = vld [vmem:[#allocation7 + $0xec] sm:$0xf]
    %v1335 = vld [vmem:[#allocation7 + $0xfc] sm:$0xf]
    %v1352 = vunpack.c.l.b16 %v1320
    %v1353 = vunpack.c.l.b16 %v1321
    %v1354 = vunpack.c.l.b16 %v1322
    %v1355 = vunpack.c.l.b16 %v1323
    %v1356 = vunpack.c.l.b16 %v1324
    %v1357 = vunpack.c.l.b16 %v1325
    %v1358 = vunpack.c.l.b16 %v1326
    %v1359 = vunpack.c.l.b16 %v1327
    %v1360 = vunpack.c.l.b16 %v1328
    %v1361 = vunpack.c.l.b16 %v1329
    %v1362 = vunpack.c.l.b16 %v1330
    %v1363 = vunpack.c.l.b16 %v1331
    %v1364 = vunpack.c.l.b16 %v1332
    %v1365 = vunpack.c.l.b16 %v1333
    %v1366 = vunpack.c.l.b16 %v1334
    %v1367 = vunpack.c.l.b16 %v1335
    %v1368 = vpack.c.b16 %v1353, %v1352
    %v1369 = vpack.c.b16 %v1355, %v1354
    %v1370 = vpack.c.b16 %v1357, %v1356
    %v1371 = vpack.c.b16 %v1359, %v1358
    %v1372 = vpack.c.b16 %v1361, %v1360
    %v1373 = vpack.c.b16 %v1363, %v1362
    %v1374 = vpack.c.b16 %v1365, %v1364
    %v1375 = vpack.c.b16 %v1367, %v1366
    %1384 = vmatprep.subr.bf16.mxu0 0
    %1385 = vmatpush1.bf16.msra.mxu0 %v1368
    %1386 = vmatprep.subr.bf16.mxu0 0
    %1387 = vmatpush1.bf16.msra.mxu0 %v1369
    %1388 = vmatprep.subr.bf16.mxu0 0
    %1389 = vmatpush1.bf16.msra.mxu0 %v1370
    %1390 = vmatprep.subr.bf16.mxu0 0
    %1391 = vmatpush1.bf16.msra.mxu0 %v1371
    %1392 = vmatprep.subr.bf16.mxu0 0
    %1393 = vmatpush1.bf16.msra.mxu0 %v1372
    %1394 = vmatprep.subr.bf16.mxu0 0
    %1395 = vmatpush1.bf16.msra.mxu0 %v1373
    %1396 = vmatprep.subr.bf16.mxu0 0
    %1397 = vmatpush1.bf16.msra.mxu0 %v1374
    %1398 = vmatprep.subr.bf16.mxu0 0
    %1399 = vmatpush1.bf16.msra.mxu0 %v1375
    %1400 = vmatprep.subr.bf16.mxu0 0
    %1401 = vmatpush1.bf16.msra.mxu0 0
    %1402 = vmatprep.subr.bf16.mxu0 0
    %1403 = vmatpush1.bf16.msra.mxu0 0
    %1404 = vmatprep.subr.bf16.mxu0 0
    %1405 = vmatpush1.bf16.msra.mxu0 0
    %1406 = vmatprep.subr.bf16.mxu0 0
    %1407 = vmatpush1.bf16.msra.mxu0 0
    %1408 = vmatprep.subr.bf16.mxu0 0
    %1409 = vmatpush1.bf16.msra.mxu0 0
    %1410 = vmatprep.subr.bf16.mxu0 0
    %1411 = vmatpush1.bf16.msra.mxu0 0
    %1412 = vmatprep.subr.bf16.mxu0 0
    %1413 = vmatpush1.bf16.msra.mxu0 0
    %1414 = vmatprep.subr.bf16.mxu0 0
    %1415 = vmatpush1.bf16.msra.mxu0 0
    %1416 = vmatprep.mubr.bf16.mxu0 0
    %1417 = vmatmul.mubr.bf16.gmra.mrb[0].mxu0 %v980
    %v1418 = vpop.f32.mrb[0].mxu0
    %v1419 = vadd.f32 0.0, %v1418
    %v1420 = vpop.f32.mrb[0].mxu0
    %v1421 = vpop.f32.mrb[0].mxu0
    %v1422 = vpop.f32.mrb[0].mxu0
    %1423 = vdwg.mxu0
    %v1424 = vadd.f32 %v1319, %v1419
    %v1425 = vxor.u32 %v1424, 2147483648
    %v1426 = vmul.f32 %v1425, 1.442695
    %v1427 = vpow.pop %v1426
    %v1428 = vadd.f32 %v1427, 1.0
    %v1429 = vrcp.pop %v1428
    %v1430 = vmul.f32 1.0, %v1429
    %v1431 = vmul.f32 %v1209, %v977
    %v1432 = vmul.f32 %v1096, %v1317
    %v1433 = vadd.f32 %v1431, %v1432
    %v1434 = vtanh.pop %v1433
    %v1435 = vmul.f32 %v1430, %v1434
    %v1436 = vpack.c.bf16 %v1435, %v1435
    %s1437 = scalar_lea.vmem [#allocation10], 8
    %1438 = vst [vmem:[%s1437] sm:$0xf] %v1436
    %s1439 = scalar_lea.vmem [#allocation4], 48
    %v1440 = vld [vmem:[%s1439] sm:$0xf]
    %v1441 = vunpack.c.l.bf16 %v1440
    %v1442 = vld [vmem:[#allocation7] sm:$0xf]
    %v1443 = vld [vmem:[#allocation7 + $0x10] sm:$0xf]
    %v1444 = vld [vmem:[#allocation7 + $0x20] sm:$0xf]
    %v1445 = vld [vmem:[#allocation7 + $0x30] sm:$0xf]
    %v1446 = vld [vmem:[#allocation7 + $0x40] sm:$0xf]
    %v1447 = vld [vmem:[#allocation7 + $0x50] sm:$0xf]
    %v1448 = vld [vmem:[#allocation7 + $0x60] sm:$0xf]
    %v1449 = vld [vmem:[#allocation7 + $0x70] sm:$0xf]
    %v1450 = vld [vmem:[#allocation7 + $0x80] sm:$0xf]
    %v1451 = vld [vmem:[#allocation7 + $0x90] sm:$0xf]
    %v1452 = vld [vmem:[#allocation7 + $0xa0] sm:$0xf]
    %v1453 = vld [vmem:[#allocation7 + $0xb0] sm:$0xf]
    %v1454 = vld [vmem:[#allocation7 + $0xc0] sm:$0xf]
    %v1455 = vld [vmem:[#allocation7 + $0xd0] sm:$0xf]
    %v1456 = vld [vmem:[#allocation7 + $0xe0] sm:$0xf]
    %v1457 = vld [vmem:[#allocation7 + $0xf0] sm:$0xf]
    %v1474 = vunpack.c.l.b16 %v1442
    %v1475 = vunpack.c.l.b16 %v1443
    %v1476 = vunpack.c.l.b16 %v1444
    %v1477 = vunpack.c.l.b16 %v1445
    %v1478 = vunpack.c.l.b16 %v1446
    %v1479 = vunpack.c.l.b16 %v1447
    %v1480 = vunpack.c.l.b16 %v1448
    %v1481 = vunpack.c.l.b16 %v1449
    %v1482 = vunpack.c.l.b16 %v1450
    %v1483 = vunpack.c.l.b16 %v1451
    %v1484 = vunpack.c.l.b16 %v1452
    %v1485 = vunpack.c.l.b16 %v1453
    %v1486 = vunpack.c.l.b16 %v1454
    %v1487 = vunpack.c.l.b16 %v1455
    %v1488 = vunpack.c.l.b16 %v1456
    %v1489 = vunpack.c.l.b16 %v1457
    %v1490 = vpack.c.b16 %v1475, %v1474
    %v1491 = vpack.c.b16 %v1477, %v1476
    %v1492 = vpack.c.b16 %v1479, %v1478
    %v1493 = vpack.c.b16 %v1481, %v1480
    %v1494 = vpack.c.b16 %v1483, %v1482
    %v1495 = vpack.c.b16 %v1485, %v1484
    %v1496 = vpack.c.b16 %v1487, %v1486
    %v1497 = vpack.c.b16 %v1489, %v1488
    %1506 = vmatprep.subr.bf16.mxu0 0
    %1507 = vmatpush1.bf16.msra.mxu0 %v1490
    %1508 = vmatprep.subr.bf16.mxu0 0
    %1509 = vmatpush1.bf16.msra.mxu0 %v1491
    %1510 = vmatprep.subr.bf16.mxu0 0
    %1511 = vmatpush1.bf16.msra.mxu0 %v1492
    %1512 = vmatprep.subr.bf16.mxu0 0
    %1513 = vmatpush1.bf16.msra.mxu0 %v1493
    %1514 = vmatprep.subr.bf16.mxu0 0
    %1515 = vmatpush1.bf16.msra.mxu0 %v1494
    %1516 = vmatprep.subr.bf16.mxu0 0
    %1517 = vmatpush1.bf16.msra.mxu0 %v1495
    %1518 = vmatprep.subr.bf16.mxu0 0
    %1519 = vmatpush1.bf16.msra.mxu0 %v1496
    %1520 = vmatprep.subr.bf16.mxu0 0
    %1521 = vmatpush1.bf16.msra.mxu0 %v1497
    %1522 = vmatprep.subr.bf16.mxu0 0
    %1523 = vmatpush1.bf16.msra.mxu0 0
    %1524 = vmatprep.subr.bf16.mxu0 0
    %1525 = vmatpush1.bf16.msra.mxu0 0
    %1526 = vmatprep.subr.bf16.mxu0 0
    %1527 = vmatpush1.bf16.msra.mxu0 0
    %1528 = vmatprep.subr.bf16.mxu0 0
    %1529 = vmatpush1.bf16.msra.mxu0 0
    %1530 = vmatprep.subr.bf16.mxu0 0
    %1531 = vmatpush1.bf16.msra.mxu0 0
    %1532 = vmatprep.subr.bf16.mxu0 0
    %1533 = vmatpush1.bf16.msra.mxu0 0
    %1534 = vmatprep.subr.bf16.mxu0 0
    %1535 = vmatpush1.bf16.msra.mxu0 0
    %1536 = vmatprep.subr.bf16.mxu0 0
    %1537 = vmatpush1.bf16.msra.mxu0 0
    %1538 = vmatprep.mubr.bf16.mxu0 0
    %1539 = vmatmul.mubr.bf16.gmra.mrb[0].mxu0 %v1436
    %v1540 = vpop.f32.mrb[0].mxu0
    %v1541 = vadd.f32 0.0, %v1540
    %v1542 = vpop.f32.mrb[0].mxu0
    %v1543 = vpop.f32.mrb[0].mxu0
    %v1544 = vpop.f32.mrb[0].mxu0
    %1545 = vdwg.mxu0
    %v1546 = vadd.f32 %v1441, %v1541
    %v1547 = vxor.u32 %v1546, 2147483648
    %v1548 = vmul.f32 %v1547, 1.442695
    %v1549 = vpow.pop %v1548
    %v1550 = vadd.f32 %v1549, 1.0
    %v1551 = vrcp.pop %v1550
    %v1552 = vmul.f32 1.0, %v1551
    %v1553 = vld [vmem:[%s1439 + $0x4] sm:$0xf]
    %v1554 = vunpack.c.l.bf16 %v1553
    %v1555 = vld [vmem:[#allocation7 + $0x4] sm:$0xf]
    %v1556 = vld [vmem:[#allocation7 + $0x14] sm:$0xf]
    %v1557 = vld [vmem:[#allocation7 + $0x24] sm:$0xf]
    %v1558 = vld [vmem:[#allocation7 + $0x34] sm:$0xf]
    %v1559 = vld [vmem:[#allocation7 + $0x44] sm:$0xf]
    %v1560 = vld [vmem:[#allocation7 + $0x54] sm:$0xf]
    %v1561 = vld [vmem:[#allocation7 + $0x64] sm:$0xf]
    %v1562 = vld [vmem:[#allocation7 + $0x74] sm:$0xf]
    %v1563 = vld [vmem:[#allocation7 + $0x84] sm:$0xf]
    %v1564 = vld [vmem:[#allocation7 + $0x94] sm:$0xf]
    %v1565 = vld [vmem:[#allocation7 + $0xa4] sm:$0xf]
    %v1566 = vld [vmem:[#allocation7 + $0xb4] sm:$0xf]
    %v1567 = vld [vmem:[#allocation7 + $0xc4] sm:$0xf]
    %v1568 = vld [vmem:[#allocation7 + $0xd4] sm:$0xf]
    %v1569 = vld [vmem:[#allocation7 + $0xe4] sm:$0xf]
    %v1570 = vld [vmem:[#allocation7 + $0xf4] sm:$0xf]
    %v1587 = vunpack.c.l.b16 %v1555
    %v1588 = vunpack.c.l.b16 %v1556
    %v1589 = vunpack.c.l.b16 %v1557
    %v1590 = vunpack.c.l.b16 %v1558
    %v1591 = vunpack.c.l.b16 %v1559
    %v1592 = vunpack.c.l.b16 %v1560
    %v1593 = vunpack.c.l.b16 %v1561
    %v1594 = vunpack.c.l.b16 %v1562
    %v1595 = vunpack.c.l.b16 %v1563
    %v1596 = vunpack.c.l.b16 %v1564
    %v1597 = vunpack.c.l.b16 %v1565
    %v1598 = vunpack.c.l.b16 %v1566
    %v1599 = vunpack.c.l.b16 %v1567
    %v1600 = vunpack.c.l.b16 %v1568
    %v1601 = vunpack.c.l.b16 %v1569
    %v1602 = vunpack.c.l.b16 %v1570
    %v1603 = vpack.c.b16 %v1588, %v1587
    %v1604 = vpack.c.b16 %v1590, %v1589
    %v1605 = vpack.c.b16 %v1592, %v1591
    %v1606 = vpack.c.b16 %v1594, %v1593
    %v1607 = vpack.c.b16 %v1596, %v1595
    %v1608 = vpack.c.b16 %v1598, %v1597
    %v1609 = vpack.c.b16 %v1600, %v1599
    %v1610 = vpack.c.b16 %v1602, %v1601
    %1619 = vmatprep.subr.bf16.mxu0 0
    %1620 = vmatpush1.bf16.msra.mxu0 %v1603
    %1621 = vmatprep.subr.bf16.mxu0 0
    %1622 = vmatpush1.bf16.msra.mxu0 %v1604
    %1623 = vmatprep.subr.bf16.mxu0 0
    %1624 = vmatpush1.bf16.msra.mxu0 %v1605
    %1625 = vmatprep.subr.bf16.mxu0 0
    %1626 = vmatpush1.bf16.msra.mxu0 %v1606
    %1627 = vmatprep.subr.bf16.mxu0 0
    %1628 = vmatpush1.bf16.msra.mxu0 %v1607
    %1629 = vmatprep.subr.bf16.mxu0 0
    %1630 = vmatpush1.bf16.msra.mxu0 %v1608
    %1631 = vmatprep.subr.bf16.mxu0 0
    %1632 = vmatpush1.bf16.msra.mxu0 %v1609
    %1633 = vmatprep.subr.bf16.mxu0 0
    %1634 = vmatpush1.bf16.msra.mxu0 %v1610
    %1635 = vmatprep.subr.bf16.mxu0 0
    %1636 = vmatpush1.bf16.msra.mxu0 0
    %1637 = vmatprep.subr.bf16.mxu0 0
    %1638 = vmatpush1.bf16.msra.mxu0 0
    %1639 = vmatprep.subr.bf16.mxu0 0
    %1640 = vmatpush1.bf16.msra.mxu0 0
    %1641 = vmatprep.subr.bf16.mxu0 0
    %1642 = vmatpush1.bf16.msra.mxu0 0
    %1643 = vmatprep.subr.bf16.mxu0 0
    %1644 = vmatpush1.bf16.msra.mxu0 0
    %1645 = vmatprep.subr.bf16.mxu0 0
    %1646 = vmatpush1.bf16.msra.mxu0 0
    %1647 = vmatprep.subr.bf16.mxu0 0
    %1648 = vmatpush1.bf16.msra.mxu0 0
    %1649 = vmatprep.subr.bf16.mxu0 0
    %1650 = vmatpush1.bf16.msra.mxu0 0
    %1651 = vmatprep.mubr.bf16.mxu0 0
    %1652 = vmatmul.mubr.bf16.gmra.mrb[0].mxu0 %v1436
    %v1653 = vpop.f32.mrb[0].mxu0
    %v1654 = vadd.f32 0.0, %v1653
    %v1655 = vpop.f32.mrb[0].mxu0
    %v1656 = vpop.f32.mrb[0].mxu0
    %v1657 = vpop.f32.mrb[0].mxu0
    %1658 = vdwg.mxu0
    %v1659 = vadd.f32 %v1554, %v1654
    %v1660 = vxor.u32 %v1659, 2147483648
    %v1661 = vmul.f32 %v1660, 1.442695
    %v1662 = vpow.pop %v1661
    %v1663 = vadd.f32 %v1662, 1.0
    %v1664 = vrcp.pop %v1663
    %v1665 = vmul.f32 1.0, %v1664
    %v1666 = vld [vmem:[%s1439 + $0x8] sm:$0xf]
    %v1667 = vunpack.c.l.bf16 %v1666
    %v1668 = vld [vmem:[#allocation7 + $0x8] sm:$0xf]
    %v1669 = vld [vmem:[#allocation7 + $0x18] sm:$0xf]
    %v1670 = vld [vmem:[#allocation7 + $0x28] sm:$0xf]
    %v1671 = vld [vmem:[#allocation7 + $0x38] sm:$0xf]
    %v1672 = vld [vmem:[#allocation7 + $0x48] sm:$0xf]
    %v1673 = vld [vmem:[#allocation7 + $0x58] sm:$0xf]
    %v1674 = vld [vmem:[#allocation7 + $0x68] sm:$0xf]
    %v1675 = vld [vmem:[#allocation7 + $0x78] sm:$0xf]
    %v1676 = vld [vmem:[#allocation7 + $0x88] sm:$0xf]
    %v1677 = vld [vmem:[#allocation7 + $0x98] sm:$0xf]
    %v1678 = vld [vmem:[#allocation7 + $0xa8] sm:$0xf]
    %v1679 = vld [vmem:[#allocation7 + $0xb8] sm:$0xf]
    %v1680 = vld [vmem:[#allocation7 + $0xc8] sm:$0xf]
    %v1681 = vld [vmem:[#allocation7 + $0xd8] sm:$0xf]
    %v1682 = vld [vmem:[#allocation7 + $0xe8] sm:$0xf]
    %v1683 = vld [vmem:[#allocation7 + $0xf8] sm:$0xf]
    %v1700 = vunpack.c.l.b16 %v1668
    %v1701 = vunpack.c.l.b16 %v1669
    %v1702 = vunpack.c.l.b16 %v1670
    %v1703 = vunpack.c.l.b16 %v1671
    %v1704 = vunpack.c.l.b16 %v1672
    %v1705 = vunpack.c.l.b16 %v1673
    %v1706 = vunpack.c.l.b16 %v1674
    %v1707 = vunpack.c.l.b16 %v1675
    %v1708 = vunpack.c.l.b16 %v1676
    %v1709 = vunpack.c.l.b16 %v1677
    %v1710 = vunpack.c.l.b16 %v1678
    %v1711 = vunpack.c.l.b16 %v1679
    %v1712 = vunpack.c.l.b16 %v1680
    %v1713 = vunpack.c.l.b16 %v1681
    %v1714 = vunpack.c.l.b16 %v1682
    %v1715 = vunpack.c.l.b16 %v1683
    %v1716 = vpack.c.b16 %v1701, %v1700
    %v1717 = vpack.c.b16 %v1703, %v1702
    %v1718 = vpack.c.b16 %v1705, %v1704
    %v1719 = vpack.c.b16 %v1707, %v1706
    %v1720 = vpack.c.b16 %v1709, %v1708
    %v1721 = vpack.c.b16 %v1711, %v1710
    %v1722 = vpack.c.b16 %v1713, %v1712
    %v1723 = vpack.c.b16 %v1715, %v1714
    %1732 = vmatprep.subr.bf16.mxu0 0
    %1733 = vmatpush1.bf16.msra.mxu0 %v1716
    %1734 = vmatprep.subr.bf16.mxu0 0
    %1735 = vmatpush1.bf16.msra.mxu0 %v1717
    %1736 = vmatprep.subr.bf16.mxu0 0
    %1737 = vmatpush1.bf16.msra.mxu0 %v1718
    %1738 = vmatprep.subr.bf16.mxu0 0
    %1739 = vmatpush1.bf16.msra.mxu0 %v1719
    %1740 = vmatprep.subr.bf16.mxu0 0
    %1741 = vmatpush1.bf16.msra.mxu0 %v1720
    %1742 = vmatprep.subr.bf16.mxu0 0
    %1743 = vmatpush1.bf16.msra.mxu0 %v1721
    %1744 = vmatprep.subr.bf16.mxu0 0
    %1745 = vmatpush1.bf16.msra.mxu0 %v1722
    %1746 = vmatprep.subr.bf16.mxu0 0
    %1747 = vmatpush1.bf16.msra.mxu0 %v1723
    %1748 = vmatprep.subr.bf16.mxu0 0
    %1749 = vmatpush1.bf16.msra.mxu0 0
    %1750 = vmatprep.subr.bf16.mxu0 0
    %1751 = vmatpush1.bf16.msra.mxu0 0
    %1752 = vmatprep.subr.bf16.mxu0 0
    %1753 = vmatpush1.bf16.msra.mxu0 0
    %1754 = vmatprep.subr.bf16.mxu0 0
    %1755 = vmatpush1.bf16.msra.mxu0 0
    %1756 = vmatprep.subr.bf16.mxu0 0
    %1757 = vmatpush1.bf16.msra.mxu0 0
    %1758 = vmatprep.subr.bf16.mxu0 0
    %1759 = vmatpush1.bf16.msra.mxu0 0
    %1760 = vmatprep.subr.bf16.mxu0 0
    %1761 = vmatpush1.bf16.msra.mxu0 0
    %1762 = vmatprep.subr.bf16.mxu0 0
    %1763 = vmatpush1.bf16.msra.mxu0 0
    %1764 = vmatprep.mubr.bf16.mxu0 0
    %1765 = vmatmul.mubr.bf16.gmra.mrb[0].mxu0 %v1436
    %v1766 = vpop.f32.mrb[0].mxu0
    %v1767 = vadd.f32 0.0, %v1766
    %v1768 = vpop.f32.mrb[0].mxu0
    %v1769 = vpop.f32.mrb[0].mxu0
    %v1770 = vpop.f32.mrb[0].mxu0
    %1771 = vdwg.mxu0
    %v1772 = vadd.f32 %v1667, %v1767
    %v1773 = vtanh.pop %v1772
    %v1774 = vld [vmem:[%s1439 + $0xc] sm:$0xf]
    %v1775 = vunpack.c.l.bf16 %v1774
    %v1776 = vld [vmem:[#allocation7 + $0xc] sm:$0xf]
    %v1777 = vld [vmem:[#allocation7 + $0x1c] sm:$0xf]
    %v1778 = vld [vmem:[#allocation7 + $0x2c] sm:$0xf]
    %v1779 = vld [vmem:[#allocation7 + $0x3c] sm:$0xf]
    %v1780 = vld [vmem:[#allocation7 + $0x4c] sm:$0xf]
    %v1781 = vld [vmem:[#allocation7 + $0x5c] sm:$0xf]
    %v1782 = vld [vmem:[#allocation7 + $0x6c] sm:$0xf]
    %v1783 = vld [vmem:[#allocation7 + $0x7c] sm:$0xf]
    %v1784 = vld [vmem:[#allocation7 + $0x8c] sm:$0xf]
    %v1785 = vld [vmem:[#allocation7 + $0x9c] sm:$0xf]
    %v1786 = vld [vmem:[#allocation7 + $0xac] sm:$0xf]
    %v1787 = vld [vmem:[#allocation7 + $0xbc] sm:$0xf]
    %v1788 = vld [vmem:[#allocation7 + $0xcc] sm:$0xf]
    %v1789 = vld [vmem:[#allocation7 + $0xdc] sm:$0xf]
    %v1790 = vld [vmem:[#allocation7 + $0xec] sm:$0xf]
    %v1791 = vld [vmem:[#allocation7 + $0xfc] sm:$0xf]
    %v1808 = vunpack.c.l.b16 %v1776
    %v1809 = vunpack.c.l.b16 %v1777
    %v1810 = vunpack.c.l.b16 %v1778
    %v1811 = vunpack.c.l.b16 %v1779
    %v1812 = vunpack.c.l.b16 %v1780
    %v1813 = vunpack.c.l.b16 %v1781
    %v1814 = vunpack.c.l.b16 %v1782
    %v1815 = vunpack.c.l.b16 %v1783
    %v1816 = vunpack.c.l.b16 %v1784
    %v1817 = vunpack.c.l.b16 %v1785
    %v1818 = vunpack.c.l.b16 %v1786
    %v1819 = vunpack.c.l.b16 %v1787
    %v1820 = vunpack.c.l.b16 %v1788
    %v1821 = vunpack.c.l.b16 %v1789
    %v1822 = vunpack.c.l.b16 %v1790
    %v1823 = vunpack.c.l.b16 %v1791
    %v1824 = vpack.c.b16 %v1809, %v1808
    %v1825 = vpack.c.b16 %v1811, %v1810
    %v1826 = vpack.c.b16 %v1813, %v1812
    %v1827 = vpack.c.b16 %v1815, %v1814
    %v1828 = vpack.c.b16 %v1817, %v1816
    %v1829 = vpack.c.b16 %v1819, %v1818
    %v1830 = vpack.c.b16 %v1821, %v1820
    %v1831 = vpack.c.b16 %v1823, %v1822
    %1840 = vmatprep.subr.bf16.mxu0 0
    %1841 = vmatpush1.bf16.msra.mxu0 %v1824
    %1842 = vmatprep.subr.bf16.mxu0 0
    %1843 = vmatpush1.bf16.msra.mxu0 %v1825
    %1844 = vmatprep.subr.bf16.mxu0 0
    %1845 = vmatpush1.bf16.msra.mxu0 %v1826
    %1846 = vmatprep.subr.bf16.mxu0 0
    %1847 = vmatpush1.bf16.msra.mxu0 %v1827
    %1848 = vmatprep.subr.bf16.mxu0 0
    %1849 = vmatpush1.bf16.msra.mxu0 %v1828
    %1850 = vmatprep.subr.bf16.mxu0 0
    %1851 = vmatpush1.bf16.msra.mxu0 %v1829
    %1852 = vmatprep.subr.bf16.mxu0 0
    %1853 = vmatpush1.bf16.msra.mxu0 %v1830
    %1854 = vmatprep.subr.bf16.mxu0 0
    %1855 = vmatpush1.bf16.msra.mxu0 %v1831
    %1856 = vmatprep.subr.bf16.mxu0 0
    %1857 = vmatpush1.bf16.msra.mxu0 0
    %1858 = vmatprep.subr.bf16.mxu0 0
    %1859 = vmatpush1.bf16.msra.mxu0 0
    %1860 = vmatprep.subr.bf16.mxu0 0
    %1861 = vmatpush1.bf16.msra.mxu0 0
    %1862 = vmatprep.subr.bf16.mxu0 0
    %1863 = vmatpush1.bf16.msra.mxu0 0
    %1864 = vmatprep.subr.bf16.mxu0 0
    %1865 = vmatpush1.bf16.msra.mxu0 0
    %1866 = vmatprep.subr.bf16.mxu0 0
    %1867 = vmatpush1.bf16.msra.mxu0 0
    %1868 = vmatprep.subr.bf16.mxu0 0
    %1869 = vmatpush1.bf16.msra.mxu0 0
    %1870 = vmatprep.subr.bf16.mxu0 0
    %1871 = vmatpush1.bf16.msra.mxu0 0
    %1872 = vmatprep.mubr.bf16.mxu0 0
    %1873 = vmatmul.mubr.bf16.gmra.mrb[0].mxu0 %v1436
    %v1874 = vpop.f32.mrb[0].mxu0
    %v1875 = vadd.f32 0.0, %v1874
    %v1876 = vpop.f32.mrb[0].mxu0
    %v1877 = vpop.f32.mrb[0].mxu0
    %v1878 = vpop.f32.mrb[0].mxu0
    %1879 = vdwg.mxu0
    %v1880 = vadd.f32 %v1775, %v1875
    %v1881 = vxor.u32 %v1880, 2147483648
    %v1882 = vmul.f32 %v1881, 1.442695
    %v1883 = vpow.pop %v1882
    %v1884 = vadd.f32 %v1883, 1.0
    %v1885 = vrcp.pop %v1884
    %v1886 = vmul.f32 1.0, %v1885
    %v1887 = vmul.f32 %v1665, %v1433
    %v1888 = vmul.f32 %v1552, %v1773
    %v1889 = vadd.f32 %v1887, %v1888
    %v1890 = vtanh.pop %v1889
    %v1891 = vmul.f32 %v1886, %v1890
    %v1892 = vpack.c.bf16 %v1891, %v1891
    %s1893 = scalar_lea.vmem [#allocation10], 12
    %1894 = vst [vmem:[%s1893] sm:$0xf] %v1892
    %s1895 = scalar_lea.vmem [#allocation4], 64
    %v1896 = vld [vmem:[%s1895] sm:$0xf]
    %v1897 = vunpack.c.l.bf16 %v1896
    %v1898 = vld [vmem:[#allocation7] sm:$0xf]
    %v1899 = vld [vmem:[#allocation7 + $0x10] sm:$0xf]
    %v1900 = vld [vmem:[#allocation7 + $0x20] sm:$0xf]
    %v1901 = vld [vmem:[#allocation7 + $0x30] sm:$0xf]
    %v1902 = vld [vmem:[#allocation7 + $0x40] sm:$0xf]
    %v1903 = vld [vmem:[#allocation7 + $0x50] sm:$0xf]
    %v1904 = vld [vmem:[#allocation7 + $0x60] sm:$0xf]
    %v1905 = vld [vmem:[#allocation7 + $0x70] sm:$0xf]
    %v1906 = vld [vmem:[#allocation7 + $0x80] sm:$0xf]
    %v1907 = vld [vmem:[#allocation7 + $0x90] sm:$0xf]
    %v1908 = vld [vmem:[#allocation7 + $0xa0] sm:$0xf]
    %v1909 = vld [vmem:[#allocation7 + $0xb0] sm:$0xf]
    %v1910 = vld [vmem:[#allocation7 + $0xc0] sm:$0xf]
    %v1911 = vld [vmem:[#allocation7 + $0xd0] sm:$0xf]
    %v1912 = vld [vmem:[#allocation7 + $0xe0] sm:$0xf]
    %v1913 = vld [vmem:[#allocation7 + $0xf0] sm:$0xf]
    %v1930 = vunpack.c.l.b16 %v1898
    %v1931 = vunpack.c.l.b16 %v1899
    %v1932 = vunpack.c.l.b16 %v1900
    %v1933 = vunpack.c.l.b16 %v1901
    %v1934 = vunpack.c.l.b16 %v1902
    %v1935 = vunpack.c.l.b16 %v1903
    %v1936 = vunpack.c.l.b16 %v1904
    %v1937 = vunpack.c.l.b16 %v1905
    %v1938 = vunpack.c.l.b16 %v1906
    %v1939 = vunpack.c.l.b16 %v1907
    %v1940 = vunpack.c.l.b16 %v1908
    %v1941 = vunpack.c.l.b16 %v1909
    %v1942 = vunpack.c.l.b16 %v1910
    %v1943 = vunpack.c.l.b16 %v1911
    %v1944 = vunpack.c.l.b16 %v1912
    %v1945 = vunpack.c.l.b16 %v1913
    %v1946 = vpack.c.b16 %v1931, %v1930
    %v1947 = vpack.c.b16 %v1933, %v1932
    %v1948 = vpack.c.b16 %v1935, %v1934
    %v1949 = vpack.c.b16 %v1937, %v1936
    %v1950 = vpack.c.b16 %v1939, %v1938
    %v1951 = vpack.c.b16 %v1941, %v1940
    %v1952 = vpack.c.b16 %v1943, %v1942
    %v1953 = vpack.c.b16 %v1945, %v1944
    %1962 = vmatprep.subr.bf16.mxu0 0
    %1963 = vmatpush1.bf16.msra.mxu0 %v1946
    %1964 = vmatprep.subr.bf16.mxu0 0
    %1965 = vmatpush1.bf16.msra.mxu0 %v1947
    %1966 = vmatprep.subr.bf16.mxu0 0
    %1967 = vmatpush1.bf16.msra.mxu0 %v1948
    %1968 = vmatprep.subr.bf16.mxu0 0
    %1969 = vmatpush1.bf16.msra.mxu0 %v1949
    %1970 = vmatprep.subr.bf16.mxu0 0
    %1971 = vmatpush1.bf16.msra.mxu0 %v1950
    %1972 = vmatprep.subr.bf16.mxu0 0
    %1973 = vmatpush1.bf16.msra.mxu0 %v1951
    %1974 = vmatprep.subr.bf16.mxu0 0
    %1975 = vmatpush1.bf16.msra.mxu0 %v1952
    %1976 = vmatprep.subr.bf16.mxu0 0
    %1977 = vmatpush1.bf16.msra.mxu0 %v1953
    %1978 = vmatprep.subr.bf16.mxu0 0
    %1979 = vmatpush1.bf16.msra.mxu0 0
    %1980 = vmatprep.subr.bf16.mxu0 0
    %1981 = vmatpush1.bf16.msra.mxu0 0
    %1982 = vmatprep.subr.bf16.mxu0 0
    %1983 = vmatpush1.bf16.msra.mxu0 0
    %1984 = vmatprep.subr.bf16.mxu0 0
    %1985 = vmatpush1.bf16.msra.mxu0 0
    %1986 = vmatprep.subr.bf16.mxu0 0
    %1987 = vmatpush1.bf16.msra.mxu0 0
    %1988 = vmatprep.subr.bf16.mxu0 0
    %1989 = vmatpush1.bf16.msra.mxu0 0
    %1990 = vmatprep.subr.bf16.mxu0 0
    %1991 = vmatpush1.bf16.msra.mxu0 0
    %1992 = vmatprep.subr.bf16.mxu0 0
    %1993 = vmatpush1.bf16.msra.mxu0 0
    %1994 = vmatprep.mubr.bf16.mxu0 0
    %1995 = vmatmul.mubr.bf16.gmra.mrb[0].mxu0 %v1892
    %v1996 = vpop.f32.mrb[0].mxu0
    %v1997 = vadd.f32 0.0, %v1996
    %v1998 = vpop.f32.mrb[0].mxu0
    %v1999 = vpop.f32.mrb[0].mxu0
    %v2000 = vpop.f32.mrb[0].mxu0
    %2001 = vdwg.mxu0
    %v2002 = vadd.f32 %v1897, %v1997
    %v2003 = vxor.u32 %v2002, 2147483648
    %v2004 = vmul.f32 %v2003, 1.442695
    %v2005 = vpow.pop %v2004
    %v2006 = vadd.f32 %v2005, 1.0
    %v2007 = vrcp.pop %v2006
    %v2008 = vmul.f32 1.0, %v2007
    %v2009 = vld [vmem:[%s1895 + $0x4] sm:$0xf]
    %v2010 = vunpack.c.l.bf16 %v2009
    %v2011 = vld [vmem:[#allocation7 + $0x4] sm:$0xf]
    %v2012 = vld [vmem:[#allocation7 + $0x14] sm:$0xf]
    %v2013 = vld [vmem:[#allocation7 + $0x24] sm:$0xf]
    %v2014 = vld [vmem:[#allocation7 + $0x34] sm:$0xf]
    %v2015 = vld [vmem:[#allocation7 + $0x44] sm:$0xf]
    %v2016 = vld [vmem:[#allocation7 + $0x54] sm:$0xf]
    %v2017 = vld [vmem:[#allocation7 + $0x64] sm:$0xf]
    %v2018 = vld [vmem:[#allocation7 + $0x74] sm:$0xf]
    %v2019 = vld [vmem:[#allocation7 + $0x84] sm:$0xf]
    %v2020 = vld [vmem:[#allocation7 + $0x94] sm:$0xf]
    %v2021 = vld [vmem:[#allocation7 + $0xa4] sm:$0xf]
    %v2022 = vld [vmem:[#allocation7 + $0xb4] sm:$0xf]
    %v2023 = vld [vmem:[#allocation7 + $0xc4] sm:$0xf]
    %v2024 = vld [vmem:[#allocation7 + $0xd4] sm:$0xf]
    %v2025 = vld [vmem:[#allocation7 + $0xe4] sm:$0xf]
    %v2026 = vld [vmem:[#allocation7 + $0xf4] sm:$0xf]
    %v2043 = vunpack.c.l.b16 %v2011
    %v2044 = vunpack.c.l.b16 %v2012
    %v2045 = vunpack.c.l.b16 %v2013
    %v2046 = vunpack.c.l.b16 %v2014
    %v2047 = vunpack.c.l.b16 %v2015
    %v2048 = vunpack.c.l.b16 %v2016
    %v2049 = vunpack.c.l.b16 %v2017
    %v2050 = vunpack.c.l.b16 %v2018
    %v2051 = vunpack.c.l.b16 %v2019
    %v2052 = vunpack.c.l.b16 %v2020
    %v2053 = vunpack.c.l.b16 %v2021
    %v2054 = vunpack.c.l.b16 %v2022
    %v2055 = vunpack.c.l.b16 %v2023
    %v2056 = vunpack.c.l.b16 %v2024
    %v2057 = vunpack.c.l.b16 %v2025
    %v2058 = vunpack.c.l.b16 %v2026
    %v2059 = vpack.c.b16 %v2044, %v2043
    %v2060 = vpack.c.b16 %v2046, %v2045
    %v2061 = vpack.c.b16 %v2048, %v2047
    %v2062 = vpack.c.b16 %v2050, %v2049
    %v2063 = vpack.c.b16 %v2052, %v2051
    %v2064 = vpack.c.b16 %v2054, %v2053
    %v2065 = vpack.c.b16 %v2056, %v2055
    %v2066 = vpack.c.b16 %v2058, %v2057
    %2075 = vmatprep.subr.bf16.mxu0 0
    %2076 = vmatpush1.bf16.msra.mxu0 %v2059
    %2077 = vmatprep.subr.bf16.mxu0 0
    %2078 = vmatpush1.bf16.msra.mxu0 %v2060
    %2079 = vmatprep.subr.bf16.mxu0 0
    %2080 = vmatpush1.bf16.msra.mxu0 %v2061
    %2081 = vmatprep.subr.bf16.mxu0 0
    %2082 = vmatpush1.bf16.msra.mxu0 %v2062
    %2083 = vmatprep.subr.bf16.mxu0 0
    %2084 = vmatpush1.bf16.msra.mxu0 %v2063
    %2085 = vmatprep.subr.bf16.mxu0 0
    %2086 = vmatpush1.bf16.msra.mxu0 %v2064
    %2087 = vmatprep.subr.bf16.mxu0 0
    %2088 = vmatpush1.bf16.msra.mxu0 %v2065
    %2089 = vmatprep.subr.bf16.mxu0 0
    %2090 = vmatpush1.bf16.msra.mxu0 %v2066
    %2091 = vmatprep.subr.bf16.mxu0 0
    %2092 = vmatpush1.bf16.msra.mxu0 0
    %2093 = vmatprep.subr.bf16.mxu0 0
    %2094 = vmatpush1.bf16.msra.mxu0 0
    %2095 = vmatprep.subr.bf16.mxu0 0
    %2096 = vmatpush1.bf16.msra.mxu0 0
    %2097 = vmatprep.subr.bf16.mxu0 0
    %2098 = vmatpush1.bf16.msra.mxu0 0
    %2099 = vmatprep.subr.bf16.mxu0 0
    %2100 = vmatpush1.bf16.msra.mxu0 0
    %2101 = vmatprep.subr.bf16.mxu0 0
    %2102 = vmatpush1.bf16.msra.mxu0 0
    %2103 = vmatprep.subr.bf16.mxu0 0
    %2104 = vmatpush1.bf16.msra.mxu0 0
    %2105 = vmatprep.subr.bf16.mxu0 0
    %2106 = vmatpush1.bf16.msra.mxu0 0
    %2107 = vmatprep.mubr.bf16.mxu0 0
    %2108 = vmatmul.mubr.bf16.gmra.mrb[0].mxu0 %v1892
    %v2109 = vpop.f32.mrb[0].mxu0
    %v2110 = vadd.f32 0.0, %v2109
    %v2111 = vpop.f32.mrb[0].mxu0
    %v2112 = vpop.f32.mrb[0].mxu0
    %v2113 = vpop.f32.mrb[0].mxu0
    %2114 = vdwg.mxu0
    %v2115 = vadd.f32 %v2010, %v2110
    %v2116 = vxor.u32 %v2115, 2147483648
    %v2117 = vmul.f32 %v2116, 1.442695
    %v2118 = vpow.pop %v2117
    %v2119 = vadd.f32 %v2118, 1.0
    %v2120 = vrcp.pop %v2119
    %v2121 = vmul.f32 1.0, %v2120
    %v2122 = vld [vmem:[%s1895 + $0x8] sm:$0xf]
    %v2123 = vunpack.c.l.bf16 %v2122
    %v2124 = vld [vmem:[#allocation7 + $0x8] sm:$0xf]
    %v2125 = vld [vmem:[#allocation7 + $0x18] sm:$0xf]
    %v2126 = vld [vmem:[#allocation7 + $0x28] sm:$0xf]
    %v2127 = vld [vmem:[#allocation7 + $0x38] sm:$0xf]
    %v2128 = vld [vmem:[#allocation7 + $0x48] sm:$0xf]
    %v2129 = vld [vmem:[#allocation7 + $0x58] sm:$0xf]
    %v2130 = vld [vmem:[#allocation7 + $0x68] sm:$0xf]
    %v2131 = vld [vmem:[#allocation7 + $0x78] sm:$0xf]
    %v2132 = vld [vmem:[#allocation7 + $0x88] sm:$0xf]
    %v2133 = vld [vmem:[#allocation7 + $0x98] sm:$0xf]
    %v2134 = vld [vmem:[#allocation7 + $0xa8] sm:$0xf]
    %v2135 = vld [vmem:[#allocation7 + $0xb8] sm:$0xf]
    %v2136 = vld [vmem:[#allocation7 + $0xc8] sm:$0xf]
    %v2137 = vld [vmem:[#allocation7 + $0xd8] sm:$0xf]
    %v2138 = vld [vmem:[#allocation7 + $0xe8] sm:$0xf]
    %v2139 = vld [vmem:[#allocation7 + $0xf8] sm:$0xf]
    %v2156 = vunpack.c.l.b16 %v2124
    %v2157 = vunpack.c.l.b16 %v2125
    %v2158 = vunpack.c.l.b16 %v2126
    %v2159 = vunpack.c.l.b16 %v2127
    %v2160 = vunpack.c.l.b16 %v2128
    %v2161 = vunpack.c.l.b16 %v2129
    %v2162 = vunpack.c.l.b16 %v2130
    %v2163 = vunpack.c.l.b16 %v2131
    %v2164 = vunpack.c.l.b16 %v2132
    %v2165 = vunpack.c.l.b16 %v2133
    %v2166 = vunpack.c.l.b16 %v2134
    %v2167 = vunpack.c.l.b16 %v2135
    %v2168 = vunpack.c.l.b16 %v2136
    %v2169 = vunpack.c.l.b16 %v2137
    %v2170 = vunpack.c.l.b16 %v2138
    %v2171 = vunpack.c.l.b16 %v2139
    %v2172 = vpack.c.b16 %v2157, %v2156
    %v2173 = vpack.c.b16 %v2159, %v2158
    %v2174 = vpack.c.b16 %v2161, %v2160
    %v2175 = vpack.c.b16 %v2163, %v2162
    %v2176 = vpack.c.b16 %v2165, %v2164
    %v2177 = vpack.c.b16 %v2167, %v2166
    %v2178 = vpack.c.b16 %v2169, %v2168
    %v2179 = vpack.c.b16 %v2171, %v2170
    %2188 = vmatprep.subr.bf16.mxu0 0
    %2189 = vmatpush1.bf16.msra.mxu0 %v2172
    %2190 = vmatprep.subr.bf16.mxu0 0
    %2191 = vmatpush1.bf16.msra.mxu0 %v2173
    %2192 = vmatprep.subr.bf16.mxu0 0
    %2193 = vmatpush1.bf16.msra.mxu0 %v2174
    %2194 = vmatprep.subr.bf16.mxu0 0
    %2195 = vmatpush1.bf16.msra.mxu0 %v2175
    %2196 = vmatprep.subr.bf16.mxu0 0
    %2197 = vmatpush1.bf16.msra.mxu0 %v2176
    %2198 = vmatprep.subr.bf16.mxu0 0
    %2199 = vmatpush1.bf16.msra.mxu0 %v2177
    %2200 = vmatprep.subr.bf16.mxu0 0
    %2201 = vmatpush1.bf16.msra.mxu0 %v2178
    %2202 = vmatprep.subr.bf16.mxu0 0
    %2203 = vmatpush1.bf16.msra.mxu0 %v2179
    %2204 = vmatprep.subr.bf16.mxu0 0
    %2205 = vmatpush1.bf16.msra.mxu0 0
    %2206 = vmatprep.subr.bf16.mxu0 0
    %2207 = vmatpush1.bf16.msra.mxu0 0
    %2208 = vmatprep.subr.bf16.mxu0 0
    %2209 = vmatpush1.bf16.msra.mxu0 0
    %2210 = vmatprep.subr.bf16.mxu0 0
    %2211 = vmatpush1.bf16.msra.mxu0 0
    %2212 = vmatprep.subr.bf16.mxu0 0
    %2213 = vmatpush1.bf16.msra.mxu0 0
    %2214 = vmatprep.subr.bf16.mxu0 0
    %2215 = vmatpush1.bf16.msra.mxu0 0
    %2216 = vmatprep.subr.bf16.mxu0 0
    %2217 = vmatpush1.bf16.msra.mxu0 0
    %2218 = vmatprep.subr.bf16.mxu0 0
    %2219 = vmatpush1.bf16.msra.mxu0 0
    %2220 = vmatprep.mubr.bf16.mxu0 0
    %2221 = vmatmul.mubr.bf16.gmra.mrb[0].mxu0 %v1892
    %v2222 = vpop.f32.mrb[0].mxu0
    %v2223 = vadd.f32 0.0, %v2222
    %v2224 = vpop.f32.mrb[0].mxu0
    %v2225 = vpop.f32.mrb[0].mxu0
    %v2226 = vpop.f32.mrb[0].mxu0
    %2227 = vdwg.mxu0
    %v2228 = vadd.f32 %v2123, %v2223
    %v2229 = vtanh.pop %v2228
    %v2230 = vld [vmem:[%s1895 + $0xc] sm:$0xf]
    %v2231 = vunpack.c.l.bf16 %v2230
    %v2232 = vld [vmem:[#allocation7 + $0xc] sm:$0xf]
    %v2233 = vld [vmem:[#allocation7 + $0x1c] sm:$0xf]
    %v2234 = vld [vmem:[#allocation7 + $0x2c] sm:$0xf]
    %v2235 = vld [vmem:[#allocation7 + $0x3c] sm:$0xf]
    %v2236 = vld [vmem:[#allocation7 + $0x4c] sm:$0xf]
    %v2237 = vld [vmem:[#allocation7 + $0x5c] sm:$0xf]
    %v2238 = vld [vmem:[#allocation7 + $0x6c] sm:$0xf]
    %v2239 = vld [vmem:[#allocation7 + $0x7c] sm:$0xf]
    %v2240 = vld [vmem:[#allocation7 + $0x8c] sm:$0xf]
    %v2241 = vld [vmem:[#allocation7 + $0x9c] sm:$0xf]
    %v2242 = vld [vmem:[#allocation7 + $0xac] sm:$0xf]
    %v2243 = vld [vmem:[#allocation7 + $0xbc] sm:$0xf]
    %v2244 = vld [vmem:[#allocation7 + $0xcc] sm:$0xf]
    %v2245 = vld [vmem:[#allocation7 + $0xdc] sm:$0xf]
    %v2246 = vld [vmem:[#allocation7 + $0xec] sm:$0xf]
    %v2247 = vld [vmem:[#allocation7 + $0xfc] sm:$0xf]
    %v2264 = vunpack.c.l.b16 %v2232
    %v2265 = vunpack.c.l.b16 %v2233
    %v2266 = vunpack.c.l.b16 %v2234
    %v2267 = vunpack.c.l.b16 %v2235
    %v2268 = vunpack.c.l.b16 %v2236
    %v2269 = vunpack.c.l.b16 %v2237
    %v2270 = vunpack.c.l.b16 %v2238
    %v2271 = vunpack.c.l.b16 %v2239
    %v2272 = vunpack.c.l.b16 %v2240
    %v2273 = vunpack.c.l.b16 %v2241
    %v2274 = vunpack.c.l.b16 %v2242
    %v2275 = vunpack.c.l.b16 %v2243
    %v2276 = vunpack.c.l.b16 %v2244
    %v2277 = vunpack.c.l.b16 %v2245
    %v2278 = vunpack.c.l.b16 %v2246
    %v2279 = vunpack.c.l.b16 %v2247
    %v2280 = vpack.c.b16 %v2265, %v2264
    %v2281 = vpack.c.b16 %v2267, %v2266
    %v2282 = vpack.c.b16 %v2269, %v2268
    %v2283 = vpack.c.b16 %v2271, %v2270
    %v2284 = vpack.c.b16 %v2273, %v2272
    %v2285 = vpack.c.b16 %v2275, %v2274
    %v2286 = vpack.c.b16 %v2277, %v2276
    %v2287 = vpack.c.b16 %v2279, %v2278
    %2296 = vmatprep.subr.bf16.mxu0 0
    %2297 = vmatpush1.bf16.msra.mxu0 %v2280
    %2298 = vmatprep.subr.bf16.mxu0 0
    %2299 = vmatpush1.bf16.msra.mxu0 %v2281
    %2300 = vmatprep.subr.bf16.mxu0 0
    %2301 = vmatpush1.bf16.msra.mxu0 %v2282
    %2302 = vmatprep.subr.bf16.mxu0 0
    %2303 = vmatpush1.bf16.msra.mxu0 %v2283
    %2304 = vmatprep.subr.bf16.mxu0 0
    %2305 = vmatpush1.bf16.msra.mxu0 %v2284
    %2306 = vmatprep.subr.bf16.mxu0 0
    %2307 = vmatpush1.bf16.msra.mxu0 %v2285
    %2308 = vmatprep.subr.bf16.mxu0 0
    %2309 = vmatpush1.bf16.msra.mxu0 %v2286
    %2310 = vmatprep.subr.bf16.mxu0 0
    %2311 = vmatpush1.bf16.msra.mxu0 %v2287
    %2312 = vmatprep.subr.bf16.mxu0 0
    %2313 = vmatpush1.bf16.msra.mxu0 0
    %2314 = vmatprep.subr.bf16.mxu0 0
    %2315 = vmatpush1.bf16.msra.mxu0 0
    %2316 = vmatprep.subr.bf16.mxu0 0
    %2317 = vmatpush1.bf16.msra.mxu0 0
    %2318 = vmatprep.subr.bf16.mxu0 0
    %2319 = vmatpush1.bf16.msra.mxu0 0
    %2320 = vmatprep.subr.bf16.mxu0 0
    %2321 = vmatpush1.bf16.msra.mxu0 0
    %2322 = vmatprep.subr.bf16.mxu0 0
    %2323 = vmatpush1.bf16.msra.mxu0 0
    %2324 = vmatprep.subr.bf16.mxu0 0
    %2325 = vmatpush1.bf16.msra.mxu0 0
    %2326 = vmatprep.subr.bf16.mxu0 0
    %2327 = vmatpush1.bf16.msra.mxu0 0
    %2328 = vmatprep.mubr.bf16.mxu0 0
    %2329 = vmatmul.mubr.bf16.gmra.mrb[0].mxu0 %v1892
    %v2330 = vpop.f32.mrb[0].mxu0
    %v2331 = vadd.f32 0.0, %v2330
    %v2332 = vpop.f32.mrb[0].mxu0
    %v2333 = vpop.f32.mrb[0].mxu0
    %v2334 = vpop.f32.mrb[0].mxu0
    %2335 = vdwg.mxu0
    %v2336 = vadd.f32 %v2231, %v2331
    %v2337 = vxor.u32 %v2336, 2147483648
    %v2338 = vmul.f32 %v2337, 1.442695
    %v2339 = vpow.pop %v2338
    %v2340 = vadd.f32 %v2339, 1.0
    %v2341 = vrcp.pop %v2340
    %v2342 = vmul.f32 1.0, %v2341
    %v2343 = vmul.f32 %v2121, %v1889
    %v2344 = vmul.f32 %v2008, %v2229
    %v2345 = vadd.f32 %v2343, %v2344
    %v2346 = vtanh.pop %v2345
    %v2347 = vmul.f32 %v2342, %v2346
    %v2348 = vpack.c.bf16 %v2347, %v2347
    %s2349 = scalar_lea.vmem [#allocation10], 16
    %2350 = vst [vmem:[%s2349] sm:$0xf] %v2348
    %s2351 = scalar_lea.vmem [#allocation4], 80
    %v2352 = vld [vmem:[%s2351] sm:$0xf]
    %v2353 = vunpack.c.l.bf16 %v2352
    %v2354 = vld [vmem:[#allocation7] sm:$0xf]
    %v2355 = vld [vmem:[#allocation7 + $0x10] sm:$0xf]
    %v2356 = vld [vmem:[#allocation7 + $0x20] sm:$0xf]
    %v2357 = vld [vmem:[#allocation7 + $0x30] sm:$0xf]
    %v2358 = vld [vmem:[#allocation7 + $0x40] sm:$0xf]
    %v2359 = vld [vmem:[#allocation7 + $0x50] sm:$0xf]
    %v2360 = vld [vmem:[#allocation7 + $0x60] sm:$0xf]
    %v2361 = vld [vmem:[#allocation7 + $0x70] sm:$0xf]
    %v2362 = vld [vmem:[#allocation7 + $0x80] sm:$0xf]
    %v2363 = vld [vmem:[#allocation7 + $0x90] sm:$0xf]
    %v2364 = vld [vmem:[#allocation7 + $0xa0] sm:$0xf]
    %v2365 = vld [vmem:[#allocation7 + $0xb0] sm:$0xf]
    %v2366 = vld [vmem:[#allocation7 + $0xc0] sm:$0xf]
    %v2367 = vld [vmem:[#allocation7 + $0xd0] sm:$0xf]
    %v2368 = vld [vmem:[#allocation7 + $0xe0] sm:$0xf]
    %v2369 = vld [vmem:[#allocation7 + $0xf0] sm:$0xf]
    %v2386 = vunpack.c.l.b16 %v2354
    %v2387 = vunpack.c.l.b16 %v2355
    %v2388 = vunpack.c.l.b16 %v2356
    %v2389 = vunpack.c.l.b16 %v2357
    %v2390 = vunpack.c.l.b16 %v2358
    %v2391 = vunpack.c.l.b16 %v2359
    %v2392 = vunpack.c.l.b16 %v2360
    %v2393 = vunpack.c.l.b16 %v2361
    %v2394 = vunpack.c.l.b16 %v2362
    %v2395 = vunpack.c.l.b16 %v2363
    %v2396 = vunpack.c.l.b16 %v2364
    %v2397 = vunpack.c.l.b16 %v2365
    %v2398 = vunpack.c.l.b16 %v2366
    %v2399 = vunpack.c.l.b16 %v2367
    %v2400 = vunpack.c.l.b16 %v2368
    %v2401 = vunpack.c.l.b16 %v2369
    %v2402 = vpack.c.b16 %v2387, %v2386
    %v2403 = vpack.c.b16 %v2389, %v2388
    %v2404 = vpack.c.b16 %v2391, %v2390
    %v2405 = vpack.c.b16 %v2393, %v2392
    %v2406 = vpack.c.b16 %v2395, %v2394
    %v2407 = vpack.c.b16 %v2397, %v2396
    %v2408 = vpack.c.b16 %v2399, %v2398
    %v2409 = vpack.c.b16 %v2401, %v2400
    %2418 = vmatprep.subr.bf16.mxu0 0
    %2419 = vmatpush1.bf16.msra.mxu0 %v2402
    %2420 = vmatprep.subr.bf16.mxu0 0
    %2421 = vmatpush1.bf16.msra.mxu0 %v2403
    %2422 = vmatprep.subr.bf16.mxu0 0
    %2423 = vmatpush1.bf16.msra.mxu0 %v2404
    %2424 = vmatprep.subr.bf16.mxu0 0
    %2425 = vmatpush1.bf16.msra.mxu0 %v2405
    %2426 = vmatprep.subr.bf16.mxu0 0
    %2427 = vmatpush1.bf16.msra.mxu0 %v2406
    %2428 = vmatprep.subr.bf16.mxu0 0
    %2429 = vmatpush1.bf16.msra.mxu0 %v2407
    %2430 = vmatprep.subr.bf16.mxu0 0
    %2431 = vmatpush1.bf16.msra.mxu0 %v2408
    %2432 = vmatprep.subr.bf16.mxu0 0
    %2433 = vmatpush1.bf16.msra.mxu0 %v2409
    %2434 = vmatprep.subr.bf16.mxu0 0
    %2435 = vmatpush1.bf16.msra.mxu0 0
    %2436 = vmatprep.subr.bf16.mxu0 0
    %2437 = vmatpush1.bf16.msra.mxu0 0
    %2438 = vmatprep.subr.bf16.mxu0 0
    %2439 = vmatpush1.bf16.msra.mxu0 0
    %2440 = vmatprep.subr.bf16.mxu0 0
    %2441 = vmatpush1.bf16.msra.mxu0 0
    %2442 = vmatprep.subr.bf16.mxu0 0
    %2443 = vmatpush1.bf16.msra.mxu0 0
    %2444 = vmatprep.subr.bf16.mxu0 0
    %2445 = vmatpush1.bf16.msra.mxu0 0
    %2446 = vmatprep.subr.bf16.mxu0 0
    %2447 = vmatpush1.bf16.msra.mxu0 0
    %2448 = vmatprep.subr.bf16.mxu0 0
    %2449 = vmatpush1.bf16.msra.mxu0 0
    %2450 = vmatprep.mubr.bf16.mxu0 0
    %2451 = vmatmul.mubr.bf16.gmra.mrb[0].mxu0 %v2348
    %v2452 = vpop.f32.mrb[0].mxu0
    %v2453 = vadd.f32 0.0, %v2452
    %v2454 = vpop.f32.mrb[0].mxu0
    %v2455 = vpop.f32.mrb[0].mxu0
    %v2456 = vpop.f32.mrb[0].mxu0
    %2457 = vdwg.mxu0
    %v2458 = vadd.f32 %v2353, %v2453
    %v2459 = vxor.u32 %v2458, 2147483648
    %v2460 = vmul.f32 %v2459, 1.442695
    %v2461 = vpow.pop %v2460
    %v2462 = vadd.f32 %v2461, 1.0
    %v2463 = vrcp.pop %v2462
    %v2464 = vmul.f32 1.0, %v2463
    %v2465 = vld [vmem:[%s2351 + $0x4] sm:$0xf]
    %v2466 = vunpack.c.l.bf16 %v2465
    %v2467 = vld [vmem:[#allocation7 + $0x4] sm:$0xf]
    %v2468 = vld [vmem:[#allocation7 + $0x14] sm:$0xf]
    %v2469 = vld [vmem:[#allocation7 + $0x24] sm:$0xf]
    %v2470 = vld [vmem:[#allocation7 + $0x34] sm:$0xf]
    %v2471 = vld [vmem:[#allocation7 + $0x44] sm:$0xf]
    %v2472 = vld [vmem:[#allocation7 + $0x54] sm:$0xf]
    %v2473 = vld [vmem:[#allocation7 + $0x64] sm:$0xf]
    %v2474 = vld [vmem:[#allocation7 + $0x74] sm:$0xf]
    %v2475 = vld [vmem:[#allocation7 + $0x84] sm:$0xf]
    %v2476 = vld [vmem:[#allocation7 + $0x94] sm:$0xf]
    %v2477 = vld [vmem:[#allocation7 + $0xa4] sm:$0xf]
    %v2478 = vld [vmem:[#allocation7 + $0xb4] sm:$0xf]
    %v2479 = vld [vmem:[#allocation7 + $0xc4] sm:$0xf]
    %v2480 = vld [vmem:[#allocation7 + $0xd4] sm:$0xf]
    %v2481 = vld [vmem:[#allocation7 + $0xe4] sm:$0xf]
    %v2482 = vld [vmem:[#allocation7 + $0xf4] sm:$0xf]
    %v2499 = vunpack.c.l.b16 %v2467
    %v2500 = vunpack.c.l.b16 %v2468
    %v2501 = vunpack.c.l.b16 %v2469
    %v2502 = vunpack.c.l.b16 %v2470
    %v2503 = vunpack.c.l.b16 %v2471
    %v2504 = vunpack.c.l.b16 %v2472
    %v2505 = vunpack.c.l.b16 %v2473
    %v2506 = vunpack.c.l.b16 %v2474
    %v2507 = vunpack.c.l.b16 %v2475
    %v2508 = vunpack.c.l.b16 %v2476
    %v2509 = vunpack.c.l.b16 %v2477
    %v2510 = vunpack.c.l.b16 %v2478
    %v2511 = vunpack.c.l.b16 %v2479
    %v2512 = vunpack.c.l.b16 %v2480
    %v2513 = vunpack.c.l.b16 %v2481
    %v2514 = vunpack.c.l.b16 %v2482
    %v2515 = vpack.c.b16 %v2500, %v2499
    %v2516 = vpack.c.b16 %v2502, %v2501
    %v2517 = vpack.c.b16 %v2504, %v2503
    %v2518 = vpack.c.b16 %v2506, %v2505
    %v2519 = vpack.c.b16 %v2508, %v2507
    %v2520 = vpack.c.b16 %v2510, %v2509
    %v2521 = vpack.c.b16 %v2512, %v2511
    %v2522 = vpack.c.b16 %v2514, %v2513
    %2531 = vmatprep.subr.bf16.mxu0 0
    %2532 = vmatpush1.bf16.msra.mxu0 %v2515
    %2533 = vmatprep.subr.bf16.mxu0 0
    %2534 = vmatpush1.bf16.msra.mxu0 %v2516
    %2535 = vmatprep.subr.bf16.mxu0 0
    %2536 = vmatpush1.bf16.msra.mxu0 %v2517
    %2537 = vmatprep.subr.bf16.mxu0 0
    %2538 = vmatpush1.bf16.msra.mxu0 %v2518
    %2539 = vmatprep.subr.bf16.mxu0 0
    %2540 = vmatpush1.bf16.msra.mxu0 %v2519
    %2541 = vmatprep.subr.bf16.mxu0 0
    %2542 = vmatpush1.bf16.msra.mxu0 %v2520
    %2543 = vmatprep.subr.bf16.mxu0 0
    %2544 = vmatpush1.bf16.msra.mxu0 %v2521
    %2545 = vmatprep.subr.bf16.mxu0 0
    %2546 = vmatpush1.bf16.msra.mxu0 %v2522
    %2547 = vmatprep.subr.bf16.mxu0 0
    %2548 = vmatpush1.bf16.msra.mxu0 0
    %2549 = vmatprep.subr.bf16.mxu0 0
    %2550 = vmatpush1.bf16.msra.mxu0 0
    %2551 = vmatprep.subr.bf16.mxu0 0
    %2552 = vmatpush1.bf16.msra.mxu0 0
    %2553 = vmatprep.subr.bf16.mxu0 0
    %2554 = vmatpush1.bf16.msra.mxu0 0
    %2555 = vmatprep.subr.bf16.mxu0 0
    %2556 = vmatpush1.bf16.msra.mxu0 0
    %2557 = vmatprep.subr.bf16.mxu0 0
    %2558 = vmatpush1.bf16.msra.mxu0 0
    %2559 = vmatprep.subr.bf16.mxu0 0
    %2560 = vmatpush1.bf16.msra.mxu0 0
    %2561 = vmatprep.subr.bf16.mxu0 0
    %2562 = vmatpush1.bf16.msra.mxu0 0
    %2563 = vmatprep.mubr.bf16.mxu0 0
    %2564 = vmatmul.mubr.bf16.gmra.mrb[0].mxu0 %v2348
    %v2565 = vpop.f32.mrb[0].mxu0
    %v2566 = vadd.f32 0.0, %v2565
    %v2567 = vpop.f32.mrb[0].mxu0
    %v2568 = vpop.f32.mrb[0].mxu0
    %v2569 = vpop.f32.mrb[0].mxu0
    %2570 = vdwg.mxu0
    %v2571 = vadd.f32 %v2466, %v2566
    %v2572 = vxor.u32 %v2571, 2147483648
    %v2573 = vmul.f32 %v2572, 1.442695
    %v2574 = vpow.pop %v2573
    %v2575 = vadd.f32 %v2574, 1.0
    %v2576 = vrcp.pop %v2575
    %v2577 = vmul.f32 1.0, %v2576
    %v2578 = vld [vmem:[%s2351 + $0x8] sm:$0xf]
    %v2579 = vunpack.c.l.bf16 %v2578
    %v2580 = vld [vmem:[#allocation7 + $0x8] sm:$0xf]
    %v2581 = vld [vmem:[#allocation7 + $0x18] sm:$0xf]
    %v2582 = vld [vmem:[#allocation7 + $0x28] sm:$0xf]
    %v2583 = vld [vmem:[#allocation7 + $0x38] sm:$0xf]
    %v2584 = vld [vmem:[#allocation7 + $0x48] sm:$0xf]
    %v2585 = vld [vmem:[#allocation7 + $0x58] sm:$0xf]
    %v2586 = vld [vmem:[#allocation7 + $0x68] sm:$0xf]
    %v2587 = vld [vmem:[#allocation7 + $0x78] sm:$0xf]
    %v2588 = vld [vmem:[#allocation7 + $0x88] sm:$0xf]
    %v2589 = vld [vmem:[#allocation7 + $0x98] sm:$0xf]
    %v2590 = vld [vmem:[#allocation7 + $0xa8] sm:$0xf]
    %v2591 = vld [vmem:[#allocation7 + $0xb8] sm:$0xf]
    %v2592 = vld [vmem:[#allocation7 + $0xc8] sm:$0xf]
    %v2593 = vld [vmem:[#allocation7 + $0xd8] sm:$0xf]
    %v2594 = vld [vmem:[#allocation7 + $0xe8] sm:$0xf]
    %v2595 = vld [vmem:[#allocation7 + $0xf8] sm:$0xf]
    %v2612 = vunpack.c.l.b16 %v2580
    %v2613 = vunpack.c.l.b16 %v2581
    %v2614 = vunpack.c.l.b16 %v2582
    %v2615 = vunpack.c.l.b16 %v2583
    %v2616 = vunpack.c.l.b16 %v2584
    %v2617 = vunpack.c.l.b16 %v2585
    %v2618 = vunpack.c.l.b16 %v2586
    %v2619 = vunpack.c.l.b16 %v2587
    %v2620 = vunpack.c.l.b16 %v2588
    %v2621 = vunpack.c.l.b16 %v2589
    %v2622 = vunpack.c.l.b16 %v2590
    %v2623 = vunpack.c.l.b16 %v2591
    %v2624 = vunpack.c.l.b16 %v2592
    %v2625 = vunpack.c.l.b16 %v2593
    %v2626 = vunpack.c.l.b16 %v2594
    %v2627 = vunpack.c.l.b16 %v2595
    %v2628 = vpack.c.b16 %v2613, %v2612
    %v2629 = vpack.c.b16 %v2615, %v2614
    %v2630 = vpack.c.b16 %v2617, %v2616
    %v2631 = vpack.c.b16 %v2619, %v2618
    %v2632 = vpack.c.b16 %v2621, %v2620
    %v2633 = vpack.c.b16 %v2623, %v2622
    %v2634 = vpack.c.b16 %v2625, %v2624
    %v2635 = vpack.c.b16 %v2627, %v2626
    %2644 = vmatprep.subr.bf16.mxu0 0
    %2645 = vmatpush1.bf16.msra.mxu0 %v2628
    %2646 = vmatprep.subr.bf16.mxu0 0
    %2647 = vmatpush1.bf16.msra.mxu0 %v2629
    %2648 = vmatprep.subr.bf16.mxu0 0
    %2649 = vmatpush1.bf16.msra.mxu0 %v2630
    %2650 = vmatprep.subr.bf16.mxu0 0
    %2651 = vmatpush1.bf16.msra.mxu0 %v2631
    %2652 = vmatprep.subr.bf16.mxu0 0
    %2653 = vmatpush1.bf16.msra.mxu0 %v2632
    %2654 = vmatprep.subr.bf16.mxu0 0
    %2655 = vmatpush1.bf16.msra.mxu0 %v2633
    %2656 = vmatprep.subr.bf16.mxu0 0
    %2657 = vmatpush1.bf16.msra.mxu0 %v2634
    %2658 = vmatprep.subr.bf16.mxu0 0
    %2659 = vmatpush1.bf16.msra.mxu0 %v2635
    %2660 = vmatprep.subr.bf16.mxu0 0
    %2661 = vmatpush1.bf16.msra.mxu0 0
    %2662 = vmatprep.subr.bf16.mxu0 0
    %2663 = vmatpush1.bf16.msra.mxu0 0
    %2664 = vmatprep.subr.bf16.mxu0 0
    %2665 = vmatpush1.bf16.msra.mxu0 0
    %2666 = vmatprep.subr.bf16.mxu0 0
    %2667 = vmatpush1.bf16.msra.mxu0 0
    %2668 = vmatprep.subr.bf16.mxu0 0
    %2669 = vmatpush1.bf16.msra.mxu0 0
    %2670 = vmatprep.subr.bf16.mxu0 0
    %2671 = vmatpush1.bf16.msra.mxu0 0
    %2672 = vmatprep.subr.bf16.mxu0 0
    %2673 = vmatpush1.bf16.msra.mxu0 0
    %2674 = vmatprep.subr.bf16.mxu0 0
    %2675 = vmatpush1.bf16.msra.mxu0 0
    %2676 = vmatprep.mubr.bf16.mxu0 0
    %2677 = vmatmul.mubr.bf16.gmra.mrb[0].mxu0 %v2348
    %v2678 = vpop.f32.mrb[0].mxu0
    %v2679 = vadd.f32 0.0, %v2678
    %v2680 = vpop.f32.mrb[0].mxu0
    %v2681 = vpop.f32.mrb[0].mxu0
    %v2682 = vpop.f32.mrb[0].mxu0
    %2683 = vdwg.mxu0
    %v2684 = vadd.f32 %v2579, %v2679
    %v2685 = vtanh.pop %v2684
    %v2686 = vld [vmem:[%s2351 + $0xc] sm:$0xf]
    %v2687 = vunpack.c.l.bf16 %v2686
    %v2688 = vld [vmem:[#allocation7 + $0xc] sm:$0xf]
    %v2689 = vld [vmem:[#allocation7 + $0x1c] sm:$0xf]
    %v2690 = vld [vmem:[#allocation7 + $0x2c] sm:$0xf]
    %v2691 = vld [vmem:[#allocation7 + $0x3c] sm:$0xf]
    %v2692 = vld [vmem:[#allocation7 + $0x4c] sm:$0xf]
    %v2693 = vld [vmem:[#allocation7 + $0x5c] sm:$0xf]
    %v2694 = vld [vmem:[#allocation7 + $0x6c] sm:$0xf]
    %v2695 = vld [vmem:[#allocation7 + $0x7c] sm:$0xf]
    %v2696 = vld [vmem:[#allocation7 + $0x8c] sm:$0xf]
    %v2697 = vld [vmem:[#allocation7 + $0x9c] sm:$0xf]
    %v2698 = vld [vmem:[#allocation7 + $0xac] sm:$0xf]
    %v2699 = vld [vmem:[#allocation7 + $0xbc] sm:$0xf]
    %v2700 = vld [vmem:[#allocation7 + $0xcc] sm:$0xf]
    %v2701 = vld [vmem:[#allocation7 + $0xdc] sm:$0xf]
    %v2702 = vld [vmem:[#allocation7 + $0xec] sm:$0xf]
    %v2703 = vld [vmem:[#allocation7 + $0xfc] sm:$0xf]
    %v2720 = vunpack.c.l.b16 %v2688
    %v2721 = vunpack.c.l.b16 %v2689
    %v2722 = vunpack.c.l.b16 %v2690
    %v2723 = vunpack.c.l.b16 %v2691
    %v2724 = vunpack.c.l.b16 %v2692
    %v2725 = vunpack.c.l.b16 %v2693
    %v2726 = vunpack.c.l.b16 %v2694
    %v2727 = vunpack.c.l.b16 %v2695
    %v2728 = vunpack.c.l.b16 %v2696
    %v2729 = vunpack.c.l.b16 %v2697
    %v2730 = vunpack.c.l.b16 %v2698
    %v2731 = vunpack.c.l.b16 %v2699
    %v2732 = vunpack.c.l.b16 %v2700
    %v2733 = vunpack.c.l.b16 %v2701
    %v2734 = vunpack.c.l.b16 %v2702
    %v2735 = vunpack.c.l.b16 %v2703
    %v2736 = vpack.c.b16 %v2721, %v2720
    %v2737 = vpack.c.b16 %v2723, %v2722
    %v2738 = vpack.c.b16 %v2725, %v2724
    %v2739 = vpack.c.b16 %v2727, %v2726
    %v2740 = vpack.c.b16 %v2729, %v2728
    %v2741 = vpack.c.b16 %v2731, %v2730
    %v2742 = vpack.c.b16 %v2733, %v2732
    %v2743 = vpack.c.b16 %v2735, %v2734
    %2752 = vmatprep.subr.bf16.mxu0 0
    %2753 = vmatpush1.bf16.msra.mxu0 %v2736
    %2754 = vmatprep.subr.bf16.mxu0 0
    %2755 = vmatpush1.bf16.msra.mxu0 %v2737
    %2756 = vmatprep.subr.bf16.mxu0 0
    %2757 = vmatpush1.bf16.msra.mxu0 %v2738
    %2758 = vmatprep.subr.bf16.mxu0 0
    %2759 = vmatpush1.bf16.msra.mxu0 %v2739
    %2760 = vmatprep.subr.bf16.mxu0 0
    %2761 = vmatpush1.bf16.msra.mxu0 %v2740
    %2762 = vmatprep.subr.bf16.mxu0 0
    %2763 = vmatpush1.bf16.msra.mxu0 %v2741
    %2764 = vmatprep.subr.bf16.mxu0 0
    %2765 = vmatpush1.bf16.msra.mxu0 %v2742
    %2766 = vmatprep.subr.bf16.mxu0 0
    %2767 = vmatpush1.bf16.msra.mxu0 %v2743
    %2768 = vmatprep.subr.bf16.mxu0 0
    %2769 = vmatpush1.bf16.msra.mxu0 0
    %2770 = vmatprep.subr.bf16.mxu0 0
    %2771 = vmatpush1.bf16.msra.mxu0 0
    %2772 = vmatprep.subr.bf16.mxu0 0
    %2773 = vmatpush1.bf16.msra.mxu0 0
    %2774 = vmatprep.subr.bf16.mxu0 0
    %2775 = vmatpush1.bf16.msra.mxu0 0
    %2776 = vmatprep.subr.bf16.mxu0 0
    %2777 = vmatpush1.bf16.msra.mxu0 0
    %2778 = vmatprep.subr.bf16.mxu0 0
    %2779 = vmatpush1.bf16.msra.mxu0 0
    %2780 = vmatprep.subr.bf16.mxu0 0
    %2781 = vmatpush1.bf16.msra.mxu0 0
    %2782 = vmatprep.subr.bf16.mxu0 0
    %2783 = vmatpush1.bf16.msra.mxu0 0
    %2784 = vmatprep.mubr.bf16.mxu0 0
    %2785 = vmatmul.mubr.bf16.gmra.mrb[0].mxu0 %v2348
    %v2786 = vpop.f32.mrb[0].mxu0
    %v2787 = vadd.f32 0.0, %v2786
    %v2788 = vpop.f32.mrb[0].mxu0
    %v2789 = vpop.f32.mrb[0].mxu0
    %v2790 = vpop.f32.mrb[0].mxu0
    %2791 = vdwg.mxu0
    %v2792 = vadd.f32 %v2687, %v2787
    %v2793 = vxor.u32 %v2792, 2147483648
    %v2794 = vmul.f32 %v2793, 1.442695
    %v2795 = vpow.pop %v2794
    %v2796 = vadd.f32 %v2795, 1.0
    %v2797 = vrcp.pop %v2796
    %v2798 = vmul.f32 1.0, %v2797
    %v2799 = vmul.f32 %v2577, %v2345
    %v2800 = vmul.f32 %v2464, %v2685
    %v2801 = vadd.f32 %v2799, %v2800
    %v2802 = vtanh.pop %v2801
    %v2803 = vmul.f32 %v2798, %v2802
    %v2804 = vpack.c.bf16 %v2803, %v2803
    %s2805 = scalar_lea.vmem [#allocation10], 20
    %2806 = vst [vmem:[%s2805] sm:$0xf] %v2804
    %s2807 = scalar_lea.vmem [#allocation4], 96
    %v2808 = vld [vmem:[%s2807] sm:$0xf]
    %v2809 = vunpack.c.l.bf16 %v2808
    %v2810 = vld [vmem:[#allocation7] sm:$0xf]
    %v2811 = vld [vmem:[#allocation7 + $0x10] sm:$0xf]
    %v2812 = vld [vmem:[#allocation7 + $0x20] sm:$0xf]
    %v2813 = vld [vmem:[#allocation7 + $0x30] sm:$0xf]
    %v2814 = vld [vmem:[#allocation7 + $0x40] sm:$0xf]
    %v2815 = vld [vmem:[#allocation7 + $0x50] sm:$0xf]
    %v2816 = vld [vmem:[#allocation7 + $0x60] sm:$0xf]
    %v2817 = vld [vmem:[#allocation7 + $0x70] sm:$0xf]
    %v2818 = vld [vmem:[#allocation7 + $0x80] sm:$0xf]
    %v2819 = vld [vmem:[#allocation7 + $0x90] sm:$0xf]
    %v2820 = vld [vmem:[#allocation7 + $0xa0] sm:$0xf]
    %v2821 = vld [vmem:[#allocation7 + $0xb0] sm:$0xf]
    %v2822 = vld [vmem:[#allocation7 + $0xc0] sm:$0xf]
    %v2823 = vld [vmem:[#allocation7 + $0xd0] sm:$0xf]
    %v2824 = vld [vmem:[#allocation7 + $0xe0] sm:$0xf]
    %v2825 = vld [vmem:[#allocation7 + $0xf0] sm:$0xf]
    %v2842 = vunpack.c.l.b16 %v2810
    %v2843 = vunpack.c.l.b16 %v2811
    %v2844 = vunpack.c.l.b16 %v2812
    %v2845 = vunpack.c.l.b16 %v2813
    %v2846 = vunpack.c.l.b16 %v2814
    %v2847 = vunpack.c.l.b16 %v2815
    %v2848 = vunpack.c.l.b16 %v2816
    %v2849 = vunpack.c.l.b16 %v2817
    %v2850 = vunpack.c.l.b16 %v2818
    %v2851 = vunpack.c.l.b16 %v2819
    %v2852 = vunpack.c.l.b16 %v2820
    %v2853 = vunpack.c.l.b16 %v2821
    %v2854 = vunpack.c.l.b16 %v2822
    %v2855 = vunpack.c.l.b16 %v2823
    %v2856 = vunpack.c.l.b16 %v2824
    %v2857 = vunpack.c.l.b16 %v2825
    %v2858 = vpack.c.b16 %v2843, %v2842
    %v2859 = vpack.c.b16 %v2845, %v2844
    %v2860 = vpack.c.b16 %v2847, %v2846
    %v2861 = vpack.c.b16 %v2849, %v2848
    %v2862 = vpack.c.b16 %v2851, %v2850
    %v2863 = vpack.c.b16 %v2853, %v2852
    %v2864 = vpack.c.b16 %v2855, %v2854
    %v2865 = vpack.c.b16 %v2857, %v2856
    %2874 = vmatprep.subr.bf16.mxu0 0
    %2875 = vmatpush1.bf16.msra.mxu0 %v2858
    %2876 = vmatprep.subr.bf16.mxu0 0
    %2877 = vmatpush1.bf16.msra.mxu0 %v2859
    %2878 = vmatprep.subr.bf16.mxu0 0
    %2879 = vmatpush1.bf16.msra.mxu0 %v2860
    %2880 = vmatprep.subr.bf16.mxu0 0
    %2881 = vmatpush1.bf16.msra.mxu0 %v2861
    %2882 = vmatprep.subr.bf16.mxu0 0
    %2883 = vmatpush1.bf16.msra.mxu0 %v2862
    %2884 = vmatprep.subr.bf16.mxu0 0
    %2885 = vmatpush1.bf16.msra.mxu0 %v2863
    %2886 = vmatprep.subr.bf16.mxu0 0
    %2887 = vmatpush1.bf16.msra.mxu0 %v2864
    %2888 = vmatprep.subr.bf16.mxu0 0
    %2889 = vmatpush1.bf16.msra.mxu0 %v2865
    %2890 = vmatprep.subr.bf16.mxu0 0
    %2891 = vmatpush1.bf16.msra.mxu0 0
    %2892 = vmatprep.subr.bf16.mxu0 0
    %2893 = vmatpush1.bf16.msra.mxu0 0
    %2894 = vmatprep.subr.bf16.mxu0 0
    %2895 = vmatpush1.bf16.msra.mxu0 0
    %2896 = vmatprep.subr.bf16.mxu0 0
    %2897 = vmatpush1.bf16.msra.mxu0 0
    %2898 = vmatprep.subr.bf16.mxu0 0
    %2899 = vmatpush1.bf16.msra.mxu0 0
    %2900 = vmatprep.subr.bf16.mxu0 0
    %2901 = vmatpush1.bf16.msra.mxu0 0
    %2902 = vmatprep.subr.bf16.mxu0 0
    %2903 = vmatpush1.bf16.msra.mxu0 0
    %2904 = vmatprep.subr.bf16.mxu0 0
    %2905 = vmatpush1.bf16.msra.mxu0 0
    %2906 = vmatprep.mubr.bf16.mxu0 0
    %2907 = vmatmul.mubr.bf16.gmra.mrb[0].mxu0 %v2804
    %v2908 = vpop.f32.mrb[0].mxu0
    %v2909 = vadd.f32 0.0, %v2908
    %v2910 = vpop.f32.mrb[0].mxu0
    %v2911 = vpop.f32.mrb[0].mxu0
    %v2912 = vpop.f32.mrb[0].mxu0
    %2913 = vdwg.mxu0
    %v2914 = vadd.f32 %v2809, %v2909
    %v2915 = vxor.u32 %v2914, 2147483648
    %v2916 = vmul.f32 %v2915, 1.442695
    %v2917 = vpow.pop %v2916
    %v2918 = vadd.f32 %v2917, 1.0
    %v2919 = vrcp.pop %v2918
    %v2920 = vmul.f32 1.0, %v2919
    %v2921 = vld [vmem:[%s2807 + $0x4] sm:$0xf]
    %v2922 = vunpack.c.l.bf16 %v2921
    %v2923 = vld [vmem:[#allocation7 + $0x4] sm:$0xf]
    %v2924 = vld [vmem:[#allocation7 + $0x14] sm:$0xf]
    %v2925 = vld [vmem:[#allocation7 + $0x24] sm:$0xf]
    %v2926 = vld [vmem:[#allocation7 + $0x34] sm:$0xf]
    %v2927 = vld [vmem:[#allocation7 + $0x44] sm:$0xf]
    %v2928 = vld [vmem:[#allocation7 + $0x54] sm:$0xf]
    %v2929 = vld [vmem:[#allocation7 + $0x64] sm:$0xf]
    %v2930 = vld [vmem:[#allocation7 + $0x74] sm:$0xf]
    %v2931 = vld [vmem:[#allocation7 + $0x84] sm:$0xf]
    %v2932 = vld [vmem:[#allocation7 + $0x94] sm:$0xf]
    %v2933 = vld [vmem:[#allocation7 + $0xa4] sm:$0xf]
    %v2934 = vld [vmem:[#allocation7 + $0xb4] sm:$0xf]
    %v2935 = vld [vmem:[#allocation7 + $0xc4] sm:$0xf]
    %v2936 = vld [vmem:[#allocation7 + $0xd4] sm:$0xf]
    %v2937 = vld [vmem:[#allocation7 + $0xe4] sm:$0xf]
    %v2938 = vld [vmem:[#allocation7 + $0xf4] sm:$0xf]
    %v2955 = vunpack.c.l.b16 %v2923
    %v2956 = vunpack.c.l.b16 %v2924
    %v2957 = vunpack.c.l.b16 %v2925
    %v2958 = vunpack.c.l.b16 %v2926
    %v2959 = vunpack.c.l.b16 %v2927
    %v2960 = vunpack.c.l.b16 %v2928
    %v2961 = vunpack.c.l.b16 %v2929
    %v2962 = vunpack.c.l.b16 %v2930
    %v2963 = vunpack.c.l.b16 %v2931
    %v2964 = vunpack.c.l.b16 %v2932
    %v2965 = vunpack.c.l.b16 %v2933
    %v2966 = vunpack.c.l.b16 %v2934
    %v2967 = vunpack.c.l.b16 %v2935
    %v2968 = vunpack.c.l.b16 %v2936
    %v2969 = vunpack.c.l.b16 %v2937
    %v2970 = vunpack.c.l.b16 %v2938
    %v2971 = vpack.c.b16 %v2956, %v2955
    %v2972 = vpack.c.b16 %v2958, %v2957
    %v2973 = vpack.c.b16 %v2960, %v2959
    %v2974 = vpack.c.b16 %v2962, %v2961
    %v2975 = vpack.c.b16 %v2964, %v2963
    %v2976 = vpack.c.b16 %v2966, %v2965
    %v2977 = vpack.c.b16 %v2968, %v2967
    %v2978 = vpack.c.b16 %v2970, %v2969
    %2987 = vmatprep.subr.bf16.mxu0 0
    %2988 = vmatpush1.bf16.msra.mxu0 %v2971
    %2989 = vmatprep.subr.bf16.mxu0 0
    %2990 = vmatpush1.bf16.msra.mxu0 %v2972
    %2991 = vmatprep.subr.bf16.mxu0 0
    %2992 = vmatpush1.bf16.msra.mxu0 %v2973
    %2993 = vmatprep.subr.bf16.mxu0 0
    %2994 = vmatpush1.bf16.msra.mxu0 %v2974
    %2995 = vmatprep.subr.bf16.mxu0 0
    %2996 = vmatpush1.bf16.msra.mxu0 %v2975
    %2997 = vmatprep.subr.bf16.mxu0 0
    %2998 = vmatpush1.bf16.msra.mxu0 %v2976
    %2999 = vmatprep.subr.bf16.mxu0 0
    %3000 = vmatpush1.bf16.msra.mxu0 %v2977
    %3001 = vmatprep.subr.bf16.mxu0 0
    %3002 = vmatpush1.bf16.msra.mxu0 %v2978
    %3003 = vmatprep.subr.bf16.mxu0 0
    %3004 = vmatpush1.bf16.msra.mxu0 0
    %3005 = vmatprep.subr.bf16.mxu0 0
    %3006 = vmatpush1.bf16.msra.mxu0 0
    %3007 = vmatprep.subr.bf16.mxu0 0
    %3008 = vmatpush1.bf16.msra.mxu0 0
    %3009 = vmatprep.subr.bf16.mxu0 0
    %3010 = vmatpush1.bf16.msra.mxu0 0
    %3011 = vmatprep.subr.bf16.mxu0 0
    %3012 = vmatpush1.bf16.msra.mxu0 0
    %3013 = vmatprep.subr.bf16.mxu0 0
    %3014 = vmatpush1.bf16.msra.mxu0 0
    %3015 = vmatprep.subr.bf16.mxu0 0
    %3016 = vmatpush1.bf16.msra.mxu0 0
    %3017 = vmatprep.subr.bf16.mxu0 0
    %3018 = vmatpush1.bf16.msra.mxu0 0
    %3019 = vmatprep.mubr.bf16.mxu0 0
    %3020 = vmatmul.mubr.bf16.gmra.mrb[0].mxu0 %v2804
    %v3021 = vpop.f32.mrb[0].mxu0
    %v3022 = vadd.f32 0.0, %v3021
    %v3023 = vpop.f32.mrb[0].mxu0
    %v3024 = vpop.f32.mrb[0].mxu0
    %v3025 = vpop.f32.mrb[0].mxu0
    %3026 = vdwg.mxu0
    %v3027 = vadd.f32 %v2922, %v3022
    %v3028 = vxor.u32 %v3027, 2147483648
    %v3029 = vmul.f32 %v3028, 1.442695
    %v3030 = vpow.pop %v3029
    %v3031 = vadd.f32 %v3030, 1.0
    %v3032 = vrcp.pop %v3031
    %v3033 = vmul.f32 1.0, %v3032
    %v3034 = vld [vmem:[%s2807 + $0x8] sm:$0xf]
    %v3035 = vunpack.c.l.bf16 %v3034
    %v3036 = vld [vmem:[#allocation7 + $0x8] sm:$0xf]
    %v3037 = vld [vmem:[#allocation7 + $0x18] sm:$0xf]
    %v3038 = vld [vmem:[#allocation7 + $0x28] sm:$0xf]
    %v3039 = vld [vmem:[#allocation7 + $0x38] sm:$0xf]
    %v3040 = vld [vmem:[#allocation7 + $0x48] sm:$0xf]
    %v3041 = vld [vmem:[#allocation7 + $0x58] sm:$0xf]
    %v3042 = vld [vmem:[#allocation7 + $0x68] sm:$0xf]
    %v3043 = vld [vmem:[#allocation7 + $0x78] sm:$0xf]
    %v3044 = vld [vmem:[#allocation7 + $0x88] sm:$0xf]
    %v3045 = vld [vmem:[#allocation7 + $0x98] sm:$0xf]
    %v3046 = vld [vmem:[#allocation7 + $0xa8] sm:$0xf]
    %v3047 = vld [vmem:[#allocation7 + $0xb8] sm:$0xf]
    %v3048 = vld [vmem:[#allocation7 + $0xc8] sm:$0xf]
    %v3049 = vld [vmem:[#allocation7 + $0xd8] sm:$0xf]
    %v3050 = vld [vmem:[#allocation7 + $0xe8] sm:$0xf]
    %v3051 = vld [vmem:[#allocation7 + $0xf8] sm:$0xf]
    %v3068 = vunpack.c.l.b16 %v3036
    %v3069 = vunpack.c.l.b16 %v3037
    %v3070 = vunpack.c.l.b16 %v3038
    %v3071 = vunpack.c.l.b16 %v3039
    %v3072 = vunpack.c.l.b16 %v3040
    %v3073 = vunpack.c.l.b16 %v3041
    %v3074 = vunpack.c.l.b16 %v3042
    %v3075 = vunpack.c.l.b16 %v3043
    %v3076 = vunpack.c.l.b16 %v3044
    %v3077 = vunpack.c.l.b16 %v3045
    %v3078 = vunpack.c.l.b16 %v3046
    %v3079 = vunpack.c.l.b16 %v3047
    %v3080 = vunpack.c.l.b16 %v3048
    %v3081 = vunpack.c.l.b16 %v3049
    %v3082 = vunpack.c.l.b16 %v3050
    %v3083 = vunpack.c.l.b16 %v3051
    %v3084 = vpack.c.b16 %v3069, %v3068
    %v3085 = vpack.c.b16 %v3071, %v3070
    %v3086 = vpack.c.b16 %v3073, %v3072
    %v3087 = vpack.c.b16 %v3075, %v3074
    %v3088 = vpack.c.b16 %v3077, %v3076
    %v3089 = vpack.c.b16 %v3079, %v3078
    %v3090 = vpack.c.b16 %v3081, %v3080
    %v3091 = vpack.c.b16 %v3083, %v3082
    %3100 = vmatprep.subr.bf16.mxu0 0
    %3101 = vmatpush1.bf16.msra.mxu0 %v3084
    %3102 = vmatprep.subr.bf16.mxu0 0
    %3103 = vmatpush1.bf16.msra.mxu0 %v3085
    %3104 = vmatprep.subr.bf16.mxu0 0
    %3105 = vmatpush1.bf16.msra.mxu0 %v3086
    %3106 = vmatprep.subr.bf16.mxu0 0
    %3107 = vmatpush1.bf16.msra.mxu0 %v3087
    %3108 = vmatprep.subr.bf16.mxu0 0
    %3109 = vmatpush1.bf16.msra.mxu0 %v3088
    %3110 = vmatprep.subr.bf16.mxu0 0
    %3111 = vmatpush1.bf16.msra.mxu0 %v3089
    %3112 = vmatprep.subr.bf16.mxu0 0
    %3113 = vmatpush1.bf16.msra.mxu0 %v3090
    %3114 = vmatprep.subr.bf16.mxu0 0
    %3115 = vmatpush1.bf16.msra.mxu0 %v3091
    %3116 = vmatprep.subr.bf16.mxu0 0
    %3117 = vmatpush1.bf16.msra.mxu0 0
    %3118 = vmatprep.subr.bf16.mxu0 0
    %3119 = vmatpush1.bf16.msra.mxu0 0
    %3120 = vmatprep.subr.bf16.mxu0 0
    %3121 = vmatpush1.bf16.msra.mxu0 0
    %3122 = vmatprep.subr.bf16.mxu0 0
    %3123 = vmatpush1.bf16.msra.mxu0 0
    %3124 = vmatprep.subr.bf16.mxu0 0
    %3125 = vmatpush1.bf16.msra.mxu0 0
    %3126 = vmatprep.subr.bf16.mxu0 0
    %3127 = vmatpush1.bf16.msra.mxu0 0
    %3128 = vmatprep.subr.bf16.mxu0 0
    %3129 = vmatpush1.bf16.msra.mxu0 0
    %3130 = vmatprep.subr.bf16.mxu0 0
    %3131 = vmatpush1.bf16.msra.mxu0 0
    %3132 = vmatprep.mubr.bf16.mxu0 0
    %3133 = vmatmul.mubr.bf16.gmra.mrb[0].mxu0 %v2804
    %v3134 = vpop.f32.mrb[0].mxu0
    %v3135 = vadd.f32 0.0, %v3134
    %v3136 = vpop.f32.mrb[0].mxu0
    %v3137 = vpop.f32.mrb[0].mxu0
    %v3138 = vpop.f32.mrb[0].mxu0
    %3139 = vdwg.mxu0
    %v3140 = vadd.f32 %v3035, %v3135
    %v3141 = vtanh.pop %v3140
    %v3142 = vld [vmem:[%s2807 + $0xc] sm:$0xf]
    %v3143 = vunpack.c.l.bf16 %v3142
    %v3144 = vld [vmem:[#allocation7 + $0xc] sm:$0xf]
    %v3145 = vld [vmem:[#allocation7 + $0x1c] sm:$0xf]
    %v3146 = vld [vmem:[#allocation7 + $0x2c] sm:$0xf]
    %v3147 = vld [vmem:[#allocation7 + $0x3c] sm:$0xf]
    %v3148 = vld [vmem:[#allocation7 + $0x4c] sm:$0xf]
    %v3149 = vld [vmem:[#allocation7 + $0x5c] sm:$0xf]
    %v3150 = vld [vmem:[#allocation7 + $0x6c] sm:$0xf]
    %v3151 = vld [vmem:[#allocation7 + $0x7c] sm:$0xf]
    %v3152 = vld [vmem:[#allocation7 + $0x8c] sm:$0xf]
    %v3153 = vld [vmem:[#allocation7 + $0x9c] sm:$0xf]
    %v3154 = vld [vmem:[#allocation7 + $0xac] sm:$0xf]
    %v3155 = vld [vmem:[#allocation7 + $0xbc] sm:$0xf]
    %v3156 = vld [vmem:[#allocation7 + $0xcc] sm:$0xf]
    %v3157 = vld [vmem:[#allocation7 + $0xdc] sm:$0xf]
    %v3158 = vld [vmem:[#allocation7 + $0xec] sm:$0xf]
    %v3159 = vld [vmem:[#allocation7 + $0xfc] sm:$0xf]
    %v3176 = vunpack.c.l.b16 %v3144
    %v3177 = vunpack.c.l.b16 %v3145
    %v3178 = vunpack.c.l.b16 %v3146
    %v3179 = vunpack.c.l.b16 %v3147
    %v3180 = vunpack.c.l.b16 %v3148
    %v3181 = vunpack.c.l.b16 %v3149
    %v3182 = vunpack.c.l.b16 %v3150
    %v3183 = vunpack.c.l.b16 %v3151
    %v3184 = vunpack.c.l.b16 %v3152
    %v3185 = vunpack.c.l.b16 %v3153
    %v3186 = vunpack.c.l.b16 %v3154
    %v3187 = vunpack.c.l.b16 %v3155
    %v3188 = vunpack.c.l.b16 %v3156
    %v3189 = vunpack.c.l.b16 %v3157
    %v3190 = vunpack.c.l.b16 %v3158
    %v3191 = vunpack.c.l.b16 %v3159
    %v3192 = vpack.c.b16 %v3177, %v3176
    %v3193 = vpack.c.b16 %v3179, %v3178
    %v3194 = vpack.c.b16 %v3181, %v3180
    %v3195 = vpack.c.b16 %v3183, %v3182
    %v3196 = vpack.c.b16 %v3185, %v3184
    %v3197 = vpack.c.b16 %v3187, %v3186
    %v3198 = vpack.c.b16 %v3189, %v3188
    %v3199 = vpack.c.b16 %v3191, %v3190
    %3208 = vmatprep.subr.bf16.mxu0 0
    %3209 = vmatpush1.bf16.msra.mxu0 %v3192
    %3210 = vmatprep.subr.bf16.mxu0 0
    %3211 = vmatpush1.bf16.msra.mxu0 %v3193
    %3212 = vmatprep.subr.bf16.mxu0 0
    %3213 = vmatpush1.bf16.msra.mxu0 %v3194
    %3214 = vmatprep.subr.bf16.mxu0 0
    %3215 = vmatpush1.bf16.msra.mxu0 %v3195
    %3216 = vmatprep.subr.bf16.mxu0 0
    %3217 = vmatpush1.bf16.msra.mxu0 %v3196
    %3218 = vmatprep.subr.bf16.mxu0 0
    %3219 = vmatpush1.bf16.msra.mxu0 %v3197
    %3220 = vmatprep.subr.bf16.mxu0 0
    %3221 = vmatpush1.bf16.msra.mxu0 %v3198
    %3222 = vmatprep.subr.bf16.mxu0 0
    %3223 = vmatpush1.bf16.msra.mxu0 %v3199
    %3224 = vmatprep.subr.bf16.mxu0 0
    %3225 = vmatpush1.bf16.msra.mxu0 0
    %3226 = vmatprep.subr.bf16.mxu0 0
    %3227 = vmatpush1.bf16.msra.mxu0 0
    %3228 = vmatprep.subr.bf16.mxu0 0
    %3229 = vmatpush1.bf16.msra.mxu0 0
    %3230 = vmatprep.subr.bf16.mxu0 0
    %3231 = vmatpush1.bf16.msra.mxu0 0
    %3232 = vmatprep.subr.bf16.mxu0 0
    %3233 = vmatpush1.bf16.msra.mxu0 0
    %3234 = vmatprep.subr.bf16.mxu0 0
    %3235 = vmatpush1.bf16.msra.mxu0 0
    %3236 = vmatprep.subr.bf16.mxu0 0
    %3237 = vmatpush1.bf16.msra.mxu0 0
    %3238 = vmatprep.subr.bf16.mxu0 0
    %3239 = vmatpush1.bf16.msra.mxu0 0
    %3240 = vmatprep.mubr.bf16.mxu0 0
    %3241 = vmatmul.mubr.bf16.gmra.mrb[0].mxu0 %v2804
    %v3242 = vpop.f32.mrb[0].mxu0
    %v3243 = vadd.f32 0.0, %v3242
    %v3244 = vpop.f32.mrb[0].mxu0
    %v3245 = vpop.f32.mrb[0].mxu0
    %v3246 = vpop.f32.mrb[0].mxu0
    %3247 = vdwg.mxu0
    %v3248 = vadd.f32 %v3143, %v3243
    %v3249 = vxor.u32 %v3248, 2147483648
    %v3250 = vmul.f32 %v3249, 1.442695
    %v3251 = vpow.pop %v3250
    %v3252 = vadd.f32 %v3251, 1.0
    %v3253 = vrcp.pop %v3252
    %v3254 = vmul.f32 1.0, %v3253
    %v3255 = vmul.f32 %v3033, %v2801
    %v3256 = vmul.f32 %v2920, %v3141
    %v3257 = vadd.f32 %v3255, %v3256
    %v3258 = vtanh.pop %v3257
    %v3259 = vmul.f32 %v3254, %v3258
    %v3260 = vpack.c.bf16 %v3259, %v3259
    %s3261 = scalar_lea.vmem [#allocation10], 24
    %3262 = vst [vmem:[%s3261] sm:$0xf] %v3260
    %s3263 = scalar_lea.vmem [#allocation4], 112
    %v3264 = vld [vmem:[%s3263] sm:$0xf]
    %v3265 = vunpack.c.l.bf16 %v3264
    %v3266 = vld [vmem:[#allocation7] sm:$0xf]
    %v3267 = vld [vmem:[#allocation7 + $0x10] sm:$0xf]
    %v3268 = vld [vmem:[#allocation7 + $0x20] sm:$0xf]
    %v3269 = vld [vmem:[#allocation7 + $0x30] sm:$0xf]
    %v3270 = vld [vmem:[#allocation7 + $0x40] sm:$0xf]
    %v3271 = vld [vmem:[#allocation7 + $0x50] sm:$0xf]
    %v3272 = vld [vmem:[#allocation7 + $0x60] sm:$0xf]
    %v3273 = vld [vmem:[#allocation7 + $0x70] sm:$0xf]
    %v3274 = vld [vmem:[#allocation7 + $0x80] sm:$0xf]
    %v3275 = vld [vmem:[#allocation7 + $0x90] sm:$0xf]
    %v3276 = vld [vmem:[#allocation7 + $0xa0] sm:$0xf]
    %v3277 = vld [vmem:[#allocation7 + $0xb0] sm:$0xf]
    %v3278 = vld [vmem:[#allocation7 + $0xc0] sm:$0xf]
    %v3279 = vld [vmem:[#allocation7 + $0xd0] sm:$0xf]
    %v3280 = vld [vmem:[#allocation7 + $0xe0] sm:$0xf]
    %v3281 = vld [vmem:[#allocation7 + $0xf0] sm:$0xf]
    %v3298 = vunpack.c.l.b16 %v3266
    %v3299 = vunpack.c.l.b16 %v3267
    %v3300 = vunpack.c.l.b16 %v3268
    %v3301 = vunpack.c.l.b16 %v3269
    %v3302 = vunpack.c.l.b16 %v3270
    %v3303 = vunpack.c.l.b16 %v3271
    %v3304 = vunpack.c.l.b16 %v3272
    %v3305 = vunpack.c.l.b16 %v3273
    %v3306 = vunpack.c.l.b16 %v3274
    %v3307 = vunpack.c.l.b16 %v3275
    %v3308 = vunpack.c.l.b16 %v3276
    %v3309 = vunpack.c.l.b16 %v3277
    %v3310 = vunpack.c.l.b16 %v3278
    %v3311 = vunpack.c.l.b16 %v3279
    %v3312 = vunpack.c.l.b16 %v3280
    %v3313 = vunpack.c.l.b16 %v3281
    %v3314 = vpack.c.b16 %v3299, %v3298
    %v3315 = vpack.c.b16 %v3301, %v3300
    %v3316 = vpack.c.b16 %v3303, %v3302
    %v3317 = vpack.c.b16 %v3305, %v3304
    %v3318 = vpack.c.b16 %v3307, %v3306
    %v3319 = vpack.c.b16 %v3309, %v3308
    %v3320 = vpack.c.b16 %v3311, %v3310
    %v3321 = vpack.c.b16 %v3313, %v3312
    %3330 = vmatprep.subr.bf16.mxu0 0
    %3331 = vmatpush1.bf16.msra.mxu0 %v3314
    %3332 = vmatprep.subr.bf16.mxu0 0
    %3333 = vmatpush1.bf16.msra.mxu0 %v3315
    %3334 = vmatprep.subr.bf16.mxu0 0
    %3335 = vmatpush1.bf16.msra.mxu0 %v3316
    %3336 = vmatprep.subr.bf16.mxu0 0
    %3337 = vmatpush1.bf16.msra.mxu0 %v3317
    %3338 = vmatprep.subr.bf16.mxu0 0
    %3339 = vmatpush1.bf16.msra.mxu0 %v3318
    %3340 = vmatprep.subr.bf16.mxu0 0
    %3341 = vmatpush1.bf16.msra.mxu0 %v3319
    %3342 = vmatprep.subr.bf16.mxu0 0
    %3343 = vmatpush1.bf16.msra.mxu0 %v3320
    %3344 = vmatprep.subr.bf16.mxu0 0
    %3345 = vmatpush1.bf16.msra.mxu0 %v3321
    %3346 = vmatprep.subr.bf16.mxu0 0
    %3347 = vmatpush1.bf16.msra.mxu0 0
    %3348 = vmatprep.subr.bf16.mxu0 0
    %3349 = vmatpush1.bf16.msra.mxu0 0
    %3350 = vmatprep.subr.bf16.mxu0 0
    %3351 = vmatpush1.bf16.msra.mxu0 0
    %3352 = vmatprep.subr.bf16.mxu0 0
    %3353 = vmatpush1.bf16.msra.mxu0 0
    %3354 = vmatprep.subr.bf16.mxu0 0
    %3355 = vmatpush1.bf16.msra.mxu0 0
    %3356 = vmatprep.subr.bf16.mxu0 0
    %3357 = vmatpush1.bf16.msra.mxu0 0
    %3358 = vmatprep.subr.bf16.mxu0 0
    %3359 = vmatpush1.bf16.msra.mxu0 0
    %3360 = vmatprep.subr.bf16.mxu0 0
    %3361 = vmatpush1.bf16.msra.mxu0 0
    %3362 = vmatprep.mubr.bf16.mxu0 0
    %3363 = vmatmul.mubr.bf16.gmra.mrb[0].mxu0 %v3260
    %v3364 = vpop.f32.mrb[0].mxu0
    %v3365 = vadd.f32 0.0, %v3364
    %v3366 = vpop.f32.mrb[0].mxu0
    %v3367 = vpop.f32.mrb[0].mxu0
    %v3368 = vpop.f32.mrb[0].mxu0
    %3369 = vdwg.mxu0
    %v3370 = vadd.f32 %v3265, %v3365
    %v3371 = vxor.u32 %v3370, 2147483648
    %v3372 = vmul.f32 %v3371, 1.442695
    %v3373 = vpow.pop %v3372
    %v3374 = vadd.f32 %v3373, 1.0
    %v3375 = vrcp.pop %v3374
    %v3376 = vmul.f32 1.0, %v3375
    %v3377 = vld [vmem:[%s3263 + $0x4] sm:$0xf]
    %v3378 = vunpack.c.l.bf16 %v3377
    %v3379 = vld [vmem:[#allocation7 + $0x4] sm:$0xf]
    %v3380 = vld [vmem:[#allocation7 + $0x14] sm:$0xf]
    %v3381 = vld [vmem:[#allocation7 + $0x24] sm:$0xf]
    %v3382 = vld [vmem:[#allocation7 + $0x34] sm:$0xf]
    %v3383 = vld [vmem:[#allocation7 + $0x44] sm:$0xf]
    %v3384 = vld [vmem:[#allocation7 + $0x54] sm:$0xf]
    %v3385 = vld [vmem:[#allocation7 + $0x64] sm:$0xf]
    %v3386 = vld [vmem:[#allocation7 + $0x74] sm:$0xf]
    %v3387 = vld [vmem:[#allocation7 + $0x84] sm:$0xf]
    %v3388 = vld [vmem:[#allocation7 + $0x94] sm:$0xf]
    %v3389 = vld [vmem:[#allocation7 + $0xa4] sm:$0xf]
    %v3390 = vld [vmem:[#allocation7 + $0xb4] sm:$0xf]
    %v3391 = vld [vmem:[#allocation7 + $0xc4] sm:$0xf]
    %v3392 = vld [vmem:[#allocation7 + $0xd4] sm:$0xf]
    %v3393 = vld [vmem:[#allocation7 + $0xe4] sm:$0xf]
    %v3394 = vld [vmem:[#allocation7 + $0xf4] sm:$0xf]
    %v3411 = vunpack.c.l.b16 %v3379
    %v3412 = vunpack.c.l.b16 %v3380
    %v3413 = vunpack.c.l.b16 %v3381
    %v3414 = vunpack.c.l.b16 %v3382
    %v3415 = vunpack.c.l.b16 %v3383
    %v3416 = vunpack.c.l.b16 %v3384
    %v3417 = vunpack.c.l.b16 %v3385
    %v3418 = vunpack.c.l.b16 %v3386
    %v3419 = vunpack.c.l.b16 %v3387
    %v3420 = vunpack.c.l.b16 %v3388
    %v3421 = vunpack.c.l.b16 %v3389
    %v3422 = vunpack.c.l.b16 %v3390
    %v3423 = vunpack.c.l.b16 %v3391
    %v3424 = vunpack.c.l.b16 %v3392
    %v3425 = vunpack.c.l.b16 %v3393
    %v3426 = vunpack.c.l.b16 %v3394
    %v3427 = vpack.c.b16 %v3412, %v3411
    %v3428 = vpack.c.b16 %v3414, %v3413
    %v3429 = vpack.c.b16 %v3416, %v3415
    %v3430 = vpack.c.b16 %v3418, %v3417
    %v3431 = vpack.c.b16 %v3420, %v3419
    %v3432 = vpack.c.b16 %v3422, %v3421
    %v3433 = vpack.c.b16 %v3424, %v3423
    %v3434 = vpack.c.b16 %v3426, %v3425
    %3443 = vmatprep.subr.bf16.mxu0 0
    %3444 = vmatpush1.bf16.msra.mxu0 %v3427
    %3445 = vmatprep.subr.bf16.mxu0 0
    %3446 = vmatpush1.bf16.msra.mxu0 %v3428
    %3447 = vmatprep.subr.bf16.mxu0 0
    %3448 = vmatpush1.bf16.msra.mxu0 %v3429
    %3449 = vmatprep.subr.bf16.mxu0 0
    %3450 = vmatpush1.bf16.msra.mxu0 %v3430
    %3451 = vmatprep.subr.bf16.mxu0 0
    %3452 = vmatpush1.bf16.msra.mxu0 %v3431
    %3453 = vmatprep.subr.bf16.mxu0 0
    %3454 = vmatpush1.bf16.msra.mxu0 %v3432
    %3455 = vmatprep.subr.bf16.mxu0 0
    %3456 = vmatpush1.bf16.msra.mxu0 %v3433
    %3457 = vmatprep.subr.bf16.mxu0 0
    %3458 = vmatpush1.bf16.msra.mxu0 %v3434
    %3459 = vmatprep.subr.bf16.mxu0 0
    %3460 = vmatpush1.bf16.msra.mxu0 0
    %3461 = vmatprep.subr.bf16.mxu0 0
    %3462 = vmatpush1.bf16.msra.mxu0 0
    %3463 = vmatprep.subr.bf16.mxu0 0
    %3464 = vmatpush1.bf16.msra.mxu0 0
    %3465 = vmatprep.subr.bf16.mxu0 0
    %3466 = vmatpush1.bf16.msra.mxu0 0
    %3467 = vmatprep.subr.bf16.mxu0 0
    %3468 = vmatpush1.bf16.msra.mxu0 0
    %3469 = vmatprep.subr.bf16.mxu0 0
    %3470 = vmatpush1.bf16.msra.mxu0 0
    %3471 = vmatprep.subr.bf16.mxu0 0
    %3472 = vmatpush1.bf16.msra.mxu0 0
    %3473 = vmatprep.subr.bf16.mxu0 0
    %3474 = vmatpush1.bf16.msra.mxu0 0
    %3475 = vmatprep.mubr.bf16.mxu0 0
    %3476 = vmatmul.mubr.bf16.gmra.mrb[0].mxu0 %v3260
    %v3477 = vpop.f32.mrb[0].mxu0
    %v3478 = vadd.f32 0.0, %v3477
    %v3479 = vpop.f32.mrb[0].mxu0
    %v3480 = vpop.f32.mrb[0].mxu0
    %v3481 = vpop.f32.mrb[0].mxu0
    %3482 = vdwg.mxu0
    %v3483 = vadd.f32 %v3378, %v3478
    %v3484 = vxor.u32 %v3483, 2147483648
    %v3485 = vmul.f32 %v3484, 1.442695
    %v3486 = vpow.pop %v3485
    %v3487 = vadd.f32 %v3486, 1.0
    %v3488 = vrcp.pop %v3487
    %v3489 = vmul.f32 1.0, %v3488
    %v3490 = vld [vmem:[%s3263 + $0x8] sm:$0xf]
    %v3491 = vunpack.c.l.bf16 %v3490
    %v3492 = vld [vmem:[#allocation7 + $0x8] sm:$0xf]
    %v3493 = vld [vmem:[#allocation7 + $0x18] sm:$0xf]
    %v3494 = vld [vmem:[#allocation7 + $0x28] sm:$0xf]
    %v3495 = vld [vmem:[#allocation7 + $0x38] sm:$0xf]
    %v3496 = vld [vmem:[#allocation7 + $0x48] sm:$0xf]
    %v3497 = vld [vmem:[#allocation7 + $0x58] sm:$0xf]
    %v3498 = vld [vmem:[#allocation7 + $0x68] sm:$0xf]
    %v3499 = vld [vmem:[#allocation7 + $0x78] sm:$0xf]
    %v3500 = vld [vmem:[#allocation7 + $0x88] sm:$0xf]
    %v3501 = vld [vmem:[#allocation7 + $0x98] sm:$0xf]
    %v3502 = vld [vmem:[#allocation7 + $0xa8] sm:$0xf]
    %v3503 = vld [vmem:[#allocation7 + $0xb8] sm:$0xf]
    %v3504 = vld [vmem:[#allocation7 + $0xc8] sm:$0xf]
    %v3505 = vld [vmem:[#allocation7 + $0xd8] sm:$0xf]
    %v3506 = vld [vmem:[#allocation7 + $0xe8] sm:$0xf]
    %v3507 = vld [vmem:[#allocation7 + $0xf8] sm:$0xf]
    %v3524 = vunpack.c.l.b16 %v3492
    %v3525 = vunpack.c.l.b16 %v3493
    %v3526 = vunpack.c.l.b16 %v3494
    %v3527 = vunpack.c.l.b16 %v3495
    %v3528 = vunpack.c.l.b16 %v3496
    %v3529 = vunpack.c.l.b16 %v3497
    %v3530 = vunpack.c.l.b16 %v3498
    %v3531 = vunpack.c.l.b16 %v3499
    %v3532 = vunpack.c.l.b16 %v3500
    %v3533 = vunpack.c.l.b16 %v3501
    %v3534 = vunpack.c.l.b16 %v3502
    %v3535 = vunpack.c.l.b16 %v3503
    %v3536 = vunpack.c.l.b16 %v3504
    %v3537 = vunpack.c.l.b16 %v3505
    %v3538 = vunpack.c.l.b16 %v3506
    %v3539 = vunpack.c.l.b16 %v3507
    %v3540 = vpack.c.b16 %v3525, %v3524
    %v3541 = vpack.c.b16 %v3527, %v3526
    %v3542 = vpack.c.b16 %v3529, %v3528
    %v3543 = vpack.c.b16 %v3531, %v3530
    %v3544 = vpack.c.b16 %v3533, %v3532
    %v3545 = vpack.c.b16 %v3535, %v3534
    %v3546 = vpack.c.b16 %v3537, %v3536
    %v3547 = vpack.c.b16 %v3539, %v3538
    %3556 = vmatprep.subr.bf16.mxu0 0
    %3557 = vmatpush1.bf16.msra.mxu0 %v3540
    %3558 = vmatprep.subr.bf16.mxu0 0
    %3559 = vmatpush1.bf16.msra.mxu0 %v3541
    %3560 = vmatprep.subr.bf16.mxu0 0
    %3561 = vmatpush1.bf16.msra.mxu0 %v3542
    %3562 = vmatprep.subr.bf16.mxu0 0
    %3563 = vmatpush1.bf16.msra.mxu0 %v3543
    %3564 = vmatprep.subr.bf16.mxu0 0
    %3565 = vmatpush1.bf16.msra.mxu0 %v3544
    %3566 = vmatprep.subr.bf16.mxu0 0
    %3567 = vmatpush1.bf16.msra.mxu0 %v3545
    %3568 = vmatprep.subr.bf16.mxu0 0
    %3569 = vmatpush1.bf16.msra.mxu0 %v3546
    %3570 = vmatprep.subr.bf16.mxu0 0
    %3571 = vmatpush1.bf16.msra.mxu0 %v3547
    %3572 = vmatprep.subr.bf16.mxu0 0
    %3573 = vmatpush1.bf16.msra.mxu0 0
    %3574 = vmatprep.subr.bf16.mxu0 0
    %3575 = vmatpush1.bf16.msra.mxu0 0
    %3576 = vmatprep.subr.bf16.mxu0 0
    %3577 = vmatpush1.bf16.msra.mxu0 0
    %3578 = vmatprep.subr.bf16.mxu0 0
    %3579 = vmatpush1.bf16.msra.mxu0 0
    %3580 = vmatprep.subr.bf16.mxu0 0
    %3581 = vmatpush1.bf16.msra.mxu0 0
    %3582 = vmatprep.subr.bf16.mxu0 0
    %3583 = vmatpush1.bf16.msra.mxu0 0
    %3584 = vmatprep.subr.bf16.mxu0 0
    %3585 = vmatpush1.bf16.msra.mxu0 0
    %3586 = vmatprep.subr.bf16.mxu0 0
    %3587 = vmatpush1.bf16.msra.mxu0 0
    %3588 = vmatprep.mubr.bf16.mxu0 0
    %3589 = vmatmul.mubr.bf16.gmra.mrb[0].mxu0 %v3260
    %v3590 = vpop.f32.mrb[0].mxu0
    %v3591 = vadd.f32 0.0, %v3590
    %v3592 = vpop.f32.mrb[0].mxu0
    %v3593 = vpop.f32.mrb[0].mxu0
    %v3594 = vpop.f32.mrb[0].mxu0
    %3595 = vdwg.mxu0
    %v3596 = vadd.f32 %v3491, %v3591
    %v3597 = vtanh.pop %v3596
    %v3598 = vld [vmem:[%s3263 + $0xc] sm:$0xf]
    %v3599 = vunpack.c.l.bf16 %v3598
    %v3600 = vld [vmem:[#allocation7 + $0xc] sm:$0xf]
    %v3601 = vld [vmem:[#allocation7 + $0x1c] sm:$0xf]
    %v3602 = vld [vmem:[#allocation7 + $0x2c] sm:$0xf]
    %v3603 = vld [vmem:[#allocation7 + $0x3c] sm:$0xf]
    %v3604 = vld [vmem:[#allocation7 + $0x4c] sm:$0xf]
    %v3605 = vld [vmem:[#allocation7 + $0x5c] sm:$0xf]
    %v3606 = vld [vmem:[#allocation7 + $0x6c] sm:$0xf]
    %v3607 = vld [vmem:[#allocation7 + $0x7c] sm:$0xf]
    %v3608 = vld [vmem:[#allocation7 + $0x8c] sm:$0xf]
    %v3609 = vld [vmem:[#allocation7 + $0x9c] sm:$0xf]
    %v3610 = vld [vmem:[#allocation7 + $0xac] sm:$0xf]
    %v3611 = vld [vmem:[#allocation7 + $0xbc] sm:$0xf]
    %v3612 = vld [vmem:[#allocation7 + $0xcc] sm:$0xf]
    %v3613 = vld [vmem:[#allocation7 + $0xdc] sm:$0xf]
    %v3614 = vld [vmem:[#allocation7 + $0xec] sm:$0xf]
    %v3615 = vld [vmem:[#allocation7 + $0xfc] sm:$0xf]
    %v3632 = vunpack.c.l.b16 %v3600
    %v3633 = vunpack.c.l.b16 %v3601
    %v3634 = vunpack.c.l.b16 %v3602
    %v3635 = vunpack.c.l.b16 %v3603
    %v3636 = vunpack.c.l.b16 %v3604
    %v3637 = vunpack.c.l.b16 %v3605
    %v3638 = vunpack.c.l.b16 %v3606
    %v3639 = vunpack.c.l.b16 %v3607
    %v3640 = vunpack.c.l.b16 %v3608
    %v3641 = vunpack.c.l.b16 %v3609
    %v3642 = vunpack.c.l.b16 %v3610
    %v3643 = vunpack.c.l.b16 %v3611
    %v3644 = vunpack.c.l.b16 %v3612
    %v3645 = vunpack.c.l.b16 %v3613
    %v3646 = vunpack.c.l.b16 %v3614
    %v3647 = vunpack.c.l.b16 %v3615
    %v3648 = vpack.c.b16 %v3633, %v3632
    %v3649 = vpack.c.b16 %v3635, %v3634
    %v3650 = vpack.c.b16 %v3637, %v3636
    %v3651 = vpack.c.b16 %v3639, %v3638
    %v3652 = vpack.c.b16 %v3641, %v3640
    %v3653 = vpack.c.b16 %v3643, %v3642
    %v3654 = vpack.c.b16 %v3645, %v3644
    %v3655 = vpack.c.b16 %v3647, %v3646
    %3664 = vmatprep.subr.bf16.mxu0 0
    %3665 = vmatpush1.bf16.msra.mxu0 %v3648
    %3666 = vmatprep.subr.bf16.mxu0 0
    %3667 = vmatpush1.bf16.msra.mxu0 %v3649
    %3668 = vmatprep.subr.bf16.mxu0 0
    %3669 = vmatpush1.bf16.msra.mxu0 %v3650
    %3670 = vmatprep.subr.bf16.mxu0 0
    %3671 = vmatpush1.bf16.msra.mxu0 %v3651
    %3672 = vmatprep.subr.bf16.mxu0 0
    %3673 = vmatpush1.bf16.msra.mxu0 %v3652
    %3674 = vmatprep.subr.bf16.mxu0 0
    %3675 = vmatpush1.bf16.msra.mxu0 %v3653
    %3676 = vmatprep.subr.bf16.mxu0 0
    %3677 = vmatpush1.bf16.msra.mxu0 %v3654
    %3678 = vmatprep.subr.bf16.mxu0 0
    %3679 = vmatpush1.bf16.msra.mxu0 %v3655
    %3680 = vmatprep.subr.bf16.mxu0 0
    %3681 = vmatpush1.bf16.msra.mxu0 0
    %3682 = vmatprep.subr.bf16.mxu0 0
    %3683 = vmatpush1.bf16.msra.mxu0 0
    %3684 = vmatprep.subr.bf16.mxu0 0
    %3685 = vmatpush1.bf16.msra.mxu0 0
    %3686 = vmatprep.subr.bf16.mxu0 0
    %3687 = vmatpush1.bf16.msra.mxu0 0
    %3688 = vmatprep.subr.bf16.mxu0 0
    %3689 = vmatpush1.bf16.msra.mxu0 0
    %3690 = vmatprep.subr.bf16.mxu0 0
    %3691 = vmatpush1.bf16.msra.mxu0 0
    %3692 = vmatprep.subr.bf16.mxu0 0
    %3693 = vmatpush1.bf16.msra.mxu0 0
    %3694 = vmatprep.subr.bf16.mxu0 0
    %3695 = vmatpush1.bf16.msra.mxu0 0
    %3696 = vmatprep.mubr.bf16.mxu0 0
    %3697 = vmatmul.mubr.bf16.gmra.mrb[0].mxu0 %v3260
    %v3698 = vpop.f32.mrb[0].mxu0
    %v3699 = vadd.f32 0.0, %v3698
    %v3700 = vpop.f32.mrb[0].mxu0
    %v3701 = vpop.f32.mrb[0].mxu0
    %v3702 = vpop.f32.mrb[0].mxu0
    %3703 = vdwg.mxu0
    %v3704 = vadd.f32 %v3599, %v3699
    %v3705 = vxor.u32 %v3704, 2147483648
    %v3706 = vmul.f32 %v3705, 1.442695
    %v3707 = vpow.pop %v3706
    %v3708 = vadd.f32 %v3707, 1.0
    %v3709 = vrcp.pop %v3708
    %v3710 = vmul.f32 1.0, %v3709
    %v3711 = vmul.f32 %v3489, %v3257
    %v3712 = vmul.f32 %v3376, %v3597
    %v3713 = vadd.f32 %v3711, %v3712
    %v3714 = vtanh.pop %v3713
    %v3715 = vmul.f32 %v3710, %v3714
    %v3716 = vpack.c.bf16 %v3715, %v3715
    %s3717 = scalar_lea.vmem [#allocation10], 28
    %3718 = vst [vmem:[%s3717] sm:$0xf] %v3716
    %3719 = vst [vmem:[#allocation2] sm:$0xff] %v3715
    %3720 = vst [vmem:[#allocation3] sm:$0xff] %v3713
    // Predicated region
    $region34: #{tpu_custom_call.1} parent=1 // pred_check
      %p3721 = pneg %p62
    $region35: #{tpu_custom_call.1} parent=1 // pred_check_branch
      %3723 = sbr.rel (%p3721) target = $region37
    $region36: #{tpu_custom_call.1} parent=1 // pred_region
      %3724 = vst [vmem:[#allocation11] sm:$0xff] %v3715
      %3725 = vst [vmem:[#allocation13] sm:$0xff] %v3713
    $region37: #{tpu_custom_call.1} parent=1 // pred_fallthru
      _
    // Predicated region
    $region38: #{tpu_custom_call.1} parent=1 // pred_check
      _
    $region39: #{tpu_custom_call.1} parent=1 // pred_check_branch
      %3727 = sbr.rel (0) target = $region41
    $region40: #{tpu_custom_call.1} parent=1 // pred_region
      %s3729 = ssub.s32 512, 512
      %3730 = vsyncadd [#allocation6], %s3729
      %s3731 = sshll.u32 [#allocation10], 4
      %s3732 = int_to_ptr.vmem [resolvable:$true] %s3731
      %3737 = dma.vmem_to_hbm [thread:$0]  %s3732, 512, %s4, [#allocation6], 64, 64, 4
    $region41: #{tpu_custom_call.1} parent=1 // pred_fallthru
      _
    // Predicated region
    $region42: #{tpu_custom_call.1} parent=1 // pred_check
      _
    $region43: #{tpu_custom_call.1} parent=1 // pred_check_branch
      %3739 = sbr.rel (0) target = $region45
    $region44: #{tpu_custom_call.1} parent=1 // pred_region
      %s3741 = ssub.s32 128, 128
      %3742 = vsyncadd [#allocation12], %s3741
      %s3744 = sshll.u32 [#allocation11], 4
      %s3745 = int_to_ptr.vmem [resolvable:$true] %s3744
      %3747 = dma.vmem_to_hbm [thread:$0]  %s3745, 128, %s5, [#allocation12]
    $region45: #{tpu_custom_call.1} parent=1 // pred_fallthru
      _
    // Predicated region
    $region46: #{tpu_custom_call.1} parent=1 // pred_check
      _
    $region47: #{tpu_custom_call.1} parent=1 // pred_check_branch
      %3749 = sbr.rel (0) target = $region49
    $region48: #{tpu_custom_call.1} parent=1 // pred_region
      %s3751 = ssub.s32 128, 128
      %3752 = vsyncadd [#allocation12], %s3751
      %s3754 = sshll.u32 [#allocation13], 4
      %s3755 = int_to_ptr.vmem [resolvable:$true] %s3754
      %3757 = dma.vmem_to_hbm [thread:$0]  %s3755, 128, %s6, [#allocation12]
    $region49: #{tpu_custom_call.1} parent=1 // pred_fallthru
      _
    // Predicated region
    $region50: #{tpu_custom_call.1} parent=1 // pred_check
      _
    $region51: #{tpu_custom_call.1} parent=1 // pred_check_branch
      %3759 = sbr.rel (0) target = $region53
    $region52: #{tpu_custom_call.1} parent=1 // pred_region
      %3760 = dma.done [#allocation6], 512
    $region53: #{tpu_custom_call.1} parent=1 // pred_fallthru
      _
    // Predicated region
    $region54: #{tpu_custom_call.1} parent=1 // pred_check
      _
    $region55: #{tpu_custom_call.1} parent=1 // pred_check_branch
      %3762 = sbr.rel (0) target = $region57
    $region56: #{tpu_custom_call.1} parent=1 // pred_region
      %3763 = dma.done [#allocation12], 128
    $region57: #{tpu_custom_call.1} parent=1 // pred_fallthru
      _
    // Predicated region
    $region58: #{tpu_custom_call.1} parent=1 // pred_check
      _
    $region59: #{tpu_custom_call.1} parent=1 // pred_check_branch
      %3765 = sbr.rel (0) target = $region61
    $region60: #{tpu_custom_call.1} parent=1 // pred_region
      %3766 = dma.done [#allocation12], 128
    $region61: #{tpu_custom_call.1} parent=1 // pred_fallthru
      _
    %3767 = vsyncpa [#allocation5], 1
    %3768 = vsyncpa [#allocation8], 1
    %3769 = vsyncpa [#allocation6], 1
    %3770 = vsyncpa [#allocation12], 1

</llo_original>
